<compile_context>
chip_gen: v6e
topology: v6e:2x2x1
jax: 0.10.0
libtpu: 0.0.40
codegen_flags: <defaults>
</compile_context>

<pallas_src>
import math

import jax
import jax.numpy as jnp
from jax import lax
from jax.experimental import pallas as pl
from jax.experimental.pallas import tpu as pltpu


def _vmem():
    return pl.BlockSpec(memory_space=pltpu.MemorySpace.VMEM)


# ---------------------------------------------------------------------------
# Fused kernel: all bidirectional LSTM layers + final FC in one pallas_call.
# Per layer the packed params are:
#   wih_comb: (D_in, 8H)  input->gate weights, gate-block layout (see pack_params)
#   whh_comb: (2H, 8H)    block-structured recurrent weights (fwd rows 0:H, bwd rows H:2H)
#   b_comb:   (1, 8H)     b_ih + b_hh, packed in the same gate-block layout
# followed by wfc (2H, O), bfc (1, O).  Output: (S, O).
# Scratch: two (S, 2H) VMEM ping-pong buffers holding the per-layer sequence output.
# ---------------------------------------------------------------------------
def make_lstm_model_kernel(S, H, num_layers):
    H2, H4, H6, H8 = 2 * H, 4 * H, 6 * H, 8 * H

    def kernel(*refs):
        x_ref = refs[0]
        wfc_ref = refs[1 + 3 * num_layers]
        bfc_ref = refs[2 + 3 * num_layers]
        out_ref = refs[3 + 3 * num_layers]
        bufs = (refs[4 + 3 * num_layers], refs[5 + 3 * num_layers])

        # Within each 2H-wide gate block, lanes [H:2H) belong to the backward
        # direction, which consumes timestep S-1-t at step t.
        lane = lax.broadcasted_iota(jnp.int32, (1, H8), 1)
        bwd_lane = (lane % H2) >= H

        for layer in range(num_layers):
            wih_ref = refs[1 + 3 * layer]
            whh_ref = refs[2 + 3 * layer]
            b_ref = refs[3 + 3 * layer]

            # Current layer input: original x for layer 0, previous layer's
            # assembled (S, 2H) output (resident in VMEM scratch) otherwise.
            inp = x_ref[...] if layer == 0 else bufs[(layer - 1) % 2][...]
            out_buf = bufs[layer % 2]

            # Input projection for all timesteps & both directions at once
            # (hoisted out of the sequential recurrence, 256-lane MXU output).
            xg = (
                jnp.dot(inp, wih_ref[...], preferred_element_type=jnp.float32)
                + b_ref[...]
            )  # (S, 8H)
            whh = whh_ref[...]  # (2H, 8H), loaded once per layer

            h = jnp.zeros((1, H2), jnp.float32)  # [h_fwd | h_bwd]
            c = jnp.zeros((1, H2), jnp.float32)  # [c_fwd | c_bwd]
            for t in range(S):  # fully unrolled recurrence (static S)
                # fwd lanes read timestep t, bwd lanes read timestep S-1-t.
                gate_x = jnp.where(bwd_lane, xg[S - 1 - t:S - t, :], xg[t:t + 1, :])
                gates = gate_x + jnp.dot(
                    h, whh, preferred_element_type=jnp.float32
                )  # (1, 8H)
                # Packed gate layout: sigmoid slab [i | f | o] (6H lanes),
                # tanh slab [g] (2H lanes); every sub-block is (fwd | bwd).
                sig = jax.nn.sigmoid(gates[:, 0:H6])
                g = jnp.tanh(gates[:, H6:H8])
                c = sig[:, H2:H4] * c + sig[:, 0:H2] * g
                h = sig[:, H4:H6] * jnp.tanh(c)
                # PyTorch bidirectional layout: fwd state of step t -> row t,
                # bwd state of step t -> row S-1-t.  Static masked stores.
                out_buf[t:t + 1, 0:H] = h[:, 0:H]
                out_buf[S - 1 - t:S - t, H:H2] = h[:, H:H2]

        # Final fully-connected layer, fused into the same kernel.
        final = bufs[(num_layers - 1) % 2][...]
        out_ref[...] = (
            jnp.dot(final, wfc_ref[...], preferred_element_type=jnp.float32)
            + bfc_ref[...]
        )

    return kernel


def lstm_model_forward(x, packed_layers, packed_fc):
    # x: (1, S, input_d)  (the module's squeeze(0)/unsqueeze(0) implies batch == 1)
    S = x.shape[1]
    H = packed_layers[0][1].shape[0] // 2  # whh_comb is (2H, 8H)
    wfc, bfc = packed_fc
    O = wfc.shape[1]
    num_layers = len(packed_layers)

    flat_inputs = [x[0]]
    for wih_comb, whh_comb, b_comb in packed_layers:
        flat_inputs += [wih_comb, whh_comb, b_comb]
    flat_inputs += [wfc, bfc]

    kernel = make_lstm_model_kernel(S, H, num_layers)
    out = pl.pallas_call(
        kernel,
        out_shape=jax.ShapeDtypeStruct((S, O), jnp.float32),
        in_specs=[_vmem()] * len(flat_inputs),
        out_specs=_vmem(),
        scratch_shapes=[
            pltpu.VMEM((S, 2 * H), jnp.float32),
            pltpu.VMEM((S, 2 * H), jnp.float32),
        ],
    )(*flat_inputs)
    return out[None]  # (1, S, O) == fc(out.squeeze(0)).unsqueeze(0)


# ---------------------------------------------------------------------------
# Parameter init (PyTorch default uniform(-1/sqrt(H), 1/sqrt(H)), raw layout)
# and packing into the kernel's fused layout.
# ---------------------------------------------------------------------------
def init_raw_params(key, input_d, hidden_d, layer_d, output_d):
    H = hidden_d
    bound = 1.0 / math.sqrt(H)
    layers = []
    for layer in range(layer_d):
        in_d = input_d if layer == 0 else 2 * H
        dirs = {}
        for direction in ("fwd", "bwd"):
            key, k1, k2, k3, k4 = jax.random.split(key, 5)
            wih = jax.random.uniform(k1, (4 * H, in_d), jnp.float32, -bound, bound)
            whh = jax.random.uniform(k2, (4 * H, H), jnp.float32, -bound, bound)
            bih = jax.random.uniform(k3, (4 * H,), jnp.float32, -bound, bound)
            bhh = jax.random.uniform(k4, (4 * H,), jnp.float32, -bound, bound)
            dirs[direction] = (wih, whh, bih, bhh)
        layers.append(dirs)
    fb = 1.0 / math.sqrt(2 * H)
    key, kf1, kf2 = jax.random.split(key, 3)
    wfc = jax.random.uniform(kf1, (output_d, 2 * H), jnp.float32, -fb, fb)
    bfc = jax.random.uniform(kf2, (output_d,), jnp.float32, -fb, fb)
    return layers, (wfc, bfc)


# PyTorch gate row-block order is (i, f, g, o); the kernel packs columns as
# [i_f,i_b | f_f,f_b | o_f,o_b | g_f,g_b] so sigmoid/tanh each cover one slab.
_GATE_ORDER = (0, 1, 3, 2)  # i, f, o, g


def pack_params(raw_layers, raw_fc, H):
    packed_layers = []
    for dirs in raw_layers:
        wih_f, whh_f, bih_f, bhh_f = dirs["fwd"]
        wih_b, whh_b, bih_b, bhh_b = dirs["bwd"]
        wih_f_t, wih_b_t = wih_f.T, wih_b.T  # (D, 4H)
        whh_f_t, whh_b_t = whh_f.T, whh_b.T  # (H, 4H)
        b_f = bih_f + bhh_f
        b_b = bih_b + bhh_b
        Z = jnp.zeros((H, H), jnp.float32)
        wih_cols, whh_cols, b_parts = [], [], []
        for g in _GATE_ORDER:
            sl = slice(g * H, (g + 1) * H)
            wih_cols += [wih_f_t[:, sl], wih_b_t[:, sl]]
            whh_cols += [
                jnp.concatenate([whh_f_t[:, sl], Z], axis=0),  # fwd gates read h_fwd rows
                jnp.concatenate([Z, whh_b_t[:, sl]], axis=0),  # bwd gates read h_bwd rows
            ]
            b_parts += [b_f[sl], b_b[sl]]
        wih_comb = jnp.concatenate(wih_cols, axis=1)   # (D, 8H)
        whh_comb = jnp.concatenate(whh_cols, axis=1)   # (2H, 8H)
        b_comb = jnp.concatenate(b_parts)[None, :]     # (1, 8H)
        packed_layers.append((wih_comb, whh_comb, b_comb))
    wfc, bfc = raw_fc
    return packed_layers, (wfc.T, bfc[None, :])


# ---------------------------------------------------------------------------
# Pure-JAX reference (PyTorch semantics) for correctness checking.
# ---------------------------------------------------------------------------
def ref_forward(x, raw_layers, raw_fc):
    hp = lax.Precision.HIGHEST
    h_seq = x[0]
    for dirs in raw_layers:
        outs = []
        for name, reverse in (("fwd", False), ("bwd", True)):
            wih, whh, bih, bhh = dirs[name]
            H = whh.shape[1]
            seq = h_seq[::-1] if reverse else h_seq
            h = jnp.zeros((H,), jnp.float32)
            c = jnp.zeros((H,), jnp.float32)
            hs = []
            for t in range(seq.shape[0]):
                gts = (
                    jnp.dot(wih, seq[t], precision=hp) + bih
                    + jnp.dot(whh, h, precision=hp) + bhh
                )
                i = jax.nn.sigmoid(gts[0:H])
                f = jax.nn.sigmoid(gts[H:2 * H])
                g = jnp.tanh(gts[2 * H:3 * H])
                o = jax.nn.sigmoid(gts[3 * H:4 * H])
                c = f * c + i * g
                h = o * jnp.tanh(c)
                hs.append(h)
            hs = jnp.stack(hs)
            if reverse:
                hs = hs[::-1]
            outs.append(hs)
        h_seq = jnp.concatenate(outs, axis=1)
    wfc, bfc = raw_fc
    return (jnp.dot(h_seq, wfc.T, precision=hp) + bfc)[None]


if __name__ == "__main__":
    input_d, hidden_d, layer_d, output_d = 16, 32, 2, 8
    batch, seq = 1, 8

    key = jax.random.PRNGKey(0)
    key, kx = jax.random.split(key)
    x = jax.random.normal(kx, (batch, seq, input_d), dtype=jnp.float32)

    raw_layers, raw_fc = init_raw_params(key, input_d, hidden_d, layer_d, output_d)
    packed_layers, packed_fc = pack_params(raw_layers, raw_fc, hidden_d)

    out = lstm_model_forward(x, packed_layers, packed_fc)
    out = jax.block_until_ready(out)
    assert out.shape == (batch, seq, output_d), out.shape

    ref = jax.block_until_ready(ref_forward(x, raw_layers, raw_fc))
    max_err = float(jnp.max(jnp.abs(out - ref)))
    assert max_err < 2e-3, f"mismatch vs reference: max abs err {max_err}"

    print("KERNEL_OK")
</pallas_src>

<mosaic_0001>
module attributes {stable_mosaic.version = 11 : i64} {
  func.func @kernel(%arg0: memref<8x16xf32, #tpu.memory_space<vmem>>, %arg1: memref<16x256xf32, #tpu.memory_space<vmem>>, %arg2: memref<64x256xf32, #tpu.memory_space<vmem>>, %arg3: memref<1x256xf32, #tpu.memory_space<vmem>>, %arg4: memref<64x256xf32, #tpu.memory_space<vmem>>, %arg5: memref<64x256xf32, #tpu.memory_space<vmem>>, %arg6: memref<1x256xf32, #tpu.memory_space<vmem>>, %arg7: memref<64x8xf32, #tpu.memory_space<vmem>>, %arg8: memref<1x8xf32, #tpu.memory_space<vmem>>, %arg9: memref<8x8xf32, #tpu.memory_space<vmem>>, %arg10: memref<8x64xf32, #tpu.memory_space<vmem>>, %arg11: memref<8x64xf32, #tpu.memory_space<vmem>>) attributes {dimension_semantics = [], scalar_prefetch = 0 : i64, scratch_operands = 2 : i64, tpu.core_type = #tpu.core_type<tc>} {
    %0 = tpu.iota {dimensions = array<i32: 1>} : vector<1x256xi32>
    %c64_i32 = arith.constant 64 : i32
    %c0_i32 = arith.constant 0 : i32
    %1 = arith.cmpi eq, %c64_i32, %c0_i32 : i32
    %c1_i32 = arith.constant 1 : i32
    %2 = arith.select %1, %c1_i32, %c64_i32 : i32
    %3 = vector.broadcast %2 : i32 to vector<1x256xi32>
    %4 = arith.remsi %0, %3 : vector<1x256xi32>
    %c0_i32_0 = arith.constant 0 : i32
    %5 = vector.broadcast %c0_i32_0 : i32 to vector<1x256xi32>
    %6 = arith.cmpi ne, %4, %5 : vector<1x256xi32>
    %c0_i32_1 = arith.constant 0 : i32
    %7 = vector.broadcast %c0_i32_1 : i32 to vector<1x256xi32>
    %8 = arith.cmpi slt, %4, %7 : vector<1x256xi32>
    %c0_i32_2 = arith.constant 0 : i32
    %9 = arith.cmpi slt, %2, %c0_i32_2 : i32
    %10 = vector.broadcast %9 : i1 to vector<1x256xi1>
    %11 = vector.broadcast %10 : vector<1x256xi1> to vector<1x256xi1>
    %12 = arith.xori %8, %11 : vector<1x256xi1>
    %13 = arith.andi %12, %6 : vector<1x256xi1>
    %14 = vector.broadcast %2 : i32 to vector<1x256xi32>
    %15 = arith.addi %4, %14 : vector<1x256xi32>
    %16 = arith.select %13, %15, %4 : vector<1x256xi1>, vector<1x256xi32>
    %c32_i32 = arith.constant 32 : i32
    %17 = vector.broadcast %c32_i32 : i32 to vector<1x256xi32>
    %18 = arith.cmpi sge, %16, %17 : vector<1x256xi32>
    %c0 = arith.constant 0 : index
    %c0_3 = arith.constant 0 : index
    %19 = vector.load %arg0[%c0, %c0_3] : memref<8x16xf32, #tpu.memory_space<vmem>>, vector<8x16xf32>
    %c0_4 = arith.constant 0 : index
    %c0_5 = arith.constant 0 : index
    %20 = vector.load %arg1[%c0_4, %c0_5] : memref<16x256xf32, #tpu.memory_space<vmem>>, vector<16x256xf32>
    %cst = arith.constant dense<0.000000e+00> : vector<8x256xf32>
    %21 = tpu.matmul %19, %20, %cst {dimension_numbers = #tpu.dot_dimension_numbers<[1], [0], [0], [1], [0, 0, 1, 1], [], []>} : vector<8x16xf32>, vector<16x256xf32>, vector<8x256xf32> -> vector<8x256xf32>
    %c0_6 = arith.constant 0 : index
    %c0_7 = arith.constant 0 : index
    %22 = vector.load %arg3[%c0_6, %c0_7] : memref<1x256xf32, #tpu.memory_space<vmem>>, vector<1x256xf32>
    %23 = vector.broadcast %22 : vector<1x256xf32> to vector<8x256xf32>
    %24 = arith.addf %21, %23 : vector<8x256xf32>
    %c0_8 = arith.constant 0 : index
    %c0_9 = arith.constant 0 : index
    %25 = vector.load %arg2[%c0_8, %c0_9] : memref<64x256xf32, #tpu.memory_space<vmem>>, vector<64x256xf32>
    %cst_10 = arith.constant 0.000000e+00 : f32
    %26 = vector.broadcast %cst_10 : f32 to vector<1x64xf32>
    %cst_11 = arith.constant 0.000000e+00 : f32
    %27 = vector.broadcast %cst_11 : f32 to vector<1x64xf32>
    %28 = vector.extract_strided_slice %24 {offsets = [7, 0], sizes = [1, 256], strides = [1, 1]} : vector<8x256xf32> to vector<1x256xf32>
    %29 = vector.extract_strided_slice %24 {offsets = [0, 0], sizes = [1, 256], strides = [1, 1]} : vector<8x256xf32> to vector<1x256xf32>
    %30 = arith.select %18, %28, %29 : vector<1x256xi1>, vector<1x256xf32>
    %cst_12 = arith.constant dense<0.000000e+00> : vector<1x256xf32>
    %31 = tpu.matmul %26, %25, %cst_12 {dimension_numbers = #tpu.dot_dimension_numbers<[1], [0], [0], [1], [0, 0, 1, 1], [], []>} : vector<1x64xf32>, vector<64x256xf32>, vector<1x256xf32> -> vector<1x256xf32>
    %32 = arith.addf %30, %31 : vector<1x256xf32>
    %33 = vector.extract_strided_slice %32 {offsets = [0, 0], sizes = [1, 192], strides = [1, 1]} : vector<1x256xf32> to vector<1x192xf32>
    %34 = arith.negf %33 : vector<1x192xf32>
    %35 = math.exp %34 : vector<1x192xf32>
    %cst_13 = arith.constant 1.000000e+00 : f32
    %36 = vector.broadcast %cst_13 : f32 to vector<1x192xf32>
    %37 = arith.addf %36, %35 : vector<1x192xf32>
    %38 = arith.divf %36, %37 : vector<1x192xf32>
    %39 = vector.extract_strided_slice %32 {offsets = [0, 192], sizes = [1, 64], strides = [1, 1]} : vector<1x256xf32> to vector<1x64xf32>
    %40 = math.tanh %39 : vector<1x64xf32>
    %41 = vector.extract_strided_slice %38 {offsets = [0, 64], sizes = [1, 64], strides = [1, 1]} : vector<1x192xf32> to vector<1x64xf32>
    %42 = arith.mulf %41, %27 : vector<1x64xf32>
    %43 = vector.extract_strided_slice %38 {offsets = [0, 0], sizes = [1, 64], strides = [1, 1]} : vector<1x192xf32> to vector<1x64xf32>
    %44 = arith.mulf %43, %40 : vector<1x64xf32>
    %45 = arith.addf %42, %44 : vector<1x64xf32>
    %46 = vector.extract_strided_slice %38 {offsets = [0, 128], sizes = [1, 64], strides = [1, 1]} : vector<1x192xf32> to vector<1x64xf32>
    %47 = math.tanh %45 : vector<1x64xf32>
    %48 = arith.mulf %46, %47 : vector<1x64xf32>
    %49 = vector.extract_strided_slice %48 {offsets = [0, 0], sizes = [1, 32], strides = [1, 1]} : vector<1x64xf32> to vector<1x32xf32>
    %c0_14 = arith.constant 0 : index
    %c0_15 = arith.constant 0 : index
    %50 = vector.load %arg10[%c0_14, %c0_15] : memref<8x64xf32, #tpu.memory_space<vmem>>, vector<1x32xf32>
    tpu.vector_store %arg10[%c0_14, %c0_15], %49 {strides = array<i32>} : memref<8x64xf32, #tpu.memory_space<vmem>>, vector<1x32xf32>,
    %51 = vector.extract_strided_slice %48 {offsets = [0, 32], sizes = [1, 32], strides = [1, 1]} : vector<1x64xf32> to vector<1x32xf32>
    %c7 = arith.constant 7 : index
    %c32 = arith.constant 32 : index
    %52 = vector.load %arg10[%c7, %c32] : memref<8x64xf32, #tpu.memory_space<vmem>>, vector<1x32xf32>
    tpu.vector_store %arg10[%c7, %c32], %51 {strides = array<i32>} : memref<8x64xf32, #tpu.memory_space<vmem>>, vector<1x32xf32>,
    %53 = vector.extract_strided_slice %24 {offsets = [6, 0], sizes = [1, 256], strides = [1, 1]} : vector<8x256xf32> to vector<1x256xf32>
    %54 = vector.extract_strided_slice %24 {offsets = [1, 0], sizes = [1, 256], strides = [1, 1]} : vector<8x256xf32> to vector<1x256xf32>
    %55 = arith.select %18, %53, %54 : vector<1x256xi1>, vector<1x256xf32>
    %cst_16 = arith.constant dense<0.000000e+00> : vector<1x256xf32>
    %56 = tpu.matmul %48, %25, %cst_16 {dimension_numbers = #tpu.dot_dimension_numbers<[1], [0], [0], [1], [0, 0, 1, 1], [], []>} : vector<1x64xf32>, vector<64x256xf32>, vector<1x256xf32> -> vector<1x256xf32>
    %57 = arith.addf %55, %56 : vector<1x256xf32>
    %58 = vector.extract_strided_slice %57 {offsets = [0, 0], sizes = [1, 192], strides = [1, 1]} : vector<1x256xf32> to vector<1x192xf32>
    %59 = arith.negf %58 : vector<1x192xf32>
    %60 = math.exp %59 : vector<1x192xf32>
    %cst_17 = arith.constant 1.000000e+00 : f32
    %61 = vector.broadcast %cst_17 : f32 to vector<1x192xf32>
    %62 = arith.addf %61, %60 : vector<1x192xf32>
    %63 = arith.divf %61, %62 : vector<1x192xf32>
    %64 = vector.extract_strided_slice %57 {offsets = [0, 192], sizes = [1, 64], strides = [1, 1]} : vector<1x256xf32> to vector<1x64xf32>
    %65 = math.tanh %64 : vector<1x64xf32>
    %66 = vector.extract_strided_slice %63 {offsets = [0, 64], sizes = [1, 64], strides = [1, 1]} : vector<1x192xf32> to vector<1x64xf32>
    %67 = arith.mulf %66, %45 : vector<1x64xf32>
    %68 = vector.extract_strided_slice %63 {offsets = [0, 0], sizes = [1, 64], strides = [1, 1]} : vector<1x192xf32> to vector<1x64xf32>
    %69 = arith.mulf %68, %65 : vector<1x64xf32>
    %70 = arith.addf %67, %69 : vector<1x64xf32>
    %71 = vector.extract_strided_slice %63 {offsets = [0, 128], sizes = [1, 64], strides = [1, 1]} : vector<1x192xf32> to vector<1x64xf32>
    %72 = math.tanh %70 : vector<1x64xf32>
    %73 = arith.mulf %71, %72 : vector<1x64xf32>
    %74 = vector.extract_strided_slice %73 {offsets = [0, 0], sizes = [1, 32], strides = [1, 1]} : vector<1x64xf32> to vector<1x32xf32>
    %c1 = arith.constant 1 : index
    %c0_18 = arith.constant 0 : index
    %75 = vector.load %arg10[%c1, %c0_18] : memref<8x64xf32, #tpu.memory_space<vmem>>, vector<1x32xf32>
    tpu.vector_store %arg10[%c1, %c0_18], %74 {strides = array<i32>} : memref<8x64xf32, #tpu.memory_space<vmem>>, vector<1x32xf32>,
    %76 = vector.extract_strided_slice %73 {offsets = [0, 32], sizes = [1, 32], strides = [1, 1]} : vector<1x64xf32> to vector<1x32xf32>
    %c6 = arith.constant 6 : index
    %c32_19 = arith.constant 32 : index
    %77 = vector.load %arg10[%c6, %c32_19] : memref<8x64xf32, #tpu.memory_space<vmem>>, vector<1x32xf32>
    tpu.vector_store %arg10[%c6, %c32_19], %76 {strides = array<i32>} : memref<8x64xf32, #tpu.memory_space<vmem>>, vector<1x32xf32>,
    %78 = vector.extract_strided_slice %24 {offsets = [5, 0], sizes = [1, 256], strides = [1, 1]} : vector<8x256xf32> to vector<1x256xf32>
    %79 = vector.extract_strided_slice %24 {offsets = [2, 0], sizes = [1, 256], strides = [1, 1]} : vector<8x256xf32> to vector<1x256xf32>
    %80 = arith.select %18, %78, %79 : vector<1x256xi1>, vector<1x256xf32>
    %cst_20 = arith.constant dense<0.000000e+00> : vector<1x256xf32>
    %81 = tpu.matmul %73, %25, %cst_20 {dimension_numbers = #tpu.dot_dimension_numbers<[1], [0], [0], [1], [0, 0, 1, 1], [], []>} : vector<1x64xf32>, vector<64x256xf32>, vector<1x256xf32> -> vector<1x256xf32>
    %82 = arith.addf %80, %81 : vector<1x256xf32>
    %83 = vector.extract_strided_slice %82 {offsets = [0, 0], sizes = [1, 192], strides = [1, 1]} : vector<1x256xf32> to vector<1x192xf32>
    %84 = arith.negf %83 : vector<1x192xf32>
    %85 = math.exp %84 : vector<1x192xf32>
    %cst_21 = arith.constant 1.000000e+00 : f32
    %86 = vector.broadcast %cst_21 : f32 to vector<1x192xf32>
    %87 = arith.addf %86, %85 : vector<1x192xf32>
    %88 = arith.divf %86, %87 : vector<1x192xf32>
    %89 = vector.extract_strided_slice %82 {offsets = [0, 192], sizes = [1, 64], strides = [1, 1]} : vector<1x256xf32> to vector<1x64xf32>
    %90 = math.tanh %89 : vector<1x64xf32>
    %91 = vector.extract_strided_slice %88 {offsets = [0, 64], sizes = [1, 64], strides = [1, 1]} : vector<1x192xf32> to vector<1x64xf32>
    %92 = arith.mulf %91, %70 : vector<1x64xf32>
    %93 = vector.extract_strided_slice %88 {offsets = [0, 0], sizes = [1, 64], strides = [1, 1]} : vector<1x192xf32> to vector<1x64xf32>
    %94 = arith.mulf %93, %90 : vector<1x64xf32>
    %95 = arith.addf %92, %94 : vector<1x64xf32>
    %96 = vector.extract_strided_slice %88 {offsets = [0, 128], sizes = [1, 64], strides = [1, 1]} : vector<1x192xf32> to vector<1x64xf32>
    %97 = math.tanh %95 : vector<1x64xf32>
    %98 = arith.mulf %96, %97 : vector<1x64xf32>
    %99 = vector.extract_strided_slice %98 {offsets = [0, 0], sizes = [1, 32], strides = [1, 1]} : vector<1x64xf32> to vector<1x32xf32>
    %c2 = arith.constant 2 : index
    %c0_22 = arith.constant 0 : index
    %100 = vector.load %arg10[%c2, %c0_22] : memref<8x64xf32, #tpu.memory_space<vmem>>, vector<1x32xf32>
    tpu.vector_store %arg10[%c2, %c0_22], %99 {strides = array<i32>} : memref<8x64xf32, #tpu.memory_space<vmem>>, vector<1x32xf32>,
    %101 = vector.extract_strided_slice %98 {offsets = [0, 32], sizes = [1, 32], strides = [1, 1]} : vector<1x64xf32> to vector<1x32xf32>
    %c5 = arith.constant 5 : index
    %c32_23 = arith.constant 32 : index
    %102 = vector.load %arg10[%c5, %c32_23] : memref<8x64xf32, #tpu.memory_space<vmem>>, vector<1x32xf32>
    tpu.vector_store %arg10[%c5, %c32_23], %101 {strides = array<i32>} : memref<8x64xf32, #tpu.memory_space<vmem>>, vector<1x32xf32>,
    %103 = vector.extract_strided_slice %24 {offsets = [4, 0], sizes = [1, 256], strides = [1, 1]} : vector<8x256xf32> to vector<1x256xf32>
    %104 = vector.extract_strided_slice %24 {offsets = [3, 0], sizes = [1, 256], strides = [1, 1]} : vector<8x256xf32> to vector<1x256xf32>
    %105 = arith.select %18, %103, %104 : vector<1x256xi1>, vector<1x256xf32>
    %cst_24 = arith.constant dense<0.000000e+00> : vector<1x256xf32>
    %106 = tpu.matmul %98, %25, %cst_24 {dimension_numbers = #tpu.dot_dimension_numbers<[1], [0], [0], [1], [0, 0, 1, 1], [], []>} : vector<1x64xf32>, vector<64x256xf32>, vector<1x256xf32> -> vector<1x256xf32>
    %107 = arith.addf %105, %106 : vector<1x256xf32>
    %108 = vector.extract_strided_slice %107 {offsets = [0, 0], sizes = [1, 192], strides = [1, 1]} : vector<1x256xf32> to vector<1x192xf32>
    %109 = arith.negf %108 : vector<1x192xf32>
    %110 = math.exp %109 : vector<1x192xf32>
    %cst_25 = arith.constant 1.000000e+00 : f32
    %111 = vector.broadcast %cst_25 : f32 to vector<1x192xf32>
    %112 = arith.addf %111, %110 : vector<1x192xf32>
    %113 = arith.divf %111, %112 : vector<1x192xf32>
    %114 = vector.extract_strided_slice %107 {offsets = [0, 192], sizes = [1, 64], strides = [1, 1]} : vector<1x256xf32> to vector<1x64xf32>
    %115 = math.tanh %114 : vector<1x64xf32>
    %116 = vector.extract_strided_slice %113 {offsets = [0, 64], sizes = [1, 64], strides = [1, 1]} : vector<1x192xf32> to vector<1x64xf32>
    %117 = arith.mulf %116, %95 : vector<1x64xf32>
    %118 = vector.extract_strided_slice %113 {offsets = [0, 0], sizes = [1, 64], strides = [1, 1]} : vector<1x192xf32> to vector<1x64xf32>
    %119 = arith.mulf %118, %115 : vector<1x64xf32>
    %120 = arith.addf %117, %119 : vector<1x64xf32>
    %121 = vector.extract_strided_slice %113 {offsets = [0, 128], sizes = [1, 64], strides = [1, 1]} : vector<1x192xf32> to vector<1x64xf32>
    %122 = math.tanh %120 : vector<1x64xf32>
    %123 = arith.mulf %121, %122 : vector<1x64xf32>
    %124 = vector.extract_strided_slice %123 {offsets = [0, 0], sizes = [1, 32], strides = [1, 1]} : vector<1x64xf32> to vector<1x32xf32>
    %c3 = arith.constant 3 : index
    %c0_26 = arith.constant 0 : index
    %125 = vector.load %arg10[%c3, %c0_26] : memref<8x64xf32, #tpu.memory_space<vmem>>, vector<1x32xf32>
    tpu.vector_store %arg10[%c3, %c0_26], %124 {strides = array<i32>} : memref<8x64xf32, #tpu.memory_space<vmem>>, vector<1x32xf32>,
    %126 = vector.extract_strided_slice %123 {offsets = [0, 32], sizes = [1, 32], strides = [1, 1]} : vector<1x64xf32> to vector<1x32xf32>
    %c4 = arith.constant 4 : index
    %c32_27 = arith.constant 32 : index
    %127 = vector.load %arg10[%c4, %c32_27] : memref<8x64xf32, #tpu.memory_space<vmem>>, vector<1x32xf32>
    tpu.vector_store %arg10[%c4, %c32_27], %126 {strides = array<i32>} : memref<8x64xf32, #tpu.memory_space<vmem>>, vector<1x32xf32>,
    %128 = vector.extract_strided_slice %24 {offsets = [3, 0], sizes = [1, 256], strides = [1, 1]} : vector<8x256xf32> to vector<1x256xf32>
    %129 = vector.extract_strided_slice %24 {offsets = [4, 0], sizes = [1, 256], strides = [1, 1]} : vector<8x256xf32> to vector<1x256xf32>
    %130 = arith.select %18, %128, %129 : vector<1x256xi1>, vector<1x256xf32>
    %cst_28 = arith.constant dense<0.000000e+00> : vector<1x256xf32>
    %131 = tpu.matmul %123, %25, %cst_28 {dimension_numbers = #tpu.dot_dimension_numbers<[1], [0], [0], [1], [0, 0, 1, 1], [], []>} : vector<1x64xf32>, vector<64x256xf32>, vector<1x256xf32> -> vector<1x256xf32>
    %132 = arith.addf %130, %131 : vector<1x256xf32>
    %133 = vector.extract_strided_slice %132 {offsets = [0, 0], sizes = [1, 192], strides = [1, 1]} : vector<1x256xf32> to vector<1x192xf32>
    %134 = arith.negf %133 : vector<1x192xf32>
    %135 = math.exp %134 : vector<1x192xf32>
    %cst_29 = arith.constant 1.000000e+00 : f32
    %136 = vector.broadcast %cst_29 : f32 to vector<1x192xf32>
    %137 = arith.addf %136, %135 : vector<1x192xf32>
    %138 = arith.divf %136, %137 : vector<1x192xf32>
    %139 = vector.extract_strided_slice %132 {offsets = [0, 192], sizes = [1, 64], strides = [1, 1]} : vector<1x256xf32> to vector<1x64xf32>
    %140 = math.tanh %139 : vector<1x64xf32>
    %141 = vector.extract_strided_slice %138 {offsets = [0, 64], sizes = [1, 64], strides = [1, 1]} : vector<1x192xf32> to vector<1x64xf32>
    %142 = arith.mulf %141, %120 : vector<1x64xf32>
    %143 = vector.extract_strided_slice %138 {offsets = [0, 0], sizes = [1, 64], strides = [1, 1]} : vector<1x192xf32> to vector<1x64xf32>
    %144 = arith.mulf %143, %140 : vector<1x64xf32>
    %145 = arith.addf %142, %144 : vector<1x64xf32>
    %146 = vector.extract_strided_slice %138 {offsets = [0, 128], sizes = [1, 64], strides = [1, 1]} : vector<1x192xf32> to vector<1x64xf32>
    %147 = math.tanh %145 : vector<1x64xf32>
    %148 = arith.mulf %146, %147 : vector<1x64xf32>
    %149 = vector.extract_strided_slice %148 {offsets = [0, 0], sizes = [1, 32], strides = [1, 1]} : vector<1x64xf32> to vector<1x32xf32>
    %c4_30 = arith.constant 4 : index
    %c0_31 = arith.constant 0 : index
    %150 = vector.load %arg10[%c4_30, %c0_31] : memref<8x64xf32, #tpu.memory_space<vmem>>, vector<1x32xf32>
    tpu.vector_store %arg10[%c4_30, %c0_31], %149 {strides = array<i32>} : memref<8x64xf32, #tpu.memory_space<vmem>>, vector<1x32xf32>,
    %151 = vector.extract_strided_slice %148 {offsets = [0, 32], sizes = [1, 32], strides = [1, 1]} : vector<1x64xf32> to vector<1x32xf32>
    %c3_32 = arith.constant 3 : index
    %c32_33 = arith.constant 32 : index
    %152 = vector.load %arg10[%c3_32, %c32_33] : memref<8x64xf32, #tpu.memory_space<vmem>>, vector<1x32xf32>
    tpu.vector_store %arg10[%c3_32, %c32_33], %151 {strides = array<i32>} : memref<8x64xf32, #tpu.memory_space<vmem>>, vector<1x32xf32>,
    %153 = vector.extract_strided_slice %24 {offsets = [2, 0], sizes = [1, 256], strides = [1, 1]} : vector<8x256xf32> to vector<1x256xf32>
    %154 = vector.extract_strided_slice %24 {offsets = [5, 0], sizes = [1, 256], strides = [1, 1]} : vector<8x256xf32> to vector<1x256xf32>
    %155 = arith.select %18, %153, %154 : vector<1x256xi1>, vector<1x256xf32>
    %cst_34 = arith.constant dense<0.000000e+00> : vector<1x256xf32>
    %156 = tpu.matmul %148, %25, %cst_34 {dimension_numbers = #tpu.dot_dimension_numbers<[1], [0], [0], [1], [0, 0, 1, 1], [], []>} : vector<1x64xf32>, vector<64x256xf32>, vector<1x256xf32> -> vector<1x256xf32>
    %157 = arith.addf %155, %156 : vector<1x256xf32>
    %158 = vector.extract_strided_slice %157 {offsets = [0, 0], sizes = [1, 192], strides = [1, 1]} : vector<1x256xf32> to vector<1x192xf32>
    %159 = arith.negf %158 : vector<1x192xf32>
    %160 = math.exp %159 : vector<1x192xf32>
    %cst_35 = arith.constant 1.000000e+00 : f32
    %161 = vector.broadcast %cst_35 : f32 to vector<1x192xf32>
    %162 = arith.addf %161, %160 : vector<1x192xf32>
    %163 = arith.divf %161, %162 : vector<1x192xf32>
    %164 = vector.extract_strided_slice %157 {offsets = [0, 192], sizes = [1, 64], strides = [1, 1]} : vector<1x256xf32> to vector<1x64xf32>
    %165 = math.tanh %164 : vector<1x64xf32>
    %166 = vector.extract_strided_slice %163 {offsets = [0, 64], sizes = [1, 64], strides = [1, 1]} : vector<1x192xf32> to vector<1x64xf32>
    %167 = arith.mulf %166, %145 : vector<1x64xf32>
    %168 = vector.extract_strided_slice %163 {offsets = [0, 0], sizes = [1, 64], strides = [1, 1]} : vector<1x192xf32> to vector<1x64xf32>
    %169 = arith.mulf %168, %165 : vector<1x64xf32>
    %170 = arith.addf %167, %169 : vector<1x64xf32>
    %171 = vector.extract_strided_slice %163 {offsets = [0, 128], sizes = [1, 64], strides = [1, 1]} : vector<1x192xf32> to vector<1x64xf32>
    %172 = math.tanh %170 : vector<1x64xf32>
    %173 = arith.mulf %171, %172 : vector<1x64xf32>
    %174 = vector.extract_strided_slice %173 {offsets = [0, 0], sizes = [1, 32], strides = [1, 1]} : vector<1x64xf32> to vector<1x32xf32>
    %c5_36 = arith.constant 5 : index
    %c0_37 = arith.constant 0 : index
    %175 = vector.load %arg10[%c5_36, %c0_37] : memref<8x64xf32, #tpu.memory_space<vmem>>, vector<1x32xf32>
    tpu.vector_store %arg10[%c5_36, %c0_37], %174 {strides = array<i32>} : memref<8x64xf32, #tpu.memory_space<vmem>>, vector<1x32xf32>,
    %176 = vector.extract_strided_slice %173 {offsets = [0, 32], sizes = [1, 32], strides = [1, 1]} : vector<1x64xf32> to vector<1x32xf32>
    %c2_38 = arith.constant 2 : index
    %c32_39 = arith.constant 32 : index
    %177 = vector.load %arg10[%c2_38, %c32_39] : memref<8x64xf32, #tpu.memory_space<vmem>>, vector<1x32xf32>
    tpu.vector_store %arg10[%c2_38, %c32_39], %176 {strides = array<i32>} : memref<8x64xf32, #tpu.memory_space<vmem>>, vector<1x32xf32>,
    %178 = vector.extract_strided_slice %24 {offsets = [1, 0], sizes = [1, 256], strides = [1, 1]} : vector<8x256xf32> to vector<1x256xf32>
    %179 = vector.extract_strided_slice %24 {offsets = [6, 0], sizes = [1, 256], strides = [1, 1]} : vector<8x256xf32> to vector<1x256xf32>
    %180 = arith.select %18, %178, %179 : vector<1x256xi1>, vector<1x256xf32>
    %cst_40 = arith.constant dense<0.000000e+00> : vector<1x256xf32>
    %181 = tpu.matmul %173, %25, %cst_40 {dimension_numbers = #tpu.dot_dimension_numbers<[1], [0], [0], [1], [0, 0, 1, 1], [], []>} : vector<1x64xf32>, vector<64x256xf32>, vector<1x256xf32> -> vector<1x256xf32>
    %182 = arith.addf %180, %181 : vector<1x256xf32>
    %183 = vector.extract_strided_slice %182 {offsets = [0, 0], sizes = [1, 192], strides = [1, 1]} : vector<1x256xf32> to vector<1x192xf32>
    %184 = arith.negf %183 : vector<1x192xf32>
    %185 = math.exp %184 : vector<1x192xf32>
    %cst_41 = arith.constant 1.000000e+00 : f32
    %186 = vector.broadcast %cst_41 : f32 to vector<1x192xf32>
    %187 = arith.addf %186, %185 : vector<1x192xf32>
    %188 = arith.divf %186, %187 : vector<1x192xf32>
    %189 = vector.extract_strided_slice %182 {offsets = [0, 192], sizes = [1, 64], strides = [1, 1]} : vector<1x256xf32> to vector<1x64xf32>
    %190 = math.tanh %189 : vector<1x64xf32>
    %191 = vector.extract_strided_slice %188 {offsets = [0, 64], sizes = [1, 64], strides = [1, 1]} : vector<1x192xf32> to vector<1x64xf32>
    %192 = arith.mulf %191, %170 : vector<1x64xf32>
    %193 = vector.extract_strided_slice %188 {offsets = [0, 0], sizes = [1, 64], strides = [1, 1]} : vector<1x192xf32> to vector<1x64xf32>
    %194 = arith.mulf %193, %190 : vector<1x64xf32>
    %195 = arith.addf %192, %194 : vector<1x64xf32>
    %196 = vector.extract_strided_slice %188 {offsets = [0, 128], sizes = [1, 64], strides = [1, 1]} : vector<1x192xf32> to vector<1x64xf32>
    %197 = math.tanh %195 : vector<1x64xf32>
    %198 = arith.mulf %196, %197 : vector<1x64xf32>
    %199 = vector.extract_strided_slice %198 {offsets = [0, 0], sizes = [1, 32], strides = [1, 1]} : vector<1x64xf32> to vector<1x32xf32>
    %c6_42 = arith.constant 6 : index
    %c0_43 = arith.constant 0 : index
    %200 = vector.load %arg10[%c6_42, %c0_43] : memref<8x64xf32, #tpu.memory_space<vmem>>, vector<1x32xf32>
    tpu.vector_store %arg10[%c6_42, %c0_43], %199 {strides = array<i32>} : memref<8x64xf32, #tpu.memory_space<vmem>>, vector<1x32xf32>,
    %201 = vector.extract_strided_slice %198 {offsets = [0, 32], sizes = [1, 32], strides = [1, 1]} : vector<1x64xf32> to vector<1x32xf32>
    %c1_44 = arith.constant 1 : index
    %c32_45 = arith.constant 32 : index
    %202 = vector.load %arg10[%c1_44, %c32_45] : memref<8x64xf32, #tpu.memory_space<vmem>>, vector<1x32xf32>
    tpu.vector_store %arg10[%c1_44, %c32_45], %201 {strides = array<i32>} : memref<8x64xf32, #tpu.memory_space<vmem>>, vector<1x32xf32>,
    %203 = vector.extract_strided_slice %24 {offsets = [0, 0], sizes = [1, 256], strides = [1, 1]} : vector<8x256xf32> to vector<1x256xf32>
    %204 = vector.extract_strided_slice %24 {offsets = [7, 0], sizes = [1, 256], strides = [1, 1]} : vector<8x256xf32> to vector<1x256xf32>
    %205 = arith.select %18, %203, %204 : vector<1x256xi1>, vector<1x256xf32>
    %cst_46 = arith.constant dense<0.000000e+00> : vector<1x256xf32>
    %206 = tpu.matmul %198, %25, %cst_46 {dimension_numbers = #tpu.dot_dimension_numbers<[1], [0], [0], [1], [0, 0, 1, 1], [], []>} : vector<1x64xf32>, vector<64x256xf32>, vector<1x256xf32> -> vector<1x256xf32>
    %207 = arith.addf %205, %206 : vector<1x256xf32>
    %208 = vector.extract_strided_slice %207 {offsets = [0, 0], sizes = [1, 192], strides = [1, 1]} : vector<1x256xf32> to vector<1x192xf32>
    %209 = arith.negf %208 : vector<1x192xf32>
    %210 = math.exp %209 : vector<1x192xf32>
    %cst_47 = arith.constant 1.000000e+00 : f32
    %211 = vector.broadcast %cst_47 : f32 to vector<1x192xf32>
    %212 = arith.addf %211, %210 : vector<1x192xf32>
    %213 = arith.divf %211, %212 : vector<1x192xf32>
    %214 = vector.extract_strided_slice %207 {offsets = [0, 192], sizes = [1, 64], strides = [1, 1]} : vector<1x256xf32> to vector<1x64xf32>
    %215 = math.tanh %214 : vector<1x64xf32>
    %216 = vector.extract_strided_slice %213 {offsets = [0, 64], sizes = [1, 64], strides = [1, 1]} : vector<1x192xf32> to vector<1x64xf32>
    %217 = arith.mulf %216, %195 : vector<1x64xf32>
    %218 = vector.extract_strided_slice %213 {offsets = [0, 0], sizes = [1, 64], strides = [1, 1]} : vector<1x192xf32> to vector<1x64xf32>
    %219 = arith.mulf %218, %215 : vector<1x64xf32>
    %220 = arith.addf %217, %219 : vector<1x64xf32>
    %221 = vector.extract_strided_slice %213 {offsets = [0, 128], sizes = [1, 64], strides = [1, 1]} : vector<1x192xf32> to vector<1x64xf32>
    %222 = math.tanh %220 : vector<1x64xf32>
    %223 = arith.mulf %221, %222 : vector<1x64xf32>
    %224 = vector.extract_strided_slice %223 {offsets = [0, 0], sizes = [1, 32], strides = [1, 1]} : vector<1x64xf32> to vector<1x32xf32>
    %c7_48 = arith.constant 7 : index
    %c0_49 = arith.constant 0 : index
    %225 = vector.load %arg10[%c7_48, %c0_49] : memref<8x64xf32, #tpu.memory_space<vmem>>, vector<1x32xf32>
    tpu.vector_store %arg10[%c7_48, %c0_49], %224 {strides = array<i32>} : memref<8x64xf32, #tpu.memory_space<vmem>>, vector<1x32xf32>,
    %226 = vector.extract_strided_slice %223 {offsets = [0, 32], sizes = [1, 32], strides = [1, 1]} : vector<1x64xf32> to vector<1x32xf32>
    %c0_50 = arith.constant 0 : index
    %c32_51 = arith.constant 32 : index
    %227 = vector.load %arg10[%c0_50, %c32_51] : memref<8x64xf32, #tpu.memory_space<vmem>>, vector<1x32xf32>
    tpu.vector_store %arg10[%c0_50, %c32_51], %226 {strides = array<i32>} : memref<8x64xf32, #tpu.memory_space<vmem>>, vector<1x32xf32>,
    %c0_52 = arith.constant 0 : index
    %c0_53 = arith.constant 0 : index
    %228 = vector.load %arg10[%c0_52, %c0_53] : memref<8x64xf32, #tpu.memory_space<vmem>>, vector<8x64xf32>
    %c0_54 = arith.constant 0 : index
    %c0_55 = arith.constant 0 : index
    %229 = vector.load %arg4[%c0_54, %c0_55] : memref<64x256xf32, #tpu.memory_space<vmem>>, vector<64x256xf32>
    %cst_56 = arith.constant dense<0.000000e+00> : vector<8x256xf32>
    %230 = tpu.matmul %228, %229, %cst_56 {dimension_numbers = #tpu.dot_dimension_numbers<[1], [0], [0], [1], [0, 0, 1, 1], [], []>} : vector<8x64xf32>, vector<64x256xf32>, vector<8x256xf32> -> vector<8x256xf32>
    %c0_57 = arith.constant 0 : index
    %c0_58 = arith.constant 0 : index
    %231 = vector.load %arg6[%c0_57, %c0_58] : memref<1x256xf32, #tpu.memory_space<vmem>>, vector<1x256xf32>
    %232 = vector.broadcast %231 : vector<1x256xf32> to vector<8x256xf32>
    %233 = arith.addf %230, %232 : vector<8x256xf32>
    %c0_59 = arith.constant 0 : index
    %c0_60 = arith.constant 0 : index
    %234 = vector.load %arg5[%c0_59, %c0_60] : memref<64x256xf32, #tpu.memory_space<vmem>>, vector<64x256xf32>
    %cst_61 = arith.constant 0.000000e+00 : f32
    %235 = vector.broadcast %cst_61 : f32 to vector<1x64xf32>
    %cst_62 = arith.constant 0.000000e+00 : f32
    %236 = vector.broadcast %cst_62 : f32 to vector<1x64xf32>
    %237 = vector.extract_strided_slice %233 {offsets = [7, 0], sizes = [1, 256], strides = [1, 1]} : vector<8x256xf32> to vector<1x256xf32>
    %238 = vector.extract_strided_slice %233 {offsets = [0, 0], sizes = [1, 256], strides = [1, 1]} : vector<8x256xf32> to vector<1x256xf32>
    %239 = arith.select %18, %237, %238 : vector<1x256xi1>, vector<1x256xf32>
    %cst_63 = arith.constant dense<0.000000e+00> : vector<1x256xf32>
    %240 = tpu.matmul %235, %234, %cst_63 {dimension_numbers = #tpu.dot_dimension_numbers<[1], [0], [0], [1], [0, 0, 1, 1], [], []>} : vector<1x64xf32>, vector<64x256xf32>, vector<1x256xf32> -> vector<1x256xf32>
    %241 = arith.addf %239, %240 : vector<1x256xf32>
    %242 = vector.extract_strided_slice %241 {offsets = [0, 0], sizes = [1, 192], strides = [1, 1]} : vector<1x256xf32> to vector<1x192xf32>
    %243 = arith.negf %242 : vector<1x192xf32>
    %244 = math.exp %243 : vector<1x192xf32>
    %cst_64 = arith.constant 1.000000e+00 : f32
    %245 = vector.broadcast %cst_64 : f32 to vector<1x192xf32>
    %246 = arith.addf %245, %244 : vector<1x192xf32>
    %247 = arith.divf %245, %246 : vector<1x192xf32>
    %248 = vector.extract_strided_slice %241 {offsets = [0, 192], sizes = [1, 64], strides = [1, 1]} : vector<1x256xf32> to vector<1x64xf32>
    %249 = math.tanh %248 : vector<1x64xf32>
    %250 = vector.extract_strided_slice %247 {offsets = [0, 64], sizes = [1, 64], strides = [1, 1]} : vector<1x192xf32> to vector<1x64xf32>
    %251 = arith.mulf %250, %236 : vector<1x64xf32>
    %252 = vector.extract_strided_slice %247 {offsets = [0, 0], sizes = [1, 64], strides = [1, 1]} : vector<1x192xf32> to vector<1x64xf32>
    %253 = arith.mulf %252, %249 : vector<1x64xf32>
    %254 = arith.addf %251, %253 : vector<1x64xf32>
    %255 = vector.extract_strided_slice %247 {offsets = [0, 128], sizes = [1, 64], strides = [1, 1]} : vector<1x192xf32> to vector<1x64xf32>
    %256 = math.tanh %254 : vector<1x64xf32>
    %257 = arith.mulf %255, %256 : vector<1x64xf32>
    %258 = vector.extract_strided_slice %257 {offsets = [0, 0], sizes = [1, 32], strides = [1, 1]} : vector<1x64xf32> to vector<1x32xf32>
    %c0_65 = arith.constant 0 : index
    %c0_66 = arith.constant 0 : index
    %259 = vector.load %arg11[%c0_65, %c0_66] : memref<8x64xf32, #tpu.memory_space<vmem>>, vector<1x32xf32>
    tpu.vector_store %arg11[%c0_65, %c0_66], %258 {strides = array<i32>} : memref<8x64xf32, #tpu.memory_space<vmem>>, vector<1x32xf32>,
    %260 = vector.extract_strided_slice %257 {offsets = [0, 32], sizes = [1, 32], strides = [1, 1]} : vector<1x64xf32> to vector<1x32xf32>
    %c7_67 = arith.constant 7 : index
    %c32_68 = arith.constant 32 : index
    %261 = vector.load %arg11[%c7_67, %c32_68] : memref<8x64xf32, #tpu.memory_space<vmem>>, vector<1x32xf32>
    tpu.vector_store %arg11[%c7_67, %c32_68], %260 {strides = array<i32>} : memref<8x64xf32, #tpu.memory_space<vmem>>, vector<1x32xf32>,
    %262 = vector.extract_strided_slice %233 {offsets = [6, 0], sizes = [1, 256], strides = [1, 1]} : vector<8x256xf32> to vector<1x256xf32>
    %263 = vector.extract_strided_slice %233 {offsets = [1, 0], sizes = [1, 256], strides = [1, 1]} : vector<8x256xf32> to vector<1x256xf32>
    %264 = arith.select %18, %262, %263 : vector<1x256xi1>, vector<1x256xf32>
    %cst_69 = arith.constant dense<0.000000e+00> : vector<1x256xf32>
    %265 = tpu.matmul %257, %234, %cst_69 {dimension_numbers = #tpu.dot_dimension_numbers<[1], [0], [0], [1], [0, 0, 1, 1], [], []>} : vector<1x64xf32>, vector<64x256xf32>, vector<1x256xf32> -> vector<1x256xf32>
    %266 = arith.addf %264, %265 : vector<1x256xf32>
    %267 = vector.extract_strided_slice %266 {offsets = [0, 0], sizes = [1, 192], strides = [1, 1]} : vector<1x256xf32> to vector<1x192xf32>
    %268 = arith.negf %267 : vector<1x192xf32>
    %269 = math.exp %268 : vector<1x192xf32>
    %cst_70 = arith.constant 1.000000e+00 : f32
    %270 = vector.broadcast %cst_70 : f32 to vector<1x192xf32>
    %271 = arith.addf %270, %269 : vector<1x192xf32>
    %272 = arith.divf %270, %271 : vector<1x192xf32>
    %273 = vector.extract_strided_slice %266 {offsets = [0, 192], sizes = [1, 64], strides = [1, 1]} : vector<1x256xf32> to vector<1x64xf32>
    %274 = math.tanh %273 : vector<1x64xf32>
    %275 = vector.extract_strided_slice %272 {offsets = [0, 64], sizes = [1, 64], strides = [1, 1]} : vector<1x192xf32> to vector<1x64xf32>
    %276 = arith.mulf %275, %254 : vector<1x64xf32>
    %277 = vector.extract_strided_slice %272 {offsets = [0, 0], sizes = [1, 64], strides = [1, 1]} : vector<1x192xf32> to vector<1x64xf32>
    %278 = arith.mulf %277, %274 : vector<1x64xf32>
    %279 = arith.addf %276, %278 : vector<1x64xf32>
    %280 = vector.extract_strided_slice %272 {offsets = [0, 128], sizes = [1, 64], strides = [1, 1]} : vector<1x192xf32> to vector<1x64xf32>
    %281 = math.tanh %279 : vector<1x64xf32>
    %282 = arith.mulf %280, %281 : vector<1x64xf32>
    %283 = vector.extract_strided_slice %282 {offsets = [0, 0], sizes = [1, 32], strides = [1, 1]} : vector<1x64xf32> to vector<1x32xf32>
    %c1_71 = arith.constant 1 : index
    %c0_72 = arith.constant 0 : index
    %284 = vector.load %arg11[%c1_71, %c0_72] : memref<8x64xf32, #tpu.memory_space<vmem>>, vector<1x32xf32>
    tpu.vector_store %arg11[%c1_71, %c0_72], %283 {strides = array<i32>} : memref<8x64xf32, #tpu.memory_space<vmem>>, vector<1x32xf32>,
    %285 = vector.extract_strided_slice %282 {offsets = [0, 32], sizes = [1, 32], strides = [1, 1]} : vector<1x64xf32> to vector<1x32xf32>
    %c6_73 = arith.constant 6 : index
    %c32_74 = arith.constant 32 : index
    %286 = vector.load %arg11[%c6_73, %c32_74] : memref<8x64xf32, #tpu.memory_space<vmem>>, vector<1x32xf32>
    tpu.vector_store %arg11[%c6_73, %c32_74], %285 {strides = array<i32>} : memref<8x64xf32, #tpu.memory_space<vmem>>, vector<1x32xf32>,
    %287 = vector.extract_strided_slice %233 {offsets = [5, 0], sizes = [1, 256], strides = [1, 1]} : vector<8x256xf32> to vector<1x256xf32>
    %288 = vector.extract_strided_slice %233 {offsets = [2, 0], sizes = [1, 256], strides = [1, 1]} : vector<8x256xf32> to vector<1x256xf32>
    %289 = arith.select %18, %287, %288 : vector<1x256xi1>, vector<1x256xf32>
    %cst_75 = arith.constant dense<0.000000e+00> : vector<1x256xf32>
    %290 = tpu.matmul %282, %234, %cst_75 {dimension_numbers = #tpu.dot_dimension_numbers<[1], [0], [0], [1], [0, 0, 1, 1], [], []>} : vector<1x64xf32>, vector<64x256xf32>, vector<1x256xf32> -> vector<1x256xf32>
    %291 = arith.addf %289, %290 : vector<1x256xf32>
    %292 = vector.extract_strided_slice %291 {offsets = [0, 0], sizes = [1, 192], strides = [1, 1]} : vector<1x256xf32> to vector<1x192xf32>
    %293 = arith.negf %292 : vector<1x192xf32>
    %294 = math.exp %293 : vector<1x192xf32>
    %cst_76 = arith.constant 1.000000e+00 : f32
    %295 = vector.broadcast %cst_76 : f32 to vector<1x192xf32>
    %296 = arith.addf %295, %294 : vector<1x192xf32>
    %297 = arith.divf %295, %296 : vector<1x192xf32>
    %298 = vector.extract_strided_slice %291 {offsets = [0, 192], sizes = [1, 64], strides = [1, 1]} : vector<1x256xf32> to vector<1x64xf32>
    %299 = math.tanh %298 : vector<1x64xf32>
    %300 = vector.extract_strided_slice %297 {offsets = [0, 64], sizes = [1, 64], strides = [1, 1]} : vector<1x192xf32> to vector<1x64xf32>
    %301 = arith.mulf %300, %279 : vector<1x64xf32>
    %302 = vector.extract_strided_slice %297 {offsets = [0, 0], sizes = [1, 64], strides = [1, 1]} : vector<1x192xf32> to vector<1x64xf32>
    %303 = arith.mulf %302, %299 : vector<1x64xf32>
    %304 = arith.addf %301, %303 : vector<1x64xf32>
    %305 = vector.extract_strided_slice %297 {offsets = [0, 128], sizes = [1, 64], strides = [1, 1]} : vector<1x192xf32> to vector<1x64xf32>
    %306 = math.tanh %304 : vector<1x64xf32>
    %307 = arith.mulf %305, %306 : vector<1x64xf32>
    %308 = vector.extract_strided_slice %307 {offsets = [0, 0], sizes = [1, 32], strides = [1, 1]} : vector<1x64xf32> to vector<1x32xf32>
    %c2_77 = arith.constant 2 : index
    %c0_78 = arith.constant 0 : index
    %309 = vector.load %arg11[%c2_77, %c0_78] : memref<8x64xf32, #tpu.memory_space<vmem>>, vector<1x32xf32>
    tpu.vector_store %arg11[%c2_77, %c0_78], %308 {strides = array<i32>} : memref<8x64xf32, #tpu.memory_space<vmem>>, vector<1x32xf32>,
    %310 = vector.extract_strided_slice %307 {offsets = [0, 32], sizes = [1, 32], strides = [1, 1]} : vector<1x64xf32> to vector<1x32xf32>
    %c5_79 = arith.constant 5 : index
    %c32_80 = arith.constant 32 : index
    %311 = vector.load %arg11[%c5_79, %c32_80] : memref<8x64xf32, #tpu.memory_space<vmem>>, vector<1x32xf32>
    tpu.vector_store %arg11[%c5_79, %c32_80], %310 {strides = array<i32>} : memref<8x64xf32, #tpu.memory_space<vmem>>, vector<1x32xf32>,
    %312 = vector.extract_strided_slice %233 {offsets = [4, 0], sizes = [1, 256], strides = [1, 1]} : vector<8x256xf32> to vector<1x256xf32>
    %313 = vector.extract_strided_slice %233 {offsets = [3, 0], sizes = [1, 256], strides = [1, 1]} : vector<8x256xf32> to vector<1x256xf32>
    %314 = arith.select %18, %312, %313 : vector<1x256xi1>, vector<1x256xf32>
    %cst_81 = arith.constant dense<0.000000e+00> : vector<1x256xf32>
    %315 = tpu.matmul %307, %234, %cst_81 {dimension_numbers = #tpu.dot_dimension_numbers<[1], [0], [0], [1], [0, 0, 1, 1], [], []>} : vector<1x64xf32>, vector<64x256xf32>, vector<1x256xf32> -> vector<1x256xf32>
    %316 = arith.addf %314, %315 : vector<1x256xf32>
    %317 = vector.extract_strided_slice %316 {offsets = [0, 0], sizes = [1, 192], strides = [1, 1]} : vector<1x256xf32> to vector<1x192xf32>
    %318 = arith.negf %317 : vector<1x192xf32>
    %319 = math.exp %318 : vector<1x192xf32>
    %cst_82 = arith.constant 1.000000e+00 : f32
    %320 = vector.broadcast %cst_82 : f32 to vector<1x192xf32>
    %321 = arith.addf %320, %319 : vector<1x192xf32>
    %322 = arith.divf %320, %321 : vector<1x192xf32>
    %323 = vector.extract_strided_slice %316 {offsets = [0, 192], sizes = [1, 64], strides = [1, 1]} : vector<1x256xf32> to vector<1x64xf32>
    %324 = math.tanh %323 : vector<1x64xf32>
    %325 = vector.extract_strided_slice %322 {offsets = [0, 64], sizes = [1, 64], strides = [1, 1]} : vector<1x192xf32> to vector<1x64xf32>
    %326 = arith.mulf %325, %304 : vector<1x64xf32>
    %327 = vector.extract_strided_slice %322 {offsets = [0, 0], sizes = [1, 64], strides = [1, 1]} : vector<1x192xf32> to vector<1x64xf32>
    %328 = arith.mulf %327, %324 : vector<1x64xf32>
    %329 = arith.addf %326, %328 : vector<1x64xf32>
    %330 = vector.extract_strided_slice %322 {offsets = [0, 128], sizes = [1, 64], strides = [1, 1]} : vector<1x192xf32> to vector<1x64xf32>
    %331 = math.tanh %329 : vector<1x64xf32>
    %332 = arith.mulf %330, %331 : vector<1x64xf32>
    %333 = vector.extract_strided_slice %332 {offsets = [0, 0], sizes = [1, 32], strides = [1, 1]} : vector<1x64xf32> to vector<1x32xf32>
    %c3_83 = arith.constant 3 : index
    %c0_84 = arith.constant 0 : index
    %334 = vector.load %arg11[%c3_83, %c0_84] : memref<8x64xf32, #tpu.memory_space<vmem>>, vector<1x32xf32>
    tpu.vector_store %arg11[%c3_83, %c0_84], %333 {strides = array<i32>} : memref<8x64xf32, #tpu.memory_space<vmem>>, vector<1x32xf32>,
    %335 = vector.extract_strided_slice %332 {offsets = [0, 32], sizes = [1, 32], strides = [1, 1]} : vector<1x64xf32> to vector<1x32xf32>
    %c4_85 = arith.constant 4 : index
    %c32_86 = arith.constant 32 : index
    %336 = vector.load %arg11[%c4_85, %c32_86] : memref<8x64xf32, #tpu.memory_space<vmem>>, vector<1x32xf32>
    tpu.vector_store %arg11[%c4_85, %c32_86], %335 {strides = array<i32>} : memref<8x64xf32, #tpu.memory_space<vmem>>, vector<1x32xf32>,
    %337 = vector.extract_strided_slice %233 {offsets = [3, 0], sizes = [1, 256], strides = [1, 1]} : vector<8x256xf32> to vector<1x256xf32>
    %338 = vector.extract_strided_slice %233 {offsets = [4, 0], sizes = [1, 256], strides = [1, 1]} : vector<8x256xf32> to vector<1x256xf32>
    %339 = arith.select %18, %337, %338 : vector<1x256xi1>, vector<1x256xf32>
    %cst_87 = arith.constant dense<0.000000e+00> : vector<1x256xf32>
    %340 = tpu.matmul %332, %234, %cst_87 {dimension_numbers = #tpu.dot_dimension_numbers<[1], [0], [0], [1], [0, 0, 1, 1], [], []>} : vector<1x64xf32>, vector<64x256xf32>, vector<1x256xf32> -> vector<1x256xf32>
    %341 = arith.addf %339, %340 : vector<1x256xf32>
    %342 = vector.extract_strided_slice %341 {offsets = [0, 0], sizes = [1, 192], strides = [1, 1]} : vector<1x256xf32> to vector<1x192xf32>
    %343 = arith.negf %342 : vector<1x192xf32>
    %344 = math.exp %343 : vector<1x192xf32>
    %cst_88 = arith.constant 1.000000e+00 : f32
    %345 = vector.broadcast %cst_88 : f32 to vector<1x192xf32>
    %346 = arith.addf %345, %344 : vector<1x192xf32>
    %347 = arith.divf %345, %346 : vector<1x192xf32>
    %348 = vector.extract_strided_slice %341 {offsets = [0, 192], sizes = [1, 64], strides = [1, 1]} : vector<1x256xf32> to vector<1x64xf32>
    %349 = math.tanh %348 : vector<1x64xf32>
    %350 = vector.extract_strided_slice %347 {offsets = [0, 64], sizes = [1, 64], strides = [1, 1]} : vector<1x192xf32> to vector<1x64xf32>
    %351 = arith.mulf %350, %329 : vector<1x64xf32>
    %352 = vector.extract_strided_slice %347 {offsets = [0, 0], sizes = [1, 64], strides = [1, 1]} : vector<1x192xf32> to vector<1x64xf32>
    %353 = arith.mulf %352, %349 : vector<1x64xf32>
    %354 = arith.addf %351, %353 : vector<1x64xf32>
    %355 = vector.extract_strided_slice %347 {offsets = [0, 128], sizes = [1, 64], strides = [1, 1]} : vector<1x192xf32> to vector<1x64xf32>
    %356 = math.tanh %354 : vector<1x64xf32>
    %357 = arith.mulf %355, %356 : vector<1x64xf32>
    %358 = vector.extract_strided_slice %357 {offsets = [0, 0], sizes = [1, 32], strides = [1, 1]} : vector<1x64xf32> to vector<1x32xf32>
    %c4_89 = arith.constant 4 : index
    %c0_90 = arith.constant 0 : index
    %359 = vector.load %arg11[%c4_89, %c0_90] : memref<8x64xf32, #tpu.memory_space<vmem>>, vector<1x32xf32>
    tpu.vector_store %arg11[%c4_89, %c0_90], %358 {strides = array<i32>} : memref<8x64xf32, #tpu.memory_space<vmem>>, vector<1x32xf32>,
    %360 = vector.extract_strided_slice %357 {offsets = [0, 32], sizes = [1, 32], strides = [1, 1]} : vector<1x64xf32> to vector<1x32xf32>
    %c3_91 = arith.constant 3 : index
    %c32_92 = arith.constant 32 : index
    %361 = vector.load %arg11[%c3_91, %c32_92] : memref<8x64xf32, #tpu.memory_space<vmem>>, vector<1x32xf32>
    tpu.vector_store %arg11[%c3_91, %c32_92], %360 {strides = array<i32>} : memref<8x64xf32, #tpu.memory_space<vmem>>, vector<1x32xf32>,
    %362 = vector.extract_strided_slice %233 {offsets = [2, 0], sizes = [1, 256], strides = [1, 1]} : vector<8x256xf32> to vector<1x256xf32>
    %363 = vector.extract_strided_slice %233 {offsets = [5, 0], sizes = [1, 256], strides = [1, 1]} : vector<8x256xf32> to vector<1x256xf32>
    %364 = arith.select %18, %362, %363 : vector<1x256xi1>, vector<1x256xf32>
    %cst_93 = arith.constant dense<0.000000e+00> : vector<1x256xf32>
    %365 = tpu.matmul %357, %234, %cst_93 {dimension_numbers = #tpu.dot_dimension_numbers<[1], [0], [0], [1], [0, 0, 1, 1], [], []>} : vector<1x64xf32>, vector<64x256xf32>, vector<1x256xf32> -> vector<1x256xf32>
    %366 = arith.addf %364, %365 : vector<1x256xf32>
    %367 = vector.extract_strided_slice %366 {offsets = [0, 0], sizes = [1, 192], strides = [1, 1]} : vector<1x256xf32> to vector<1x192xf32>
    %368 = arith.negf %367 : vector<1x192xf32>
    %369 = math.exp %368 : vector<1x192xf32>
    %cst_94 = arith.constant 1.000000e+00 : f32
    %370 = vector.broadcast %cst_94 : f32 to vector<1x192xf32>
    %371 = arith.addf %370, %369 : vector<1x192xf32>
    %372 = arith.divf %370, %371 : vector<1x192xf32>
    %373 = vector.extract_strided_slice %366 {offsets = [0, 192], sizes = [1, 64], strides = [1, 1]} : vector<1x256xf32> to vector<1x64xf32>
    %374 = math.tanh %373 : vector<1x64xf32>
    %375 = vector.extract_strided_slice %372 {offsets = [0, 64], sizes = [1, 64], strides = [1, 1]} : vector<1x192xf32> to vector<1x64xf32>
    %376 = arith.mulf %375, %354 : vector<1x64xf32>
    %377 = vector.extract_strided_slice %372 {offsets = [0, 0], sizes = [1, 64], strides = [1, 1]} : vector<1x192xf32> to vector<1x64xf32>
    %378 = arith.mulf %377, %374 : vector<1x64xf32>
    %379 = arith.addf %376, %378 : vector<1x64xf32>
    %380 = vector.extract_strided_slice %372 {offsets = [0, 128], sizes = [1, 64], strides = [1, 1]} : vector<1x192xf32> to vector<1x64xf32>
    %381 = math.tanh %379 : vector<1x64xf32>
    %382 = arith.mulf %380, %381 : vector<1x64xf32>
    %383 = vector.extract_strided_slice %382 {offsets = [0, 0], sizes = [1, 32], strides = [1, 1]} : vector<1x64xf32> to vector<1x32xf32>
    %c5_95 = arith.constant 5 : index
    %c0_96 = arith.constant 0 : index
    %384 = vector.load %arg11[%c5_95, %c0_96] : memref<8x64xf32, #tpu.memory_space<vmem>>, vector<1x32xf32>
    tpu.vector_store %arg11[%c5_95, %c0_96], %383 {strides = array<i32>} : memref<8x64xf32, #tpu.memory_space<vmem>>, vector<1x32xf32>,
    %385 = vector.extract_strided_slice %382 {offsets = [0, 32], sizes = [1, 32], strides = [1, 1]} : vector<1x64xf32> to vector<1x32xf32>
    %c2_97 = arith.constant 2 : index
    %c32_98 = arith.constant 32 : index
    %386 = vector.load %arg11[%c2_97, %c32_98] : memref<8x64xf32, #tpu.memory_space<vmem>>, vector<1x32xf32>
    tpu.vector_store %arg11[%c2_97, %c32_98], %385 {strides = array<i32>} : memref<8x64xf32, #tpu.memory_space<vmem>>, vector<1x32xf32>,
    %387 = vector.extract_strided_slice %233 {offsets = [1, 0], sizes = [1, 256], strides = [1, 1]} : vector<8x256xf32> to vector<1x256xf32>
    %388 = vector.extract_strided_slice %233 {offsets = [6, 0], sizes = [1, 256], strides = [1, 1]} : vector<8x256xf32> to vector<1x256xf32>
    %389 = arith.select %18, %387, %388 : vector<1x256xi1>, vector<1x256xf32>
    %cst_99 = arith.constant dense<0.000000e+00> : vector<1x256xf32>
    %390 = tpu.matmul %382, %234, %cst_99 {dimension_numbers = #tpu.dot_dimension_numbers<[1], [0], [0], [1], [0, 0, 1, 1], [], []>} : vector<1x64xf32>, vector<64x256xf32>, vector<1x256xf32> -> vector<1x256xf32>
    %391 = arith.addf %389, %390 : vector<1x256xf32>
    %392 = vector.extract_strided_slice %391 {offsets = [0, 0], sizes = [1, 192], strides = [1, 1]} : vector<1x256xf32> to vector<1x192xf32>
    %393 = arith.negf %392 : vector<1x192xf32>
    %394 = math.exp %393 : vector<1x192xf32>
    %cst_100 = arith.constant 1.000000e+00 : f32
    %395 = vector.broadcast %cst_100 : f32 to vector<1x192xf32>
    %396 = arith.addf %395, %394 : vector<1x192xf32>
    %397 = arith.divf %395, %396 : vector<1x192xf32>
    %398 = vector.extract_strided_slice %391 {offsets = [0, 192], sizes = [1, 64], strides = [1, 1]} : vector<1x256xf32> to vector<1x64xf32>
    %399 = math.tanh %398 : vector<1x64xf32>
    %400 = vector.extract_strided_slice %397 {offsets = [0, 64], sizes = [1, 64], strides = [1, 1]} : vector<1x192xf32> to vector<1x64xf32>
    %401 = arith.mulf %400, %379 : vector<1x64xf32>
    %402 = vector.extract_strided_slice %397 {offsets = [0, 0], sizes = [1, 64], strides = [1, 1]} : vector<1x192xf32> to vector<1x64xf32>
    %403 = arith.mulf %402, %399 : vector<1x64xf32>
    %404 = arith.addf %401, %403 : vector<1x64xf32>
    %405 = vector.extract_strided_slice %397 {offsets = [0, 128], sizes = [1, 64], strides = [1, 1]} : vector<1x192xf32> to vector<1x64xf32>
    %406 = math.tanh %404 : vector<1x64xf32>
    %407 = arith.mulf %405, %406 : vector<1x64xf32>
    %408 = vector.extract_strided_slice %407 {offsets = [0, 0], sizes = [1, 32], strides = [1, 1]} : vector<1x64xf32> to vector<1x32xf32>
    %c6_101 = arith.constant 6 : index
    %c0_102 = arith.constant 0 : index
    %409 = vector.load %arg11[%c6_101, %c0_102] : memref<8x64xf32, #tpu.memory_space<vmem>>, vector<1x32xf32>
    tpu.vector_store %arg11[%c6_101, %c0_102], %408 {strides = array<i32>} : memref<8x64xf32, #tpu.memory_space<vmem>>, vector<1x32xf32>,
    %410 = vector.extract_strided_slice %407 {offsets = [0, 32], sizes = [1, 32], strides = [1, 1]} : vector<1x64xf32> to vector<1x32xf32>
    %c1_103 = arith.constant 1 : index
    %c32_104 = arith.constant 32 : index
    %411 = vector.load %arg11[%c1_103, %c32_104] : memref<8x64xf32, #tpu.memory_space<vmem>>, vector<1x32xf32>
    tpu.vector_store %arg11[%c1_103, %c32_104], %410 {strides = array<i32>} : memref<8x64xf32, #tpu.memory_space<vmem>>, vector<1x32xf32>,
    %412 = vector.extract_strided_slice %233 {offsets = [0, 0], sizes = [1, 256], strides = [1, 1]} : vector<8x256xf32> to vector<1x256xf32>
    %413 = vector.extract_strided_slice %233 {offsets = [7, 0], sizes = [1, 256], strides = [1, 1]} : vector<8x256xf32> to vector<1x256xf32>
    %414 = arith.select %18, %412, %413 : vector<1x256xi1>, vector<1x256xf32>
    %cst_105 = arith.constant dense<0.000000e+00> : vector<1x256xf32>
    %415 = tpu.matmul %407, %234, %cst_105 {dimension_numbers = #tpu.dot_dimension_numbers<[1], [0], [0], [1], [0, 0, 1, 1], [], []>} : vector<1x64xf32>, vector<64x256xf32>, vector<1x256xf32> -> vector<1x256xf32>
    %416 = arith.addf %414, %415 : vector<1x256xf32>
    %417 = vector.extract_strided_slice %416 {offsets = [0, 0], sizes = [1, 192], strides = [1, 1]} : vector<1x256xf32> to vector<1x192xf32>
    %418 = arith.negf %417 : vector<1x192xf32>
    %419 = math.exp %418 : vector<1x192xf32>
    %cst_106 = arith.constant 1.000000e+00 : f32
    %420 = vector.broadcast %cst_106 : f32 to vector<1x192xf32>
    %421 = arith.addf %420, %419 : vector<1x192xf32>
    %422 = arith.divf %420, %421 : vector<1x192xf32>
    %423 = vector.extract_strided_slice %416 {offsets = [0, 192], sizes = [1, 64], strides = [1, 1]} : vector<1x256xf32> to vector<1x64xf32>
    %424 = math.tanh %423 : vector<1x64xf32>
    %425 = vector.extract_strided_slice %422 {offsets = [0, 64], sizes = [1, 64], strides = [1, 1]} : vector<1x192xf32> to vector<1x64xf32>
    %426 = arith.mulf %425, %404 : vector<1x64xf32>
    %427 = vector.extract_strided_slice %422 {offsets = [0, 0], sizes = [1, 64], strides = [1, 1]} : vector<1x192xf32> to vector<1x64xf32>
    %428 = arith.mulf %427, %424 : vector<1x64xf32>
    %429 = arith.addf %426, %428 : vector<1x64xf32>
    %430 = vector.extract_strided_slice %422 {offsets = [0, 128], sizes = [1, 64], strides = [1, 1]} : vector<1x192xf32> to vector<1x64xf32>
    %431 = math.tanh %429 : vector<1x64xf32>
    %432 = arith.mulf %430, %431 : vector<1x64xf32>
    %433 = vector.extract_strided_slice %432 {offsets = [0, 0], sizes = [1, 32], strides = [1, 1]} : vector<1x64xf32> to vector<1x32xf32>
    %c7_107 = arith.constant 7 : index
    %c0_108 = arith.constant 0 : index
    %434 = vector.load %arg11[%c7_107, %c0_108] : memref<8x64xf32, #tpu.memory_space<vmem>>, vector<1x32xf32>
    tpu.vector_store %arg11[%c7_107, %c0_108], %433 {strides = array<i32>} : memref<8x64xf32, #tpu.memory_space<vmem>>, vector<1x32xf32>,
    %435 = vector.extract_strided_slice %432 {offsets = [0, 32], sizes = [1, 32], strides = [1, 1]} : vector<1x64xf32> to vector<1x32xf32>
    %c0_109 = arith.constant 0 : index
    %c32_110 = arith.constant 32 : index
    %436 = vector.load %arg11[%c0_109, %c32_110] : memref<8x64xf32, #tpu.memory_space<vmem>>, vector<1x32xf32>
    tpu.vector_store %arg11[%c0_109, %c32_110], %435 {strides = array<i32>} : memref<8x64xf32, #tpu.memory_space<vmem>>, vector<1x32xf32>,
    %c0_111 = arith.constant 0 : index
    %c0_112 = arith.constant 0 : index
    %437 = vector.load %arg11[%c0_111, %c0_112] : memref<8x64xf32, #tpu.memory_space<vmem>>, vector<8x64xf32>
    %c0_113 = arith.constant 0 : index
    %c0_114 = arith.constant 0 : index
    %438 = vector.load %arg7[%c0_113, %c0_114] : memref<64x8xf32, #tpu.memory_space<vmem>>, vector<64x8xf32>
    %cst_115 = arith.constant dense<0.000000e+00> : vector<8x8xf32>
    %439 = tpu.matmul %437, %438, %cst_115 {dimension_numbers = #tpu.dot_dimension_numbers<[1], [0], [0], [1], [0, 0, 1, 1], [], []>} : vector<8x64xf32>, vector<64x8xf32>, vector<8x8xf32> -> vector<8x8xf32>
    %c0_116 = arith.constant 0 : index
    %c0_117 = arith.constant 0 : index
    %440 = vector.load %arg8[%c0_116, %c0_117] : memref<1x8xf32, #tpu.memory_space<vmem>>, vector<1x8xf32>
    %441 = vector.broadcast %440 : vector<1x8xf32> to vector<8x8xf32>
    %442 = arith.addf %439, %441 : vector<8x8xf32>
    %c0_118 = arith.constant 0 : index
    %c0_119 = arith.constant 0 : index
    %443 = vector.load %arg9[%c0_118, %c0_119] : memref<8x8xf32, #tpu.memory_space<vmem>>, vector<8x8xf32>
    tpu.vector_store %arg9[%c0_118, %c0_119], %442 {strides = array<i32>} : memref<8x8xf32, #tpu.memory_space<vmem>>, vector<8x8xf32>,
    return
  }
}

</mosaic_0001>

<llo_original>
// kernel: tpu_custom_call.1
$region0: #{tpu_custom_call.1}
  #allocation0 [shape = 'u32[]', space=smem, size = 0x4, offset = 0x4, fixed_abs, tag = 'smem constant byte address 0x4 - core index']
  #allocation1 [shape = 'u32[144,128]{1,0:T(1,128)}', space=vmem, size = 0x12000, scoped, tag = 'internal scratch']
  #allocation2 [shape = 'f32[8,64]{1,0:T(8,128)}', space=vmem, size = 0x1000, scoped, tag = 'scratch operand']
  #allocation3 [shape = 'f32[8,64]{1,0:T(8,128)}', space=vmem, size = 0x1000, scoped, tag = 'scratch operand']
  %s0 = inlined_call_operand.vmem [shape: f32[8,16], index: 0, kind: input, shape index: {}]
  %s1 = inlined_call_operand.vmem [shape: f32[16,256], index: 1, kind: input, shape index: {}]
  %s2 = inlined_call_operand.hbm [shape: f32[64,256], index: 2, kind: input, shape index: {}]
  %s3 = inlined_call_operand.vmem [shape: f32[1,256], index: 3, kind: input, shape index: {}]
  %s4 = inlined_call_operand.hbm [shape: f32[64,256], index: 4, kind: input, shape index: {}]
  %s5 = inlined_call_operand.hbm [shape: f32[64,256], index: 5, kind: input, shape index: {}]
  %s6 = inlined_call_operand.vmem [shape: f32[1,256], index: 6, kind: input, shape index: {}]
  %s7 = inlined_call_operand.vmem [shape: f32[64,8], index: 7, kind: input, shape index: {}]
  %s8 = inlined_call_operand.vmem [shape: f32[1,8], index: 8, kind: input, shape index: {}]
  %s9 = inlined_call_operand.hbm [shape: f32[8,8], index: 9, kind: output, shape index: {}]
  %s10 = sld [smem:[#allocation0]]
  $region58: #{tpu_custom_call.1} parent=0
    _
  %s12 = ssub.s32 1, %s10
  %s13 = scalar_select 0, %s12, %s10
  $region1: #{tpu_custom_call.1} parent=0
    #allocation4 [shape = 'u8[65536]{0}', space=vmem, size = 0x10000, scoped, tag = 'input window, operand 2, single buffered']
    #allocation5 [shape = 's32[1]{0}', space=sflag, size = 0x4, scoped, tag = 'scoped memory for tpu_custom_call.1']
    #allocation6 [shape = 's32[1]{0}', space=sflag, size = 0x4, scoped, tag = 'scoped memory for tpu_custom_call.1']
    #allocation7 [shape = 'u8[65536]{0}', space=vmem, size = 0x10000, scoped, tag = 'input window, operand 4, single buffered']
    #allocation8 [shape = 's32[1]{0}', space=sflag, size = 0x4, scoped, tag = 'scoped memory for tpu_custom_call.1']
    #allocation9 [shape = 'u8[65536]{0}', space=vmem, size = 0x10000, scoped, tag = 'input window, operand 5, single buffered']
    #allocation10 [shape = 'u8[4096]{0}', space=vmem, size = 0x1000, scoped, tag = 'output window, operand 0, single buffered']
    %14 = vsyncpa [#allocation5], 0
    %15 = vsyncpa [#allocation8], 0
    %16 = vsyncpa [#allocation6], 0
    // Predicated region
    $region2: #{tpu_custom_call.1} parent=1 // pred_check
      _
    $region3: #{tpu_custom_call.1} parent=1 // pred_check_branch
      %18 = sbr.rel (0) target = $region5
    $region4: #{tpu_custom_call.1} parent=1 // pred_region
      _
    $region5: #{tpu_custom_call.1} parent=1 // pred_fallthru
      _
    // Predicated region
    $region6: #{tpu_custom_call.1} parent=1 // pred_check
      _
    $region7: #{tpu_custom_call.1} parent=1 // pred_check_branch
      %20 = sbr.rel (0) target = $region9
    $region8: #{tpu_custom_call.1} parent=1 // pred_region
      _
    $region9: #{tpu_custom_call.1} parent=1 // pred_fallthru
      _
    // Predicated region
    $region10: #{tpu_custom_call.1} parent=1 // pred_check
      _
    $region11: #{tpu_custom_call.1} parent=1 // pred_check_branch
      %22 = sbr.rel (0) target = $region13
    $region12: #{tpu_custom_call.1} parent=1 // pred_region
      %s24 = ssub.s32 2048, 2048
      %25 = vsyncadd [#allocation5], %s24
      %s26 = sshll.u32 [#allocation4], 4
      %s27 = int_to_ptr.vmem [resolvable:$true] %s26
      %32 = dma.hbm_to_vmem [thread:$0]  %s2, 2048, %s27, [#allocation5], 256, 256, 16
    $region13: #{tpu_custom_call.1} parent=1 // pred_fallthru
      _
    // Predicated region
    $region14: #{tpu_custom_call.1} parent=1 // pred_check
      _
    $region15: #{tpu_custom_call.1} parent=1 // pred_check_branch
      %34 = sbr.rel (0) target = $region17
    $region16: #{tpu_custom_call.1} parent=1 // pred_region
      _
    $region17: #{tpu_custom_call.1} parent=1 // pred_fallthru
      _
    // Predicated region
    $region18: #{tpu_custom_call.1} parent=1 // pred_check
      _
    $region19: #{tpu_custom_call.1} parent=1 // pred_check_branch
      %36 = sbr.rel (0) target = $region21
    $region20: #{tpu_custom_call.1} parent=1 // pred_region
      %s38 = ssub.s32 2048, 2048
      %39 = vsyncadd [#allocation8], %s38
      %s40 = sshll.u32 [#allocation7], 4
      %s41 = int_to_ptr.vmem [resolvable:$true] %s40
      %46 = dma.hbm_to_vmem [thread:$0]  %s4, 2048, %s41, [#allocation8], 256, 256, 16
    $region21: #{tpu_custom_call.1} parent=1 // pred_fallthru
      _
    // Predicated region
    $region22: #{tpu_custom_call.1} parent=1 // pred_check
      _
    $region23: #{tpu_custom_call.1} parent=1 // pred_check_branch
      %48 = sbr.rel (0) target = $region25
    $region24: #{tpu_custom_call.1} parent=1 // pred_region
      %s50 = ssub.s32 2048, 2048
      %51 = vsyncadd [#allocation8], %s50
      %s52 = sshll.u32 [#allocation9], 4
      %s53 = int_to_ptr.vmem [resolvable:$true] %s52
      %58 = dma.hbm_to_vmem [thread:$0]  %s5, 2048, %s53, [#allocation8], 256, 256, 16
    $region25: #{tpu_custom_call.1} parent=1 // pred_fallthru
      _
    // Predicated region
    $region26: #{tpu_custom_call.1} parent=1 // pred_check
      _
    $region27: #{tpu_custom_call.1} parent=1 // pred_check_branch
      %60 = sbr.rel (0) target = $region29
    $region28: #{tpu_custom_call.1} parent=1 // pred_region
      _
    $region29: #{tpu_custom_call.1} parent=1 // pred_fallthru
      _
    // Predicated region
    $region30: #{tpu_custom_call.1} parent=1 // pred_check
      _
    $region31: #{tpu_custom_call.1} parent=1 // pred_check_branch
      %62 = sbr.rel (0) target = $region33
    $region32: #{tpu_custom_call.1} parent=1 // pred_region
      _
    $region33: #{tpu_custom_call.1} parent=1 // pred_fallthru
      _
    // Predicated region
    $region34: #{tpu_custom_call.1} parent=1 // pred_check
      _
    $region35: #{tpu_custom_call.1} parent=1 // pred_check_branch
      %64 = sbr.rel (0) target = $region37
    $region36: #{tpu_custom_call.1} parent=1 // pred_region
      _
    $region37: #{tpu_custom_call.1} parent=1 // pred_fallthru
      _
    // Predicated region
    $region38: #{tpu_custom_call.1} parent=1 // pred_check
      _
    $region39: #{tpu_custom_call.1} parent=1 // pred_check_branch
      %66 = sbr.rel (0) target = $region41
    $region40: #{tpu_custom_call.1} parent=1 // pred_region
      %67 = dma.done [#allocation5], 2048
    $region41: #{tpu_custom_call.1} parent=1 // pred_fallthru
      _
    // Predicated region
    $region42: #{tpu_custom_call.1} parent=1 // pred_check
      _
    $region43: #{tpu_custom_call.1} parent=1 // pred_check_branch
      %69 = sbr.rel (0) target = $region45
    $region44: #{tpu_custom_call.1} parent=1 // pred_region
      %70 = dma.done [#allocation8], 2048
    $region45: #{tpu_custom_call.1} parent=1 // pred_fallthru
      _
    // Predicated region
    $region46: #{tpu_custom_call.1} parent=1 // pred_check
      _
    $region47: #{tpu_custom_call.1} parent=1 // pred_check_branch
      %72 = sbr.rel (0) target = $region49
    $region48: #{tpu_custom_call.1} parent=1 // pred_region
      %73 = dma.done [#allocation8], 2048
    $region49: #{tpu_custom_call.1} parent=1 // pred_fallthru
      _
    %v74 = vlaneseq
    %v75 = vand.u32 %v74, 127
    %v76 = vadd.s32 %v75, 128
    %vm77 = vcmp.lt.s32.totalorder %v75, 0
    %v78 = vsub.s32 0, %v75
    %v79 = vsel %vm77, %v78, %v75
    %v80 = vshrl.u32 %v79, 6
    %v81 = vand.u32 %v79, 63
    %v82 = vsub.s32 0, %v81
    %v83 = vsel %vm77, %v82, %v81
    %vm84 = vcmp.lt.s32.totalorder %v76, 0
    %v85 = vsub.s32 0, %v76
    %v86 = vsel %vm84, %v85, %v76
    %v87 = vshrl.u32 %v86, 6
    %v88 = vand.u32 %v86, 63
    %v89 = vsub.s32 0, %v88
    %v90 = vsel %vm84, %v89, %v88
    %vm91 = vcmp.ne.s32.totalorder %v83, 0
    %vm92 = vcmp.ne.s32.totalorder %v90, 0
    %vm93 = vcmp.lt.s32.totalorder %v83, 0
    %vm94 = vcmp.lt.s32.totalorder %v90, 0
    %vm95 = vmand %vm93, %vm91
    %vm96 = vmand %vm94, %vm92
    %v97 = vadd.s32 %v83, 64
    %v98 = vadd.s32 %v90, 64
    %v99 = vsel %vm95, %v97, %v83
    %v100 = vsel %vm96, %v98, %v90
    %vm101 = vcmp.ge.s32.totalorder %v99, 32
    %vm102 = vcmp.ge.s32.totalorder %v100, 32
    %v103 = vld [vmem:[%s0] sm:$0xff]
    %v104 = vld [vmem:[%s1] sm:$0xff]
    %v105 = vld [vmem:[%s1 + $0x8] sm:$0xff]
    %v106 = vld [vmem:[%s1 + $0x10] sm:$0xff]
    %v107 = vld [vmem:[%s1 + $0x18] sm:$0xff]
    %v108 = vld [vmem:[%s3] sm:$0x3]
    %v110 = vlaneseq
    %v111 = vshrl.u32 %v110, 7
    %v112 = vsub.s32 0, %v111
    %v113 = vrot.slane %v108, %v112
    %v114 = vlaneseq
    %v115 = vshrl.u32 %v114, 7
    %v116 = vsub.s32 1, %v115
    %v117 = vrot.slane %v108, %v116
    %vm120 = vcmask 130048
    %v122 = vsel %vm120, %v103, 0
    %124 = vmatprep.subr.mxu0 0.0
    %125 = vmatpush1.msra.mxu0 0.0
    %126 = vmatprep.subr.mxu0 0.0
    %127 = vmatpush1.msra.mxu0 0.0
    %128 = vmatprep.subr.mxu0 0.0
    %129 = vmatpush1.msra.mxu0 0.0
    %130 = vmatprep.subr.mxu0 0.0
    %131 = vmatpush1.msra.mxu0 0.0
    %132 = vmatprep.subr.mxu0 0.0
    %133 = vmatpush1.msra.mxu0 0.0
    %134 = vmatprep.subr.mxu0 0.0
    %135 = vmatpush1.msra.mxu0 0.0
    %136 = vmatprep.subr.mxu0 0.0
    %137 = vmatpush1.msra.mxu0 0.0
    %138 = vmatprep.subr.mxu0 0.0
    %139 = vmatpush1.msra.mxu0 0.0
    %140 = vmatprep.subr.mxu0 0.0
    %141 = vmatpush1.msra.mxu0 0.0
    %142 = vmatprep.subr.mxu0 0.0
    %143 = vmatpush1.msra.mxu0 0.0
    %144 = vmatprep.subr.mxu0 0.0
    %145 = vmatpush1.msra.mxu0 0.0
    %146 = vmatprep.subr.mxu0 0.0
    %147 = vmatpush1.msra.mxu0 0.0
    %148 = vmatprep.subr.mxu0 0.0
    %149 = vmatpush1.msra.mxu0 0.0
    %150 = vmatprep.subr.mxu0 0.0
    %151 = vmatpush1.msra.mxu0 0.0
    %152 = vmatprep.subr.mxu0 %v107
    %153 = vmatpush1.msra.mxu0 %v106
    %154 = vmatprep.subr.mxu0 %v105
    %155 = vmatpush1.msra.mxu0 %v104
    %156 = vmatprep.subr.mxu0 0.0
    %157 = vmatpush2.msra.mxu0 0.0
    %158 = vmatprep.subr.mxu0 0.0
    %159 = vmatpush2.msra.mxu0 0.0
    %160 = vmatprep.subr.mxu0 0.0
    %161 = vmatpush2.msra.mxu0 0.0
    %162 = vmatprep.subr.mxu0 0.0
    %163 = vmatpush2.msra.mxu0 0.0
    %164 = vmatprep.subr.mxu0 0.0
    %165 = vmatpush2.msra.mxu0 0.0
    %166 = vmatprep.subr.mxu0 0.0
    %167 = vmatpush2.msra.mxu0 0.0
    %168 = vmatprep.subr.mxu0 0.0
    %169 = vmatpush2.msra.mxu0 0.0
    %170 = vmatprep.subr.mxu0 0.0
    %171 = vmatpush2.msra.mxu0 0.0
    %172 = vmatprep.subr.mxu0 0.0
    %173 = vmatpush2.msra.mxu0 0.0
    %174 = vmatprep.subr.mxu0 0.0
    %175 = vmatpush2.msra.mxu0 0.0
    %176 = vmatprep.subr.mxu0 0.0
    %177 = vmatpush2.msra.mxu0 0.0
    %178 = vmatprep.subr.mxu0 0.0
    %179 = vmatpush2.msra.mxu0 0.0
    %180 = vmatprep.subr.mxu0 0.0
    %181 = vmatpush2.msra.mxu0 0.0
    %182 = vmatprep.subr.mxu0 0.0
    %183 = vmatpush2.msra.mxu0 0.0
    %184 = vmatprep.subr.mxu0 0.0
    %185 = vmatpush2.msra.mxu0 0.0
    %186 = vmatprep.subr.mxu0 0.0
    %187 = vmatpush2.msra.mxu0 0.0
    %188 = vmatprep.mubr.f32.mxu0 0.0
    %189 = vmatmul.mubr.f32.gmra.mxu0 %v122
    %v190 = vpop.f32.mrf.mxu0
    %v191 = vadd.f32 %v113, %v190
    %v192 = vpop.f32.mrf.mxu0
    %v193 = vadd.f32 %v117, %v192
    %194 = vdwg.mxu0
    %v195 = vld [vmem:[#allocation4] sm:$0xff]
    %v196 = vld [vmem:[#allocation4 + $0x8] sm:$0xff]
    %v197 = vld [vmem:[#allocation4 + $0x10] sm:$0xff]
    %v198 = vld [vmem:[#allocation4 + $0x18] sm:$0xff]
    %v199 = vld [vmem:[#allocation4 + $0x20] sm:$0xff]
    %v200 = vld [vmem:[#allocation4 + $0x28] sm:$0xff]
    %v201 = vld [vmem:[#allocation4 + $0x30] sm:$0xff]
    %v202 = vld [vmem:[#allocation4 + $0x38] sm:$0xff]
    %v203 = vld [vmem:[#allocation4 + $0x40] sm:$0xff]
    %v204 = vld [vmem:[#allocation4 + $0x48] sm:$0xff]
    %v205 = vld [vmem:[#allocation4 + $0x50] sm:$0xff]
    %v206 = vld [vmem:[#allocation4 + $0x58] sm:$0xff]
    %v207 = vld [vmem:[#allocation4 + $0x60] sm:$0xff]
    %v208 = vld [vmem:[#allocation4 + $0x68] sm:$0xff]
    %v209 = vld [vmem:[#allocation4 + $0x70] sm:$0xff]
    %v210 = vld [vmem:[#allocation4 + $0x78] sm:$0xff]
    %v213 = vrot.slane %v191, 1
    %v214 = vrot.slane %v193, 1
    %v217 = vsel %vm101, %v191, %v213
    %v218 = vsel %vm102, %v193, %v214
    %vm219 = vcmask 523264
    %v221 = vsel %vm219, 0.0, 0
    %223 = vmatprep.subr.mxu0 0.0
    %224 = vmatpush1.msra.mxu0 0.0
    %225 = vmatprep.subr.mxu0 0.0
    %226 = vmatpush1.msra.mxu0 0.0
    %227 = vmatprep.subr.mxu0 0.0
    %228 = vmatpush1.msra.mxu0 0.0
    %229 = vmatprep.subr.mxu0 0.0
    %230 = vmatpush1.msra.mxu0 0.0
    %231 = vmatprep.subr.mxu0 0.0
    %232 = vmatpush1.msra.mxu0 0.0
    %233 = vmatprep.subr.mxu0 0.0
    %234 = vmatpush1.msra.mxu0 0.0
    %235 = vmatprep.subr.mxu0 0.0
    %236 = vmatpush1.msra.mxu0 0.0
    %237 = vmatprep.subr.mxu0 0.0
    %238 = vmatpush1.msra.mxu0 0.0
    %239 = vmatprep.subr.mxu0 %v210
    %240 = vmatpush1.msra.mxu0 %v209
    %241 = vmatprep.subr.mxu0 %v208
    %242 = vmatpush1.msra.mxu0 %v207
    %243 = vmatprep.subr.mxu0 %v206
    %244 = vmatpush1.msra.mxu0 %v205
    %245 = vmatprep.subr.mxu0 %v204
    %246 = vmatpush1.msra.mxu0 %v203
    %247 = vmatprep.subr.mxu0 %v202
    %248 = vmatpush1.msra.mxu0 %v201
    %249 = vmatprep.subr.mxu0 %v200
    %250 = vmatpush1.msra.mxu0 %v199
    %251 = vmatprep.subr.mxu0 %v198
    %252 = vmatpush1.msra.mxu0 %v197
    %253 = vmatprep.subr.mxu0 %v196
    %254 = vmatpush1.msra.mxu0 %v195
    %255 = vmatprep.subr.mxu0 0.0
    %256 = vmatpush2.msra.mxu0 0.0
    %257 = vmatprep.subr.mxu0 0.0
    %258 = vmatpush2.msra.mxu0 0.0
    %259 = vmatprep.subr.mxu0 0.0
    %260 = vmatpush2.msra.mxu0 0.0
    %261 = vmatprep.subr.mxu0 0.0
    %262 = vmatpush2.msra.mxu0 0.0
    %263 = vmatprep.subr.mxu0 0.0
    %264 = vmatpush2.msra.mxu0 0.0
    %265 = vmatprep.subr.mxu0 0.0
    %266 = vmatpush2.msra.mxu0 0.0
    %267 = vmatprep.subr.mxu0 0.0
    %268 = vmatpush2.msra.mxu0 0.0
    %269 = vmatprep.subr.mxu0 0.0
    %270 = vmatpush2.msra.mxu0 0.0
    %271 = vmatprep.subr.mxu0 0.0
    %272 = vmatpush2.msra.mxu0 0.0
    %273 = vmatprep.subr.mxu0 0.0
    %274 = vmatpush2.msra.mxu0 0.0
    %275 = vmatprep.subr.mxu0 0.0
    %276 = vmatpush2.msra.mxu0 0.0
    %277 = vmatprep.subr.mxu0 0.0
    %278 = vmatpush2.msra.mxu0 0.0
    %279 = vmatprep.subr.mxu0 0.0
    %280 = vmatpush2.msra.mxu0 0.0
    %281 = vmatprep.subr.mxu0 0.0
    %282 = vmatpush2.msra.mxu0 0.0
    %283 = vmatprep.subr.mxu0 0.0
    %284 = vmatpush2.msra.mxu0 0.0
    %285 = vmatprep.subr.mxu0 0.0
    %286 = vmatpush2.msra.mxu0 0.0
    %287 = vmatprep.mubr.f32.mxu0 0.0
    %288 = vmatmul.mubr.f32.gmra.mxu0 %v221
    %v289 = vpop.f32.mrf.mxu0
    %v290 = vadd.f32 0.0, %v289
    %v291 = vpop.f32.mrf.mxu0
    %v292 = vadd.f32 0.0, %v291
    %293 = vdwg.mxu0
    %v296 = vrot.slane %v290, 1
    %v297 = vrot.slane %v292, 1
    %v300 = vadd.f32 %v217, %v296
    %v301 = vadd.f32 %v218, %v297
    %v302 = vxor.u32 %v300, 2147483648
    %v303 = vxor.u32 %v301, 2147483648
    %v304 = vmul.f32 %v302, 1.442695
    %v305 = vpow.pop %v304
    %v306 = vmul.f32 %v303, 1.442695
    %v307 = vpow.pop %v306
    %v308 = vadd.f32 %v305, 1.0
    %v309 = vadd.f32 %v307, 1.0
    %v310 = vrcp.pop %v308
    %v311 = vmul.f32 1.0, %v310
    %v312 = vrcp.pop %v309
    %v313 = vmul.f32 1.0, %v312
    %v314 = vtanh.pop %v301
    %v315 = vmul.f32 %v311, 0.0
    %317 = vrot.lane.b32.xlu0 %v314, 64
    %v318 = vpop.permute.xlu0 %317
    %v320 = vmul.f32 %v311, %v318
    %322 = vrot.lane.b32.xlu0 %v320, 64
    %v323 = vpop.permute.xlu0 %322
    %v325 = vadd.f32 %v315, %v323
    %v326 = vtanh.pop %v325
    %328 = vrot.lane.b32.xlu0 %v326, 64
    %v329 = vpop.permute.xlu0 %328
    %v331 = vmul.f32 %v313, %v329
    %vm332 = vcmask 261127
    %333 = vst.msk [vmem:[#allocation2 - $0x7] sm:$0x80] %vm332, %v331
    %vm334 = vcmask 523527
    %335 = vst.msk [vmem:[#allocation2] sm:$0x80] %vm334, %v331
    %v336 = vrot.slane %v191, 3
    %v337 = vrot.slane %v193, 3
    %v340 = vsel %vm101, %v191, %v336
    %v341 = vsel %vm102, %v193, %v337
    %v343 = vrot.slane %v331, 7
    %v344 = vsel %vm219, %v343, 0
    %346 = vmatprep.subr.mxu0 0.0
    %347 = vmatpush1.msra.mxu0 0.0
    %348 = vmatprep.subr.mxu0 0.0
    %349 = vmatpush1.msra.mxu0 0.0
    %350 = vmatprep.subr.mxu0 0.0
    %351 = vmatpush1.msra.mxu0 0.0
    %352 = vmatprep.subr.mxu0 0.0
    %353 = vmatpush1.msra.mxu0 0.0
    %354 = vmatprep.subr.mxu0 0.0
    %355 = vmatpush1.msra.mxu0 0.0
    %356 = vmatprep.subr.mxu0 0.0
    %357 = vmatpush1.msra.mxu0 0.0
    %358 = vmatprep.subr.mxu0 0.0
    %359 = vmatpush1.msra.mxu0 0.0
    %360 = vmatprep.subr.mxu0 0.0
    %361 = vmatpush1.msra.mxu0 0.0
    %362 = vmatprep.subr.mxu0 %v210
    %363 = vmatpush1.msra.mxu0 %v209
    %364 = vmatprep.subr.mxu0 %v208
    %365 = vmatpush1.msra.mxu0 %v207
    %366 = vmatprep.subr.mxu0 %v206
    %367 = vmatpush1.msra.mxu0 %v205
    %368 = vmatprep.subr.mxu0 %v204
    %369 = vmatpush1.msra.mxu0 %v203
    %370 = vmatprep.subr.mxu0 %v202
    %371 = vmatpush1.msra.mxu0 %v201
    %372 = vmatprep.subr.mxu0 %v200
    %373 = vmatpush1.msra.mxu0 %v199
    %374 = vmatprep.subr.mxu0 %v198
    %375 = vmatpush1.msra.mxu0 %v197
    %376 = vmatprep.subr.mxu0 %v196
    %377 = vmatpush1.msra.mxu0 %v195
    %378 = vmatprep.subr.mxu0 0.0
    %379 = vmatpush2.msra.mxu0 0.0
    %380 = vmatprep.subr.mxu0 0.0
    %381 = vmatpush2.msra.mxu0 0.0
    %382 = vmatprep.subr.mxu0 0.0
    %383 = vmatpush2.msra.mxu0 0.0
    %384 = vmatprep.subr.mxu0 0.0
    %385 = vmatpush2.msra.mxu0 0.0
    %386 = vmatprep.subr.mxu0 0.0
    %387 = vmatpush2.msra.mxu0 0.0
    %388 = vmatprep.subr.mxu0 0.0
    %389 = vmatpush2.msra.mxu0 0.0
    %390 = vmatprep.subr.mxu0 0.0
    %391 = vmatpush2.msra.mxu0 0.0
    %392 = vmatprep.subr.mxu0 0.0
    %393 = vmatpush2.msra.mxu0 0.0
    %394 = vmatprep.subr.mxu0 0.0
    %395 = vmatpush2.msra.mxu0 0.0
    %396 = vmatprep.subr.mxu0 0.0
    %397 = vmatpush2.msra.mxu0 0.0
    %398 = vmatprep.subr.mxu0 0.0
    %399 = vmatpush2.msra.mxu0 0.0
    %400 = vmatprep.subr.mxu0 0.0
    %401 = vmatpush2.msra.mxu0 0.0
    %402 = vmatprep.subr.mxu0 0.0
    %403 = vmatpush2.msra.mxu0 0.0
    %404 = vmatprep.subr.mxu0 0.0
    %405 = vmatpush2.msra.mxu0 0.0
    %406 = vmatprep.subr.mxu0 0.0
    %407 = vmatpush2.msra.mxu0 0.0
    %408 = vmatprep.subr.mxu0 0.0
    %409 = vmatpush2.msra.mxu0 0.0
    %410 = vmatprep.mubr.f32.mxu0 0.0
    %411 = vmatmul.mubr.f32.gmra.mxu0 %v344
    %v412 = vpop.f32.mrf.mxu0
    %v413 = vadd.f32 0.0, %v412
    %v414 = vpop.f32.mrf.mxu0
    %v415 = vadd.f32 0.0, %v414
    %416 = vdwg.mxu0
    %v419 = vrot.slane %v413, 2
    %v420 = vrot.slane %v415, 2
    %v423 = vadd.f32 %v340, %v419
    %v424 = vadd.f32 %v341, %v420
    %v425 = vxor.u32 %v423, 2147483648
    %v426 = vxor.u32 %v424, 2147483648
    %v427 = vmul.f32 %v425, 1.442695
    %v428 = vpow.pop %v427
    %v429 = vmul.f32 %v426, 1.442695
    %v430 = vpow.pop %v429
    %v431 = vadd.f32 %v428, 1.0
    %v432 = vadd.f32 %v430, 1.0
    %v433 = vrcp.pop %v431
    %v434 = vmul.f32 1.0, %v433
    %v435 = vrcp.pop %v432
    %v436 = vmul.f32 1.0, %v435
    %v437 = vtanh.pop %v424
    %v439 = vrot.slane %v325, 1
    %v441 = vmul.f32 %v434, %v439
    %443 = vrot.lane.b32.xlu0 %v437, 64
    %v444 = vpop.permute.xlu0 %443
    %v446 = vmul.f32 %v434, %v444
    %448 = vrot.lane.b32.xlu0 %v446, 64
    %v449 = vpop.permute.xlu0 %448
    %v451 = vadd.f32 %v441, %v449
    %v452 = vtanh.pop %v451
    %454 = vrot.lane.b32.xlu0 %v452, 64
    %v455 = vpop.permute.xlu0 %454
    %v457 = vmul.f32 %v436, %v455
    %vm458 = vcmask 260102
    %459 = vst.msk [vmem:[#allocation2 - $0x5] sm:$0x40] %vm458, %v457
    %vm460 = vcmask 522502
    %461 = vst.msk [vmem:[#allocation2] sm:$0x40] %vm460, %v457
    %v462 = vrot.slane %v191, 5
    %v463 = vrot.slane %v193, 5
    %v466 = vsel %vm101, %v191, %v462
    %v467 = vsel %vm102, %v193, %v463
    %v469 = vrot.slane %v457, 6
    %v470 = vsel %vm219, %v469, 0
    %472 = vmatprep.subr.mxu0 0.0
    %473 = vmatpush1.msra.mxu0 0.0
    %474 = vmatprep.subr.mxu0 0.0
    %475 = vmatpush1.msra.mxu0 0.0
    %476 = vmatprep.subr.mxu0 0.0
    %477 = vmatpush1.msra.mxu0 0.0
    %478 = vmatprep.subr.mxu0 0.0
    %479 = vmatpush1.msra.mxu0 0.0
    %480 = vmatprep.subr.mxu0 0.0
    %481 = vmatpush1.msra.mxu0 0.0
    %482 = vmatprep.subr.mxu0 0.0
    %483 = vmatpush1.msra.mxu0 0.0
    %484 = vmatprep.subr.mxu0 0.0
    %485 = vmatpush1.msra.mxu0 0.0
    %486 = vmatprep.subr.mxu0 0.0
    %487 = vmatpush1.msra.mxu0 0.0
    %488 = vmatprep.subr.mxu0 %v210
    %489 = vmatpush1.msra.mxu0 %v209
    %490 = vmatprep.subr.mxu0 %v208
    %491 = vmatpush1.msra.mxu0 %v207
    %492 = vmatprep.subr.mxu0 %v206
    %493 = vmatpush1.msra.mxu0 %v205
    %494 = vmatprep.subr.mxu0 %v204
    %495 = vmatpush1.msra.mxu0 %v203
    %496 = vmatprep.subr.mxu0 %v202
    %497 = vmatpush1.msra.mxu0 %v201
    %498 = vmatprep.subr.mxu0 %v200
    %499 = vmatpush1.msra.mxu0 %v199
    %500 = vmatprep.subr.mxu0 %v198
    %501 = vmatpush1.msra.mxu0 %v197
    %502 = vmatprep.subr.mxu0 %v196
    %503 = vmatpush1.msra.mxu0 %v195
    %504 = vmatprep.subr.mxu0 0.0
    %505 = vmatpush2.msra.mxu0 0.0
    %506 = vmatprep.subr.mxu0 0.0
    %507 = vmatpush2.msra.mxu0 0.0
    %508 = vmatprep.subr.mxu0 0.0
    %509 = vmatpush2.msra.mxu0 0.0
    %510 = vmatprep.subr.mxu0 0.0
    %511 = vmatpush2.msra.mxu0 0.0
    %512 = vmatprep.subr.mxu0 0.0
    %513 = vmatpush2.msra.mxu0 0.0
    %514 = vmatprep.subr.mxu0 0.0
    %515 = vmatpush2.msra.mxu0 0.0
    %516 = vmatprep.subr.mxu0 0.0
    %517 = vmatpush2.msra.mxu0 0.0
    %518 = vmatprep.subr.mxu0 0.0
    %519 = vmatpush2.msra.mxu0 0.0
    %520 = vmatprep.subr.mxu0 0.0
    %521 = vmatpush2.msra.mxu0 0.0
    %522 = vmatprep.subr.mxu0 0.0
    %523 = vmatpush2.msra.mxu0 0.0
    %524 = vmatprep.subr.mxu0 0.0
    %525 = vmatpush2.msra.mxu0 0.0
    %526 = vmatprep.subr.mxu0 0.0
    %527 = vmatpush2.msra.mxu0 0.0
    %528 = vmatprep.subr.mxu0 0.0
    %529 = vmatpush2.msra.mxu0 0.0
    %530 = vmatprep.subr.mxu0 0.0
    %531 = vmatpush2.msra.mxu0 0.0
    %532 = vmatprep.subr.mxu0 0.0
    %533 = vmatpush2.msra.mxu0 0.0
    %534 = vmatprep.subr.mxu0 0.0
    %535 = vmatpush2.msra.mxu0 0.0
    %536 = vmatprep.mubr.f32.mxu0 0.0
    %537 = vmatmul.mubr.f32.gmra.mxu0 %v470
    %v538 = vpop.f32.mrf.mxu0
    %v539 = vadd.f32 0.0, %v538
    %v540 = vpop.f32.mrf.mxu0
    %v541 = vadd.f32 0.0, %v540
    %542 = vdwg.mxu0
    %v545 = vrot.slane %v539, 3
    %v546 = vrot.slane %v541, 3
    %v549 = vadd.f32 %v466, %v545
    %v550 = vadd.f32 %v467, %v546
    %v551 = vxor.u32 %v549, 2147483648
    %v552 = vxor.u32 %v550, 2147483648
    %v553 = vmul.f32 %v551, 1.442695
    %v554 = vpow.pop %v553
    %v555 = vmul.f32 %v552, 1.442695
    %v556 = vpow.pop %v555
    %v557 = vadd.f32 %v554, 1.0
    %v558 = vadd.f32 %v556, 1.0
    %v559 = vrcp.pop %v557
    %v560 = vmul.f32 1.0, %v559
    %v561 = vrcp.pop %v558
    %v562 = vmul.f32 1.0, %v561
    %v563 = vtanh.pop %v550
    %v565 = vrot.slane %v451, 1
    %v567 = vmul.f32 %v560, %v565
    %569 = vrot.lane.b32.xlu0 %v563, 64
    %v570 = vpop.permute.xlu0 %569
    %v572 = vmul.f32 %v560, %v570
    %574 = vrot.lane.b32.xlu0 %v572, 64
    %v575 = vpop.permute.xlu0 %574
    %v577 = vadd.f32 %v567, %v575
    %v578 = vtanh.pop %v577
    %580 = vrot.lane.b32.xlu0 %v578, 64
    %v581 = vpop.permute.xlu0 %580
    %v583 = vmul.f32 %v562, %v581
    %vm584 = vcmask 259077
    %585 = vst.msk [vmem:[#allocation2 - $0x3] sm:$0x20] %vm584, %v583
    %vm586 = vcmask 521477
    %587 = vst.msk [vmem:[#allocation2] sm:$0x20] %vm586, %v583
    %v588 = vrot.slane %v191, 7
    %v589 = vrot.slane %v193, 7
    %v592 = vsel %vm101, %v191, %v588
    %v593 = vsel %vm102, %v193, %v589
    %v595 = vrot.slane %v583, 5
    %v596 = vsel %vm219, %v595, 0
    %598 = vmatprep.subr.mxu0 0.0
    %599 = vmatpush1.msra.mxu0 0.0
    %600 = vmatprep.subr.mxu0 0.0
    %601 = vmatpush1.msra.mxu0 0.0
    %602 = vmatprep.subr.mxu0 0.0
    %603 = vmatpush1.msra.mxu0 0.0
    %604 = vmatprep.subr.mxu0 0.0
    %605 = vmatpush1.msra.mxu0 0.0
    %606 = vmatprep.subr.mxu0 0.0
    %607 = vmatpush1.msra.mxu0 0.0
    %608 = vmatprep.subr.mxu0 0.0
    %609 = vmatpush1.msra.mxu0 0.0
    %610 = vmatprep.subr.mxu0 0.0
    %611 = vmatpush1.msra.mxu0 0.0
    %612 = vmatprep.subr.mxu0 0.0
    %613 = vmatpush1.msra.mxu0 0.0
    %614 = vmatprep.subr.mxu0 %v210
    %615 = vmatpush1.msra.mxu0 %v209
    %616 = vmatprep.subr.mxu0 %v208
    %617 = vmatpush1.msra.mxu0 %v207
    %618 = vmatprep.subr.mxu0 %v206
    %619 = vmatpush1.msra.mxu0 %v205
    %620 = vmatprep.subr.mxu0 %v204
    %621 = vmatpush1.msra.mxu0 %v203
    %622 = vmatprep.subr.mxu0 %v202
    %623 = vmatpush1.msra.mxu0 %v201
    %624 = vmatprep.subr.mxu0 %v200
    %625 = vmatpush1.msra.mxu0 %v199
    %626 = vmatprep.subr.mxu0 %v198
    %627 = vmatpush1.msra.mxu0 %v197
    %628 = vmatprep.subr.mxu0 %v196
    %629 = vmatpush1.msra.mxu0 %v195
    %630 = vmatprep.subr.mxu0 0.0
    %631 = vmatpush2.msra.mxu0 0.0
    %632 = vmatprep.subr.mxu0 0.0
    %633 = vmatpush2.msra.mxu0 0.0
    %634 = vmatprep.subr.mxu0 0.0
    %635 = vmatpush2.msra.mxu0 0.0
    %636 = vmatprep.subr.mxu0 0.0
    %637 = vmatpush2.msra.mxu0 0.0
    %638 = vmatprep.subr.mxu0 0.0
    %639 = vmatpush2.msra.mxu0 0.0
    %640 = vmatprep.subr.mxu0 0.0
    %641 = vmatpush2.msra.mxu0 0.0
    %642 = vmatprep.subr.mxu0 0.0
    %643 = vmatpush2.msra.mxu0 0.0
    %644 = vmatprep.subr.mxu0 0.0
    %645 = vmatpush2.msra.mxu0 0.0
    %646 = vmatprep.subr.mxu0 0.0
    %647 = vmatpush2.msra.mxu0 0.0
    %648 = vmatprep.subr.mxu0 0.0
    %649 = vmatpush2.msra.mxu0 0.0
    %650 = vmatprep.subr.mxu0 0.0
    %651 = vmatpush2.msra.mxu0 0.0
    %652 = vmatprep.subr.mxu0 0.0
    %653 = vmatpush2.msra.mxu0 0.0
    %654 = vmatprep.subr.mxu0 0.0
    %655 = vmatpush2.msra.mxu0 0.0
    %656 = vmatprep.subr.mxu0 0.0
    %657 = vmatpush2.msra.mxu0 0.0
    %658 = vmatprep.subr.mxu0 0.0
    %659 = vmatpush2.msra.mxu0 0.0
    %660 = vmatprep.subr.mxu0 0.0
    %661 = vmatpush2.msra.mxu0 0.0
    %662 = vmatprep.mubr.f32.mxu0 0.0
    %663 = vmatmul.mubr.f32.gmra.mxu0 %v596
    %v664 = vpop.f32.mrf.mxu0
    %v665 = vadd.f32 0.0, %v664
    %v666 = vpop.f32.mrf.mxu0
    %v667 = vadd.f32 0.0, %v666
    %668 = vdwg.mxu0
    %v671 = vrot.slane %v665, 4
    %v672 = vrot.slane %v667, 4
    %v675 = vadd.f32 %v592, %v671
    %v676 = vadd.f32 %v593, %v672
    %v677 = vxor.u32 %v675, 2147483648
    %v678 = vxor.u32 %v676, 2147483648
    %v679 = vmul.f32 %v677, 1.442695
    %v680 = vpow.pop %v679
    %v681 = vmul.f32 %v678, 1.442695
    %v682 = vpow.pop %v681
    %v683 = vadd.f32 %v680, 1.0
    %v684 = vadd.f32 %v682, 1.0
    %v685 = vrcp.pop %v683
    %v686 = vmul.f32 1.0, %v685
    %v687 = vrcp.pop %v684
    %v688 = vmul.f32 1.0, %v687
    %v689 = vtanh.pop %v676
    %v691 = vrot.slane %v577, 1
    %v693 = vmul.f32 %v686, %v691
    %695 = vrot.lane.b32.xlu0 %v689, 64
    %v696 = vpop.permute.xlu0 %695
    %v698 = vmul.f32 %v686, %v696
    %700 = vrot.lane.b32.xlu0 %v698, 64
    %v701 = vpop.permute.xlu0 %700
    %v703 = vadd.f32 %v693, %v701
    %v704 = vtanh.pop %v703
    %706 = vrot.lane.b32.xlu0 %v704, 64
    %v707 = vpop.permute.xlu0 %706
    %v709 = vmul.f32 %v688, %v707
    %vm710 = vcmask 258052
    %711 = vst.msk [vmem:[#allocation2 - $0x1] sm:$0x10] %vm710, %v709
    %vm712 = vcmask 520452
    %713 = vst.msk [vmem:[#allocation2] sm:$0x10] %vm712, %v709
    %v715 = vrot.slane %v709, 4
    %v716 = vsel %vm219, %v715, 0
    %718 = vmatprep.subr.mxu0 0.0
    %719 = vmatpush1.msra.mxu0 0.0
    %720 = vmatprep.subr.mxu0 0.0
    %721 = vmatpush1.msra.mxu0 0.0
    %722 = vmatprep.subr.mxu0 0.0
    %723 = vmatpush1.msra.mxu0 0.0
    %724 = vmatprep.subr.mxu0 0.0
    %725 = vmatpush1.msra.mxu0 0.0
    %726 = vmatprep.subr.mxu0 0.0
    %727 = vmatpush1.msra.mxu0 0.0
    %728 = vmatprep.subr.mxu0 0.0
    %729 = vmatpush1.msra.mxu0 0.0
    %730 = vmatprep.subr.mxu0 0.0
    %731 = vmatpush1.msra.mxu0 0.0
    %732 = vmatprep.subr.mxu0 0.0
    %733 = vmatpush1.msra.mxu0 0.0
    %734 = vmatprep.subr.mxu0 %v210
    %735 = vmatpush1.msra.mxu0 %v209
    %736 = vmatprep.subr.mxu0 %v208
    %737 = vmatpush1.msra.mxu0 %v207
    %738 = vmatprep.subr.mxu0 %v206
    %739 = vmatpush1.msra.mxu0 %v205
    %740 = vmatprep.subr.mxu0 %v204
    %741 = vmatpush1.msra.mxu0 %v203
    %742 = vmatprep.subr.mxu0 %v202
    %743 = vmatpush1.msra.mxu0 %v201
    %744 = vmatprep.subr.mxu0 %v200
    %745 = vmatpush1.msra.mxu0 %v199
    %746 = vmatprep.subr.mxu0 %v198
    %747 = vmatpush1.msra.mxu0 %v197
    %748 = vmatprep.subr.mxu0 %v196
    %749 = vmatpush1.msra.mxu0 %v195
    %750 = vmatprep.subr.mxu0 0.0
    %751 = vmatpush2.msra.mxu0 0.0
    %752 = vmatprep.subr.mxu0 0.0
    %753 = vmatpush2.msra.mxu0 0.0
    %754 = vmatprep.subr.mxu0 0.0
    %755 = vmatpush2.msra.mxu0 0.0
    %756 = vmatprep.subr.mxu0 0.0
    %757 = vmatpush2.msra.mxu0 0.0
    %758 = vmatprep.subr.mxu0 0.0
    %759 = vmatpush2.msra.mxu0 0.0
    %760 = vmatprep.subr.mxu0 0.0
    %761 = vmatpush2.msra.mxu0 0.0
    %762 = vmatprep.subr.mxu0 0.0
    %763 = vmatpush2.msra.mxu0 0.0
    %764 = vmatprep.subr.mxu0 0.0
    %765 = vmatpush2.msra.mxu0 0.0
    %766 = vmatprep.subr.mxu0 0.0
    %767 = vmatpush2.msra.mxu0 0.0
    %768 = vmatprep.subr.mxu0 0.0
    %769 = vmatpush2.msra.mxu0 0.0
    %770 = vmatprep.subr.mxu0 0.0
    %771 = vmatpush2.msra.mxu0 0.0
    %772 = vmatprep.subr.mxu0 0.0
    %773 = vmatpush2.msra.mxu0 0.0
    %774 = vmatprep.subr.mxu0 0.0
    %775 = vmatpush2.msra.mxu0 0.0
    %776 = vmatprep.subr.mxu0 0.0
    %777 = vmatpush2.msra.mxu0 0.0
    %778 = vmatprep.subr.mxu0 0.0
    %779 = vmatpush2.msra.mxu0 0.0
    %780 = vmatprep.subr.mxu0 0.0
    %781 = vmatpush2.msra.mxu0 0.0
    %782 = vmatprep.mubr.f32.mxu0 0.0
    %783 = vmatmul.mubr.f32.gmra.mxu0 %v716
    %v784 = vpop.f32.mrf.mxu0
    %v785 = vadd.f32 0.0, %v784
    %v786 = vpop.f32.mrf.mxu0
    %v787 = vadd.f32 0.0, %v786
    %788 = vdwg.mxu0
    %v791 = vrot.slane %v785, 5
    %v792 = vrot.slane %v787, 5
    %v795 = vadd.f32 %v217, %v791
    %v796 = vadd.f32 %v218, %v792
    %v797 = vxor.u32 %v795, 2147483648
    %v798 = vxor.u32 %v796, 2147483648
    %v799 = vmul.f32 %v797, 1.442695
    %v800 = vpow.pop %v799
    %v801 = vmul.f32 %v798, 1.442695
    %v802 = vpow.pop %v801
    %v803 = vadd.f32 %v800, 1.0
    %v804 = vadd.f32 %v802, 1.0
    %v805 = vrcp.pop %v803
    %v806 = vmul.f32 1.0, %v805
    %v807 = vrcp.pop %v804
    %v808 = vmul.f32 1.0, %v807
    %v809 = vtanh.pop %v796
    %v811 = vrot.slane %v703, 1
    %v813 = vmul.f32 %v806, %v811
    %815 = vrot.lane.b32.xlu0 %v809, 64
    %v816 = vpop.permute.xlu0 %815
    %v818 = vmul.f32 %v806, %v816
    %820 = vrot.lane.b32.xlu0 %v818, 64
    %v821 = vpop.permute.xlu0 %820
    %v823 = vadd.f32 %v813, %v821
    %v824 = vtanh.pop %v823
    %826 = vrot.lane.b32.xlu0 %v824, 64
    %v827 = vpop.permute.xlu0 %826
    %v829 = vmul.f32 %v808, %v827
    %vm830 = vcmask 257027
    %831 = vst.msk [vmem:[#allocation2 + $0x1] sm:$0x8] %vm830, %v829
    %vm832 = vcmask 519427
    %833 = vst.msk [vmem:[#allocation2] sm:$0x8] %vm832, %v829
    %v835 = vrot.slane %v829, 3
    %v836 = vsel %vm219, %v835, 0
    %838 = vmatprep.subr.mxu0 0.0
    %839 = vmatpush1.msra.mxu0 0.0
    %840 = vmatprep.subr.mxu0 0.0
    %841 = vmatpush1.msra.mxu0 0.0
    %842 = vmatprep.subr.mxu0 0.0
    %843 = vmatpush1.msra.mxu0 0.0
    %844 = vmatprep.subr.mxu0 0.0
    %845 = vmatpush1.msra.mxu0 0.0
    %846 = vmatprep.subr.mxu0 0.0
    %847 = vmatpush1.msra.mxu0 0.0
    %848 = vmatprep.subr.mxu0 0.0
    %849 = vmatpush1.msra.mxu0 0.0
    %850 = vmatprep.subr.mxu0 0.0
    %851 = vmatpush1.msra.mxu0 0.0
    %852 = vmatprep.subr.mxu0 0.0
    %853 = vmatpush1.msra.mxu0 0.0
    %854 = vmatprep.subr.mxu0 %v210
    %855 = vmatpush1.msra.mxu0 %v209
    %856 = vmatprep.subr.mxu0 %v208
    %857 = vmatpush1.msra.mxu0 %v207
    %858 = vmatprep.subr.mxu0 %v206
    %859 = vmatpush1.msra.mxu0 %v205
    %860 = vmatprep.subr.mxu0 %v204
    %861 = vmatpush1.msra.mxu0 %v203
    %862 = vmatprep.subr.mxu0 %v202
    %863 = vmatpush1.msra.mxu0 %v201
    %864 = vmatprep.subr.mxu0 %v200
    %865 = vmatpush1.msra.mxu0 %v199
    %866 = vmatprep.subr.mxu0 %v198
    %867 = vmatpush1.msra.mxu0 %v197
    %868 = vmatprep.subr.mxu0 %v196
    %869 = vmatpush1.msra.mxu0 %v195
    %870 = vmatprep.subr.mxu0 0.0
    %871 = vmatpush2.msra.mxu0 0.0
    %872 = vmatprep.subr.mxu0 0.0
    %873 = vmatpush2.msra.mxu0 0.0
    %874 = vmatprep.subr.mxu0 0.0
    %875 = vmatpush2.msra.mxu0 0.0
    %876 = vmatprep.subr.mxu0 0.0
    %877 = vmatpush2.msra.mxu0 0.0
    %878 = vmatprep.subr.mxu0 0.0
    %879 = vmatpush2.msra.mxu0 0.0
    %880 = vmatprep.subr.mxu0 0.0
    %881 = vmatpush2.msra.mxu0 0.0
    %882 = vmatprep.subr.mxu0 0.0
    %883 = vmatpush2.msra.mxu0 0.0
    %884 = vmatprep.subr.mxu0 0.0
    %885 = vmatpush2.msra.mxu0 0.0
    %886 = vmatprep.subr.mxu0 0.0
    %887 = vmatpush2.msra.mxu0 0.0
    %888 = vmatprep.subr.mxu0 0.0
    %889 = vmatpush2.msra.mxu0 0.0
    %890 = vmatprep.subr.mxu0 0.0
    %891 = vmatpush2.msra.mxu0 0.0
    %892 = vmatprep.subr.mxu0 0.0
    %893 = vmatpush2.msra.mxu0 0.0
    %894 = vmatprep.subr.mxu0 0.0
    %895 = vmatpush2.msra.mxu0 0.0
    %896 = vmatprep.subr.mxu0 0.0
    %897 = vmatpush2.msra.mxu0 0.0
    %898 = vmatprep.subr.mxu0 0.0
    %899 = vmatpush2.msra.mxu0 0.0
    %900 = vmatprep.subr.mxu0 0.0
    %901 = vmatpush2.msra.mxu0 0.0
    %902 = vmatprep.mubr.f32.mxu0 0.0
    %903 = vmatmul.mubr.f32.gmra.mxu0 %v836
    %v904 = vpop.f32.mrf.mxu0
    %v905 = vadd.f32 0.0, %v904
    %v906 = vpop.f32.mrf.mxu0
    %v907 = vadd.f32 0.0, %v906
    %908 = vdwg.mxu0
    %v911 = vrot.slane %v905, 6
    %v912 = vrot.slane %v907, 6
    %v915 = vadd.f32 %v340, %v911
    %v916 = vadd.f32 %v341, %v912
    %v917 = vxor.u32 %v915, 2147483648
    %v918 = vxor.u32 %v916, 2147483648
    %v919 = vmul.f32 %v917, 1.442695
    %v920 = vpow.pop %v919
    %v921 = vmul.f32 %v918, 1.442695
    %v922 = vpow.pop %v921
    %v923 = vadd.f32 %v920, 1.0
    %v924 = vadd.f32 %v922, 1.0
    %v925 = vrcp.pop %v923
    %v926 = vmul.f32 1.0, %v925
    %v927 = vrcp.pop %v924
    %v928 = vmul.f32 1.0, %v927
    %v929 = vtanh.pop %v916
    %v931 = vrot.slane %v823, 1
    %v933 = vmul.f32 %v926, %v931
    %935 = vrot.lane.b32.xlu0 %v929, 64
    %v936 = vpop.permute.xlu0 %935
    %v938 = vmul.f32 %v926, %v936
    %940 = vrot.lane.b32.xlu0 %v938, 64
    %v941 = vpop.permute.xlu0 %940
    %v943 = vadd.f32 %v933, %v941
    %v944 = vtanh.pop %v943
    %946 = vrot.lane.b32.xlu0 %v944, 64
    %v947 = vpop.permute.xlu0 %946
    %v949 = vmul.f32 %v928, %v947
    %vm950 = vcmask 256002
    %951 = vst.msk [vmem:[#allocation2 + $0x3] sm:$0x4] %vm950, %v949
    %vm952 = vcmask 518402
    %953 = vst.msk [vmem:[#allocation2] sm:$0x4] %vm952, %v949
    %v955 = vrot.slane %v949, 2
    %v956 = vsel %vm219, %v955, 0
    %958 = vmatprep.subr.mxu0 0.0
    %959 = vmatpush1.msra.mxu0 0.0
    %960 = vmatprep.subr.mxu0 0.0
    %961 = vmatpush1.msra.mxu0 0.0
    %962 = vmatprep.subr.mxu0 0.0
    %963 = vmatpush1.msra.mxu0 0.0
    %964 = vmatprep.subr.mxu0 0.0
    %965 = vmatpush1.msra.mxu0 0.0
    %966 = vmatprep.subr.mxu0 0.0
    %967 = vmatpush1.msra.mxu0 0.0
    %968 = vmatprep.subr.mxu0 0.0
    %969 = vmatpush1.msra.mxu0 0.0
    %970 = vmatprep.subr.mxu0 0.0
    %971 = vmatpush1.msra.mxu0 0.0
    %972 = vmatprep.subr.mxu0 0.0
    %973 = vmatpush1.msra.mxu0 0.0
    %974 = vmatprep.subr.mxu0 %v210
    %975 = vmatpush1.msra.mxu0 %v209
    %976 = vmatprep.subr.mxu0 %v208
    %977 = vmatpush1.msra.mxu0 %v207
    %978 = vmatprep.subr.mxu0 %v206
    %979 = vmatpush1.msra.mxu0 %v205
    %980 = vmatprep.subr.mxu0 %v204
    %981 = vmatpush1.msra.mxu0 %v203
    %982 = vmatprep.subr.mxu0 %v202
    %983 = vmatpush1.msra.mxu0 %v201
    %984 = vmatprep.subr.mxu0 %v200
    %985 = vmatpush1.msra.mxu0 %v199
    %986 = vmatprep.subr.mxu0 %v198
    %987 = vmatpush1.msra.mxu0 %v197
    %988 = vmatprep.subr.mxu0 %v196
    %989 = vmatpush1.msra.mxu0 %v195
    %990 = vmatprep.subr.mxu0 0.0
    %991 = vmatpush2.msra.mxu0 0.0
    %992 = vmatprep.subr.mxu0 0.0
    %993 = vmatpush2.msra.mxu0 0.0
    %994 = vmatprep.subr.mxu0 0.0
    %995 = vmatpush2.msra.mxu0 0.0
    %996 = vmatprep.subr.mxu0 0.0
    %997 = vmatpush2.msra.mxu0 0.0
    %998 = vmatprep.subr.mxu0 0.0
    %999 = vmatpush2.msra.mxu0 0.0
    %1000 = vmatprep.subr.mxu0 0.0
    %1001 = vmatpush2.msra.mxu0 0.0
    %1002 = vmatprep.subr.mxu0 0.0
    %1003 = vmatpush2.msra.mxu0 0.0
    %1004 = vmatprep.subr.mxu0 0.0
    %1005 = vmatpush2.msra.mxu0 0.0
    %1006 = vmatprep.subr.mxu0 0.0
    %1007 = vmatpush2.msra.mxu0 0.0
    %1008 = vmatprep.subr.mxu0 0.0
    %1009 = vmatpush2.msra.mxu0 0.0
    %1010 = vmatprep.subr.mxu0 0.0
    %1011 = vmatpush2.msra.mxu0 0.0
    %1012 = vmatprep.subr.mxu0 0.0
    %1013 = vmatpush2.msra.mxu0 0.0
    %1014 = vmatprep.subr.mxu0 0.0
    %1015 = vmatpush2.msra.mxu0 0.0
    %1016 = vmatprep.subr.mxu0 0.0
    %1017 = vmatpush2.msra.mxu0 0.0
    %1018 = vmatprep.subr.mxu0 0.0
    %1019 = vmatpush2.msra.mxu0 0.0
    %1020 = vmatprep.subr.mxu0 0.0
    %1021 = vmatpush2.msra.mxu0 0.0
    %1022 = vmatprep.mubr.f32.mxu0 0.0
    %1023 = vmatmul.mubr.f32.gmra.mxu0 %v956
    %v1024 = vpop.f32.mrf.mxu0
    %v1025 = vadd.f32 0.0, %v1024
    %v1026 = vpop.f32.mrf.mxu0
    %v1027 = vadd.f32 0.0, %v1026
    %1028 = vdwg.mxu0
    %v1031 = vrot.slane %v1025, 7
    %v1032 = vrot.slane %v1027, 7
    %v1035 = vadd.f32 %v466, %v1031
    %v1036 = vadd.f32 %v467, %v1032
    %v1037 = vxor.u32 %v1035, 2147483648
    %v1038 = vxor.u32 %v1036, 2147483648
    %v1039 = vmul.f32 %v1037, 1.442695
    %v1040 = vpow.pop %v1039
    %v1041 = vmul.f32 %v1038, 1.442695
    %v1042 = vpow.pop %v1041
    %v1043 = vadd.f32 %v1040, 1.0
    %v1044 = vadd.f32 %v1042, 1.0
    %v1045 = vrcp.pop %v1043
    %v1046 = vmul.f32 1.0, %v1045
    %v1047 = vrcp.pop %v1044
    %v1048 = vmul.f32 1.0, %v1047
    %v1049 = vtanh.pop %v1036
    %v1051 = vrot.slane %v943, 1
    %v1053 = vmul.f32 %v1046, %v1051
    %1055 = vrot.lane.b32.xlu0 %v1049, 64
    %v1056 = vpop.permute.xlu0 %1055
    %v1058 = vmul.f32 %v1046, %v1056
    %1060 = vrot.lane.b32.xlu0 %v1058, 64
    %v1061 = vpop.permute.xlu0 %1060
    %v1063 = vadd.f32 %v1053, %v1061
    %v1064 = vtanh.pop %v1063
    %1066 = vrot.lane.b32.xlu0 %v1064, 64
    %v1067 = vpop.permute.xlu0 %1066
    %v1069 = vmul.f32 %v1048, %v1067
    %vm1070 = vcmask 254977
    %1071 = vst.msk [vmem:[#allocation2 + $0x5] sm:$0x2] %vm1070, %v1069
    %vm1072 = vcmask 517377
    %1073 = vst.msk [vmem:[#allocation2] sm:$0x2] %vm1072, %v1069
    %v1075 = vrot.slane %v1069, 1
    %v1076 = vsel %vm219, %v1075, 0
    %1078 = vmatprep.subr.mxu0 0.0
    %1079 = vmatpush1.msra.mxu0 0.0
    %1080 = vmatprep.subr.mxu0 0.0
    %1081 = vmatpush1.msra.mxu0 0.0
    %1082 = vmatprep.subr.mxu0 0.0
    %1083 = vmatpush1.msra.mxu0 0.0
    %1084 = vmatprep.subr.mxu0 0.0
    %1085 = vmatpush1.msra.mxu0 0.0
    %1086 = vmatprep.subr.mxu0 0.0
    %1087 = vmatpush1.msra.mxu0 0.0
    %1088 = vmatprep.subr.mxu0 0.0
    %1089 = vmatpush1.msra.mxu0 0.0
    %1090 = vmatprep.subr.mxu0 0.0
    %1091 = vmatpush1.msra.mxu0 0.0
    %1092 = vmatprep.subr.mxu0 0.0
    %1093 = vmatpush1.msra.mxu0 0.0
    %1094 = vmatprep.subr.mxu0 %v210
    %1095 = vmatpush1.msra.mxu0 %v209
    %1096 = vmatprep.subr.mxu0 %v208
    %1097 = vmatpush1.msra.mxu0 %v207
    %1098 = vmatprep.subr.mxu0 %v206
    %1099 = vmatpush1.msra.mxu0 %v205
    %1100 = vmatprep.subr.mxu0 %v204
    %1101 = vmatpush1.msra.mxu0 %v203
    %1102 = vmatprep.subr.mxu0 %v202
    %1103 = vmatpush1.msra.mxu0 %v201
    %1104 = vmatprep.subr.mxu0 %v200
    %1105 = vmatpush1.msra.mxu0 %v199
    %1106 = vmatprep.subr.mxu0 %v198
    %1107 = vmatpush1.msra.mxu0 %v197
    %1108 = vmatprep.subr.mxu0 %v196
    %1109 = vmatpush1.msra.mxu0 %v195
    %1110 = vmatprep.subr.mxu0 0.0
    %1111 = vmatpush2.msra.mxu0 0.0
    %1112 = vmatprep.subr.mxu0 0.0
    %1113 = vmatpush2.msra.mxu0 0.0
    %1114 = vmatprep.subr.mxu0 0.0
    %1115 = vmatpush2.msra.mxu0 0.0
    %1116 = vmatprep.subr.mxu0 0.0
    %1117 = vmatpush2.msra.mxu0 0.0
    %1118 = vmatprep.subr.mxu0 0.0
    %1119 = vmatpush2.msra.mxu0 0.0
    %1120 = vmatprep.subr.mxu0 0.0
    %1121 = vmatpush2.msra.mxu0 0.0
    %1122 = vmatprep.subr.mxu0 0.0
    %1123 = vmatpush2.msra.mxu0 0.0
    %1124 = vmatprep.subr.mxu0 0.0
    %1125 = vmatpush2.msra.mxu0 0.0
    %1126 = vmatprep.subr.mxu0 0.0
    %1127 = vmatpush2.msra.mxu0 0.0
    %1128 = vmatprep.subr.mxu0 0.0
    %1129 = vmatpush2.msra.mxu0 0.0
    %1130 = vmatprep.subr.mxu0 0.0
    %1131 = vmatpush2.msra.mxu0 0.0
    %1132 = vmatprep.subr.mxu0 0.0
    %1133 = vmatpush2.msra.mxu0 0.0
    %1134 = vmatprep.subr.mxu0 0.0
    %1135 = vmatpush2.msra.mxu0 0.0
    %1136 = vmatprep.subr.mxu0 0.0
    %1137 = vmatpush2.msra.mxu0 0.0
    %1138 = vmatprep.subr.mxu0 0.0
    %1139 = vmatpush2.msra.mxu0 0.0
    %1140 = vmatprep.subr.mxu0 0.0
    %1141 = vmatpush2.msra.mxu0 0.0
    %1142 = vmatprep.mubr.f32.mxu0 0.0
    %1143 = vmatmul.mubr.f32.gmra.mxu0 %v1076
    %v1144 = vpop.f32.mrf.mxu0
    %v1145 = vadd.f32 0.0, %v1144
    %v1146 = vpop.f32.mrf.mxu0
    %v1147 = vadd.f32 0.0, %v1146
    %1148 = vdwg.mxu0
    %v1149 = vadd.f32 %v592, %v1145
    %v1150 = vadd.f32 %v593, %v1147
    %v1151 = vxor.u32 %v1149, 2147483648
    %v1152 = vxor.u32 %v1150, 2147483648
    %v1153 = vmul.f32 %v1151, 1.442695
    %v1154 = vpow.pop %v1153
    %v1155 = vmul.f32 %v1152, 1.442695
    %v1156 = vpow.pop %v1155
    %v1157 = vadd.f32 %v1154, 1.0
    %v1158 = vadd.f32 %v1156, 1.0
    %v1159 = vrcp.pop %v1157
    %v1160 = vmul.f32 1.0, %v1159
    %v1161 = vrcp.pop %v1158
    %v1162 = vmul.f32 1.0, %v1161
    %v1163 = vtanh.pop %v1150
    %v1165 = vrot.slane %v1063, 1
    %v1167 = vmul.f32 %v1160, %v1165
    %1169 = vrot.lane.b32.xlu0 %v1163, 64
    %v1170 = vpop.permute.xlu0 %1169
    %v1172 = vmul.f32 %v1160, %v1170
    %1174 = vrot.lane.b32.xlu0 %v1172, 64
    %v1175 = vpop.permute.xlu0 %1174
    %v1177 = vadd.f32 %v1167, %v1175
    %v1178 = vtanh.pop %v1177
    %1180 = vrot.lane.b32.xlu0 %v1178, 64
    %v1181 = vpop.permute.xlu0 %1180
    %v1183 = vmul.f32 %v1162, %v1181
    %vm1184 = vcmask 253952
    %1185 = vst.msk [vmem:[#allocation2 + $0x7] sm:$0x1] %vm1184, %v1183
    %vm1186 = vcmask 516352
    %1187 = vst.msk [vmem:[#allocation2] sm:$0x1] %vm1186, %v1183
    %v1188 = vld [vmem:[#allocation2] sm:$0xff]
    %v1189 = vld [vmem:[#allocation7] sm:$0xff]
    %v1190 = vld [vmem:[#allocation7 + $0x8] sm:$0xff]
    %v1191 = vld [vmem:[#allocation7 + $0x10] sm:$0xff]
    %v1192 = vld [vmem:[#allocation7 + $0x18] sm:$0xff]
    %v1193 = vld [vmem:[#allocation7 + $0x20] sm:$0xff]
    %v1194 = vld [vmem:[#allocation7 + $0x28] sm:$0xff]
    %v1195 = vld [vmem:[#allocation7 + $0x30] sm:$0xff]
    %v1196 = vld [vmem:[#allocation7 + $0x38] sm:$0xff]
    %v1197 = vld [vmem:[#allocation7 + $0x40] sm:$0xff]
    %v1198 = vld [vmem:[#allocation7 + $0x48] sm:$0xff]
    %v1199 = vld [vmem:[#allocation7 + $0x50] sm:$0xff]
    %v1200 = vld [vmem:[#allocation7 + $0x58] sm:$0xff]
    %v1201 = vld [vmem:[#allocation7 + $0x60] sm:$0xff]
    %v1202 = vld [vmem:[#allocation7 + $0x68] sm:$0xff]
    %v1203 = vld [vmem:[#allocation7 + $0x70] sm:$0xff]
    %v1204 = vld [vmem:[#allocation7 + $0x78] sm:$0xff]
    %v1205 = vld [vmem:[%s6] sm:$0x3]
    %v1207 = vlaneseq
    %v1208 = vshrl.u32 %v1207, 7
    %v1209 = vsub.s32 0, %v1208
    %v1210 = vrot.slane %v1205, %v1209
    %v1211 = vlaneseq
    %v1212 = vshrl.u32 %v1211, 7
    %v1213 = vsub.s32 1, %v1212
    %v1214 = vrot.slane %v1205, %v1213
    %v1218 = vsel %vm219, %v1188, 0
    %1220 = vmatprep.subr.mxu0 0.0
    %1221 = vmatpush1.msra.mxu0 0.0
    %1222 = vmatprep.subr.mxu0 0.0
    %1223 = vmatpush1.msra.mxu0 0.0
    %1224 = vmatprep.subr.mxu0 0.0
    %1225 = vmatpush1.msra.mxu0 0.0
    %1226 = vmatprep.subr.mxu0 0.0
    %1227 = vmatpush1.msra.mxu0 0.0
    %1228 = vmatprep.subr.mxu0 0.0
    %1229 = vmatpush1.msra.mxu0 0.0
    %1230 = vmatprep.subr.mxu0 0.0
    %1231 = vmatpush1.msra.mxu0 0.0
    %1232 = vmatprep.subr.mxu0 0.0
    %1233 = vmatpush1.msra.mxu0 0.0
    %1234 = vmatprep.subr.mxu0 0.0
    %1235 = vmatpush1.msra.mxu0 0.0
    %1236 = vmatprep.subr.mxu0 %v1204
    %1237 = vmatpush1.msra.mxu0 %v1203
    %1238 = vmatprep.subr.mxu0 %v1202
    %1239 = vmatpush1.msra.mxu0 %v1201
    %1240 = vmatprep.subr.mxu0 %v1200
    %1241 = vmatpush1.msra.mxu0 %v1199
    %1242 = vmatprep.subr.mxu0 %v1198
    %1243 = vmatpush1.msra.mxu0 %v1197
    %1244 = vmatprep.subr.mxu0 %v1196
    %1245 = vmatpush1.msra.mxu0 %v1195
    %1246 = vmatprep.subr.mxu0 %v1194
    %1247 = vmatpush1.msra.mxu0 %v1193
    %1248 = vmatprep.subr.mxu0 %v1192
    %1249 = vmatpush1.msra.mxu0 %v1191
    %1250 = vmatprep.subr.mxu0 %v1190
    %1251 = vmatpush1.msra.mxu0 %v1189
    %1252 = vmatprep.subr.mxu0 0.0
    %1253 = vmatpush2.msra.mxu0 0.0
    %1254 = vmatprep.subr.mxu0 0.0
    %1255 = vmatpush2.msra.mxu0 0.0
    %1256 = vmatprep.subr.mxu0 0.0
    %1257 = vmatpush2.msra.mxu0 0.0
    %1258 = vmatprep.subr.mxu0 0.0
    %1259 = vmatpush2.msra.mxu0 0.0
    %1260 = vmatprep.subr.mxu0 0.0
    %1261 = vmatpush2.msra.mxu0 0.0
    %1262 = vmatprep.subr.mxu0 0.0
    %1263 = vmatpush2.msra.mxu0 0.0
    %1264 = vmatprep.subr.mxu0 0.0
    %1265 = vmatpush2.msra.mxu0 0.0
    %1266 = vmatprep.subr.mxu0 0.0
    %1267 = vmatpush2.msra.mxu0 0.0
    %1268 = vmatprep.subr.mxu0 0.0
    %1269 = vmatpush2.msra.mxu0 0.0
    %1270 = vmatprep.subr.mxu0 0.0
    %1271 = vmatpush2.msra.mxu0 0.0
    %1272 = vmatprep.subr.mxu0 0.0
    %1273 = vmatpush2.msra.mxu0 0.0
    %1274 = vmatprep.subr.mxu0 0.0
    %1275 = vmatpush2.msra.mxu0 0.0
    %1276 = vmatprep.subr.mxu0 0.0
    %1277 = vmatpush2.msra.mxu0 0.0
    %1278 = vmatprep.subr.mxu0 0.0
    %1279 = vmatpush2.msra.mxu0 0.0
    %1280 = vmatprep.subr.mxu0 0.0
    %1281 = vmatpush2.msra.mxu0 0.0
    %1282 = vmatprep.subr.mxu0 0.0
    %1283 = vmatpush2.msra.mxu0 0.0
    %1284 = vmatprep.mubr.f32.mxu0 0.0
    %1285 = vmatmul.mubr.f32.gmra.mxu0 %v1218
    %v1286 = vpop.f32.mrf.mxu0
    %v1287 = vadd.f32 %v1210, %v1286
    %v1288 = vpop.f32.mrf.mxu0
    %v1289 = vadd.f32 %v1214, %v1288
    %1290 = vdwg.mxu0
    %v1291 = vld [vmem:[#allocation9] sm:$0xff]
    %v1292 = vld [vmem:[#allocation9 + $0x8] sm:$0xff]
    %v1293 = vld [vmem:[#allocation9 + $0x10] sm:$0xff]
    %v1294 = vld [vmem:[#allocation9 + $0x18] sm:$0xff]
    %v1295 = vld [vmem:[#allocation9 + $0x20] sm:$0xff]
    %v1296 = vld [vmem:[#allocation9 + $0x28] sm:$0xff]
    %v1297 = vld [vmem:[#allocation9 + $0x30] sm:$0xff]
    %v1298 = vld [vmem:[#allocation9 + $0x38] sm:$0xff]
    %v1299 = vld [vmem:[#allocation9 + $0x40] sm:$0xff]
    %v1300 = vld [vmem:[#allocation9 + $0x48] sm:$0xff]
    %v1301 = vld [vmem:[#allocation9 + $0x50] sm:$0xff]
    %v1302 = vld [vmem:[#allocation9 + $0x58] sm:$0xff]
    %v1303 = vld [vmem:[#allocation9 + $0x60] sm:$0xff]
    %v1304 = vld [vmem:[#allocation9 + $0x68] sm:$0xff]
    %v1305 = vld [vmem:[#allocation9 + $0x70] sm:$0xff]
    %v1306 = vld [vmem:[#allocation9 + $0x78] sm:$0xff]
    %v1309 = vrot.slane %v1287, 1
    %v1310 = vrot.slane %v1289, 1
    %v1313 = vsel %vm101, %v1287, %v1309
    %v1314 = vsel %vm102, %v1289, %v1310
    %1315 = vmatprep.subr.mxu0 0.0
    %1316 = vmatpush1.msra.mxu0 0.0
    %1317 = vmatprep.subr.mxu0 0.0
    %1318 = vmatpush1.msra.mxu0 0.0
    %1319 = vmatprep.subr.mxu0 0.0
    %1320 = vmatpush1.msra.mxu0 0.0
    %1321 = vmatprep.subr.mxu0 0.0
    %1322 = vmatpush1.msra.mxu0 0.0
    %1323 = vmatprep.subr.mxu0 0.0
    %1324 = vmatpush1.msra.mxu0 0.0
    %1325 = vmatprep.subr.mxu0 0.0
    %1326 = vmatpush1.msra.mxu0 0.0
    %1327 = vmatprep.subr.mxu0 0.0
    %1328 = vmatpush1.msra.mxu0 0.0
    %1329 = vmatprep.subr.mxu0 0.0
    %1330 = vmatpush1.msra.mxu0 0.0
    %1331 = vmatprep.subr.mxu0 %v1306
    %1332 = vmatpush1.msra.mxu0 %v1305
    %1333 = vmatprep.subr.mxu0 %v1304
    %1334 = vmatpush1.msra.mxu0 %v1303
    %1335 = vmatprep.subr.mxu0 %v1302
    %1336 = vmatpush1.msra.mxu0 %v1301
    %1337 = vmatprep.subr.mxu0 %v1300
    %1338 = vmatpush1.msra.mxu0 %v1299
    %1339 = vmatprep.subr.mxu0 %v1298
    %1340 = vmatpush1.msra.mxu0 %v1297
    %1341 = vmatprep.subr.mxu0 %v1296
    %1342 = vmatpush1.msra.mxu0 %v1295
    %1343 = vmatprep.subr.mxu0 %v1294
    %1344 = vmatpush1.msra.mxu0 %v1293
    %1345 = vmatprep.subr.mxu0 %v1292
    %1346 = vmatpush1.msra.mxu0 %v1291
    %1347 = vmatprep.subr.mxu0 0.0
    %1348 = vmatpush2.msra.mxu0 0.0
    %1349 = vmatprep.subr.mxu0 0.0
    %1350 = vmatpush2.msra.mxu0 0.0
    %1351 = vmatprep.subr.mxu0 0.0
    %1352 = vmatpush2.msra.mxu0 0.0
    %1353 = vmatprep.subr.mxu0 0.0
    %1354 = vmatpush2.msra.mxu0 0.0
    %1355 = vmatprep.subr.mxu0 0.0
    %1356 = vmatpush2.msra.mxu0 0.0
    %1357 = vmatprep.subr.mxu0 0.0
    %1358 = vmatpush2.msra.mxu0 0.0
    %1359 = vmatprep.subr.mxu0 0.0
    %1360 = vmatpush2.msra.mxu0 0.0
    %1361 = vmatprep.subr.mxu0 0.0
    %1362 = vmatpush2.msra.mxu0 0.0
    %1363 = vmatprep.subr.mxu0 0.0
    %1364 = vmatpush2.msra.mxu0 0.0
    %1365 = vmatprep.subr.mxu0 0.0
    %1366 = vmatpush2.msra.mxu0 0.0
    %1367 = vmatprep.subr.mxu0 0.0
    %1368 = vmatpush2.msra.mxu0 0.0
    %1369 = vmatprep.subr.mxu0 0.0
    %1370 = vmatpush2.msra.mxu0 0.0
    %1371 = vmatprep.subr.mxu0 0.0
    %1372 = vmatpush2.msra.mxu0 0.0
    %1373 = vmatprep.subr.mxu0 0.0
    %1374 = vmatpush2.msra.mxu0 0.0
    %1375 = vmatprep.subr.mxu0 0.0
    %1376 = vmatpush2.msra.mxu0 0.0
    %1377 = vmatprep.subr.mxu0 0.0
    %1378 = vmatpush2.msra.mxu0 0.0
    %1379 = vmatprep.mubr.f32.mxu0 0.0
    %1380 = vmatmul.mubr.f32.gmra.mxu0 %v221
    %v1381 = vpop.f32.mrf.mxu0
    %v1382 = vadd.f32 0.0, %v1381
    %v1383 = vpop.f32.mrf.mxu0
    %v1384 = vadd.f32 0.0, %v1383
    %1385 = vdwg.mxu0
    %v1388 = vrot.slane %v1382, 1
    %v1389 = vrot.slane %v1384, 1
    %v1392 = vadd.f32 %v1313, %v1388
    %v1393 = vadd.f32 %v1314, %v1389
    %v1394 = vxor.u32 %v1392, 2147483648
    %v1395 = vxor.u32 %v1393, 2147483648
    %v1396 = vmul.f32 %v1394, 1.442695
    %v1397 = vpow.pop %v1396
    %v1398 = vmul.f32 %v1395, 1.442695
    %v1399 = vpow.pop %v1398
    %v1400 = vadd.f32 %v1397, 1.0
    %v1401 = vadd.f32 %v1399, 1.0
    %v1402 = vrcp.pop %v1400
    %v1403 = vmul.f32 1.0, %v1402
    %v1404 = vrcp.pop %v1401
    %v1405 = vmul.f32 1.0, %v1404
    %v1406 = vtanh.pop %v1393
    %v1407 = vmul.f32 %v1403, 0.0
    %1409 = vrot.lane.b32.xlu0 %v1406, 64
    %v1410 = vpop.permute.xlu0 %1409
    %v1412 = vmul.f32 %v1403, %v1410
    %1414 = vrot.lane.b32.xlu0 %v1412, 64
    %v1415 = vpop.permute.xlu0 %1414
    %v1417 = vadd.f32 %v1407, %v1415
    %v1418 = vtanh.pop %v1417
    %1420 = vrot.lane.b32.xlu0 %v1418, 64
    %v1421 = vpop.permute.xlu0 %1420
    %v1423 = vmul.f32 %v1405, %v1421
    %1424 = vst.msk [vmem:[#allocation3 - $0x7] sm:$0x80] %vm332, %v1423
    %1425 = vst.msk [vmem:[#allocation3] sm:$0x80] %vm334, %v1423
    %v1426 = vrot.slane %v1287, 3
    %v1427 = vrot.slane %v1289, 3
    %v1430 = vsel %vm101, %v1287, %v1426
    %v1431 = vsel %vm102, %v1289, %v1427
    %v1433 = vrot.slane %v1423, 7
    %v1434 = vsel %vm219, %v1433, 0
    %1436 = vmatprep.subr.mxu0 0.0
    %1437 = vmatpush1.msra.mxu0 0.0
    %1438 = vmatprep.subr.mxu0 0.0
    %1439 = vmatpush1.msra.mxu0 0.0
    %1440 = vmatprep.subr.mxu0 0.0
    %1441 = vmatpush1.msra.mxu0 0.0
    %1442 = vmatprep.subr.mxu0 0.0
    %1443 = vmatpush1.msra.mxu0 0.0
    %1444 = vmatprep.subr.mxu0 0.0
    %1445 = vmatpush1.msra.mxu0 0.0
    %1446 = vmatprep.subr.mxu0 0.0
    %1447 = vmatpush1.msra.mxu0 0.0
    %1448 = vmatprep.subr.mxu0 0.0
    %1449 = vmatpush1.msra.mxu0 0.0
    %1450 = vmatprep.subr.mxu0 0.0
    %1451 = vmatpush1.msra.mxu0 0.0
    %1452 = vmatprep.subr.mxu0 %v1306
    %1453 = vmatpush1.msra.mxu0 %v1305
    %1454 = vmatprep.subr.mxu0 %v1304
    %1455 = vmatpush1.msra.mxu0 %v1303
    %1456 = vmatprep.subr.mxu0 %v1302
    %1457 = vmatpush1.msra.mxu0 %v1301
    %1458 = vmatprep.subr.mxu0 %v1300
    %1459 = vmatpush1.msra.mxu0 %v1299
    %1460 = vmatprep.subr.mxu0 %v1298
    %1461 = vmatpush1.msra.mxu0 %v1297
    %1462 = vmatprep.subr.mxu0 %v1296
    %1463 = vmatpush1.msra.mxu0 %v1295
    %1464 = vmatprep.subr.mxu0 %v1294
    %1465 = vmatpush1.msra.mxu0 %v1293
    %1466 = vmatprep.subr.mxu0 %v1292
    %1467 = vmatpush1.msra.mxu0 %v1291
    %1468 = vmatprep.subr.mxu0 0.0
    %1469 = vmatpush2.msra.mxu0 0.0
    %1470 = vmatprep.subr.mxu0 0.0
    %1471 = vmatpush2.msra.mxu0 0.0
    %1472 = vmatprep.subr.mxu0 0.0
    %1473 = vmatpush2.msra.mxu0 0.0
    %1474 = vmatprep.subr.mxu0 0.0
    %1475 = vmatpush2.msra.mxu0 0.0
    %1476 = vmatprep.subr.mxu0 0.0
    %1477 = vmatpush2.msra.mxu0 0.0
    %1478 = vmatprep.subr.mxu0 0.0
    %1479 = vmatpush2.msra.mxu0 0.0
    %1480 = vmatprep.subr.mxu0 0.0
    %1481 = vmatpush2.msra.mxu0 0.0
    %1482 = vmatprep.subr.mxu0 0.0
    %1483 = vmatpush2.msra.mxu0 0.0
    %1484 = vmatprep.subr.mxu0 0.0
    %1485 = vmatpush2.msra.mxu0 0.0
    %1486 = vmatprep.subr.mxu0 0.0
    %1487 = vmatpush2.msra.mxu0 0.0
    %1488 = vmatprep.subr.mxu0 0.0
    %1489 = vmatpush2.msra.mxu0 0.0
    %1490 = vmatprep.subr.mxu0 0.0
    %1491 = vmatpush2.msra.mxu0 0.0
    %1492 = vmatprep.subr.mxu0 0.0
    %1493 = vmatpush2.msra.mxu0 0.0
    %1494 = vmatprep.subr.mxu0 0.0
    %1495 = vmatpush2.msra.mxu0 0.0
    %1496 = vmatprep.subr.mxu0 0.0
    %1497 = vmatpush2.msra.mxu0 0.0
    %1498 = vmatprep.subr.mxu0 0.0
    %1499 = vmatpush2.msra.mxu0 0.0
    %1500 = vmatprep.mubr.f32.mxu0 0.0
    %1501 = vmatmul.mubr.f32.gmra.mxu0 %v1434
    %v1502 = vpop.f32.mrf.mxu0
    %v1503 = vadd.f32 0.0, %v1502
    %v1504 = vpop.f32.mrf.mxu0
    %v1505 = vadd.f32 0.0, %v1504
    %1506 = vdwg.mxu0
    %v1509 = vrot.slane %v1503, 2
    %v1510 = vrot.slane %v1505, 2
    %v1513 = vadd.f32 %v1430, %v1509
    %v1514 = vadd.f32 %v1431, %v1510
    %v1515 = vxor.u32 %v1513, 2147483648
    %v1516 = vxor.u32 %v1514, 2147483648
    %v1517 = vmul.f32 %v1515, 1.442695
    %v1518 = vpow.pop %v1517
    %v1519 = vmul.f32 %v1516, 1.442695
    %v1520 = vpow.pop %v1519
    %v1521 = vadd.f32 %v1518, 1.0
    %v1522 = vadd.f32 %v1520, 1.0
    %v1523 = vrcp.pop %v1521
    %v1524 = vmul.f32 1.0, %v1523
    %v1525 = vrcp.pop %v1522
    %v1526 = vmul.f32 1.0, %v1525
    %v1527 = vtanh.pop %v1514
    %v1529 = vrot.slane %v1417, 1
    %v1531 = vmul.f32 %v1524, %v1529
    %1533 = vrot.lane.b32.xlu0 %v1527, 64
    %v1534 = vpop.permute.xlu0 %1533
    %v1536 = vmul.f32 %v1524, %v1534
    %1538 = vrot.lane.b32.xlu0 %v1536, 64
    %v1539 = vpop.permute.xlu0 %1538
    %v1541 = vadd.f32 %v1531, %v1539
    %v1542 = vtanh.pop %v1541
    %1544 = vrot.lane.b32.xlu0 %v1542, 64
    %v1545 = vpop.permute.xlu0 %1544
    %v1547 = vmul.f32 %v1526, %v1545
    %1548 = vst.msk [vmem:[#allocation3 - $0x5] sm:$0x40] %vm458, %v1547
    %1549 = vst.msk [vmem:[#allocation3] sm:$0x40] %vm460, %v1547
    %v1550 = vrot.slane %v1287, 5
    %v1551 = vrot.slane %v1289, 5
    %v1554 = vsel %vm101, %v1287, %v1550
    %v1555 = vsel %vm102, %v1289, %v1551
    %v1557 = vrot.slane %v1547, 6
    %v1558 = vsel %vm219, %v1557, 0
    %1560 = vmatprep.subr.mxu0 0.0
    %1561 = vmatpush1.msra.mxu0 0.0
    %1562 = vmatprep.subr.mxu0 0.0
    %1563 = vmatpush1.msra.mxu0 0.0
    %1564 = vmatprep.subr.mxu0 0.0
    %1565 = vmatpush1.msra.mxu0 0.0
    %1566 = vmatprep.subr.mxu0 0.0
    %1567 = vmatpush1.msra.mxu0 0.0
    %1568 = vmatprep.subr.mxu0 0.0
    %1569 = vmatpush1.msra.mxu0 0.0
    %1570 = vmatprep.subr.mxu0 0.0
    %1571 = vmatpush1.msra.mxu0 0.0
    %1572 = vmatprep.subr.mxu0 0.0
    %1573 = vmatpush1.msra.mxu0 0.0
    %1574 = vmatprep.subr.mxu0 0.0
    %1575 = vmatpush1.msra.mxu0 0.0
    %1576 = vmatprep.subr.mxu0 %v1306
    %1577 = vmatpush1.msra.mxu0 %v1305
    %1578 = vmatprep.subr.mxu0 %v1304
    %1579 = vmatpush1.msra.mxu0 %v1303
    %1580 = vmatprep.subr.mxu0 %v1302
    %1581 = vmatpush1.msra.mxu0 %v1301
    %1582 = vmatprep.subr.mxu0 %v1300
    %1583 = vmatpush1.msra.mxu0 %v1299
    %1584 = vmatprep.subr.mxu0 %v1298
    %1585 = vmatpush1.msra.mxu0 %v1297
    %1586 = vmatprep.subr.mxu0 %v1296
    %1587 = vmatpush1.msra.mxu0 %v1295
    %1588 = vmatprep.subr.mxu0 %v1294
    %1589 = vmatpush1.msra.mxu0 %v1293
    %1590 = vmatprep.subr.mxu0 %v1292
    %1591 = vmatpush1.msra.mxu0 %v1291
    %1592 = vmatprep.subr.mxu0 0.0
    %1593 = vmatpush2.msra.mxu0 0.0
    %1594 = vmatprep.subr.mxu0 0.0
    %1595 = vmatpush2.msra.mxu0 0.0
    %1596 = vmatprep.subr.mxu0 0.0
    %1597 = vmatpush2.msra.mxu0 0.0
    %1598 = vmatprep.subr.mxu0 0.0
    %1599 = vmatpush2.msra.mxu0 0.0
    %1600 = vmatprep.subr.mxu0 0.0
    %1601 = vmatpush2.msra.mxu0 0.0
    %1602 = vmatprep.subr.mxu0 0.0
    %1603 = vmatpush2.msra.mxu0 0.0
    %1604 = vmatprep.subr.mxu0 0.0
    %1605 = vmatpush2.msra.mxu0 0.0
    %1606 = vmatprep.subr.mxu0 0.0
    %1607 = vmatpush2.msra.mxu0 0.0
    %1608 = vmatprep.subr.mxu0 0.0
    %1609 = vmatpush2.msra.mxu0 0.0
    %1610 = vmatprep.subr.mxu0 0.0
    %1611 = vmatpush2.msra.mxu0 0.0
    %1612 = vmatprep.subr.mxu0 0.0
    %1613 = vmatpush2.msra.mxu0 0.0
    %1614 = vmatprep.subr.mxu0 0.0
    %1615 = vmatpush2.msra.mxu0 0.0
    %1616 = vmatprep.subr.mxu0 0.0
    %1617 = vmatpush2.msra.mxu0 0.0
    %1618 = vmatprep.subr.mxu0 0.0
    %1619 = vmatpush2.msra.mxu0 0.0
    %1620 = vmatprep.subr.mxu0 0.0
    %1621 = vmatpush2.msra.mxu0 0.0
    %1622 = vmatprep.subr.mxu0 0.0
    %1623 = vmatpush2.msra.mxu0 0.0
    %1624 = vmatprep.mubr.f32.mxu0 0.0
    %1625 = vmatmul.mubr.f32.gmra.mxu0 %v1558
    %v1626 = vpop.f32.mrf.mxu0
    %v1627 = vadd.f32 0.0, %v1626
    %v1628 = vpop.f32.mrf.mxu0
    %v1629 = vadd.f32 0.0, %v1628
    %1630 = vdwg.mxu0
    %v1633 = vrot.slane %v1627, 3
    %v1634 = vrot.slane %v1629, 3
    %v1637 = vadd.f32 %v1554, %v1633
    %v1638 = vadd.f32 %v1555, %v1634
    %v1639 = vxor.u32 %v1637, 2147483648
    %v1640 = vxor.u32 %v1638, 2147483648
    %v1641 = vmul.f32 %v1639, 1.442695
    %v1642 = vpow.pop %v1641
    %v1643 = vmul.f32 %v1640, 1.442695
    %v1644 = vpow.pop %v1643
    %v1645 = vadd.f32 %v1642, 1.0
    %v1646 = vadd.f32 %v1644, 1.0
    %v1647 = vrcp.pop %v1645
    %v1648 = vmul.f32 1.0, %v1647
    %v1649 = vrcp.pop %v1646
    %v1650 = vmul.f32 1.0, %v1649
    %v1651 = vtanh.pop %v1638
    %v1653 = vrot.slane %v1541, 1
    %v1655 = vmul.f32 %v1648, %v1653
    %1657 = vrot.lane.b32.xlu0 %v1651, 64
    %v1658 = vpop.permute.xlu0 %1657
    %v1660 = vmul.f32 %v1648, %v1658
    %1662 = vrot.lane.b32.xlu0 %v1660, 64
    %v1663 = vpop.permute.xlu0 %1662
    %v1665 = vadd.f32 %v1655, %v1663
    %v1666 = vtanh.pop %v1665
    %1668 = vrot.lane.b32.xlu0 %v1666, 64
    %v1669 = vpop.permute.xlu0 %1668
    %v1671 = vmul.f32 %v1650, %v1669
    %1672 = vst.msk [vmem:[#allocation3 - $0x3] sm:$0x20] %vm584, %v1671
    %1673 = vst.msk [vmem:[#allocation3] sm:$0x20] %vm586, %v1671
    %v1674 = vrot.slane %v1287, 7
    %v1675 = vrot.slane %v1289, 7
    %v1678 = vsel %vm101, %v1287, %v1674
    %v1679 = vsel %vm102, %v1289, %v1675
    %v1681 = vrot.slane %v1671, 5
    %v1682 = vsel %vm219, %v1681, 0
    %1684 = vmatprep.subr.mxu0 0.0
    %1685 = vmatpush1.msra.mxu0 0.0
    %1686 = vmatprep.subr.mxu0 0.0
    %1687 = vmatpush1.msra.mxu0 0.0
    %1688 = vmatprep.subr.mxu0 0.0
    %1689 = vmatpush1.msra.mxu0 0.0
    %1690 = vmatprep.subr.mxu0 0.0
    %1691 = vmatpush1.msra.mxu0 0.0
    %1692 = vmatprep.subr.mxu0 0.0
    %1693 = vmatpush1.msra.mxu0 0.0
    %1694 = vmatprep.subr.mxu0 0.0
    %1695 = vmatpush1.msra.mxu0 0.0
    %1696 = vmatprep.subr.mxu0 0.0
    %1697 = vmatpush1.msra.mxu0 0.0
    %1698 = vmatprep.subr.mxu0 0.0
    %1699 = vmatpush1.msra.mxu0 0.0
    %1700 = vmatprep.subr.mxu0 %v1306
    %1701 = vmatpush1.msra.mxu0 %v1305
    %1702 = vmatprep.subr.mxu0 %v1304
    %1703 = vmatpush1.msra.mxu0 %v1303
    %1704 = vmatprep.subr.mxu0 %v1302
    %1705 = vmatpush1.msra.mxu0 %v1301
    %1706 = vmatprep.subr.mxu0 %v1300
    %1707 = vmatpush1.msra.mxu0 %v1299
    %1708 = vmatprep.subr.mxu0 %v1298
    %1709 = vmatpush1.msra.mxu0 %v1297
    %1710 = vmatprep.subr.mxu0 %v1296
    %1711 = vmatpush1.msra.mxu0 %v1295
    %1712 = vmatprep.subr.mxu0 %v1294
    %1713 = vmatpush1.msra.mxu0 %v1293
    %1714 = vmatprep.subr.mxu0 %v1292
    %1715 = vmatpush1.msra.mxu0 %v1291
    %1716 = vmatprep.subr.mxu0 0.0
    %1717 = vmatpush2.msra.mxu0 0.0
    %1718 = vmatprep.subr.mxu0 0.0
    %1719 = vmatpush2.msra.mxu0 0.0
    %1720 = vmatprep.subr.mxu0 0.0
    %1721 = vmatpush2.msra.mxu0 0.0
    %1722 = vmatprep.subr.mxu0 0.0
    %1723 = vmatpush2.msra.mxu0 0.0
    %1724 = vmatprep.subr.mxu0 0.0
    %1725 = vmatpush2.msra.mxu0 0.0
    %1726 = vmatprep.subr.mxu0 0.0
    %1727 = vmatpush2.msra.mxu0 0.0
    %1728 = vmatprep.subr.mxu0 0.0
    %1729 = vmatpush2.msra.mxu0 0.0
    %1730 = vmatprep.subr.mxu0 0.0
    %1731 = vmatpush2.msra.mxu0 0.0
    %1732 = vmatprep.subr.mxu0 0.0
    %1733 = vmatpush2.msra.mxu0 0.0
    %1734 = vmatprep.subr.mxu0 0.0
    %1735 = vmatpush2.msra.mxu0 0.0
    %1736 = vmatprep.subr.mxu0 0.0
    %1737 = vmatpush2.msra.mxu0 0.0
    %1738 = vmatprep.subr.mxu0 0.0
    %1739 = vmatpush2.msra.mxu0 0.0
    %1740 = vmatprep.subr.mxu0 0.0
    %1741 = vmatpush2.msra.mxu0 0.0
    %1742 = vmatprep.subr.mxu0 0.0
    %1743 = vmatpush2.msra.mxu0 0.0
    %1744 = vmatprep.subr.mxu0 0.0
    %1745 = vmatpush2.msra.mxu0 0.0
    %1746 = vmatprep.subr.mxu0 0.0
    %1747 = vmatpush2.msra.mxu0 0.0
    %1748 = vmatprep.mubr.f32.mxu0 0.0
    %1749 = vmatmul.mubr.f32.gmra.mxu0 %v1682
    %v1750 = vpop.f32.mrf.mxu0
    %v1751 = vadd.f32 0.0, %v1750
    %v1752 = vpop.f32.mrf.mxu0
    %v1753 = vadd.f32 0.0, %v1752
    %1754 = vdwg.mxu0
    %v1757 = vrot.slane %v1751, 4
    %v1758 = vrot.slane %v1753, 4
    %v1761 = vadd.f32 %v1678, %v1757
    %v1762 = vadd.f32 %v1679, %v1758
    %v1763 = vxor.u32 %v1761, 2147483648
    %v1764 = vxor.u32 %v1762, 2147483648
    %v1765 = vmul.f32 %v1763, 1.442695
    %v1766 = vpow.pop %v1765
    %v1767 = vmul.f32 %v1764, 1.442695
    %v1768 = vpow.pop %v1767
    %v1769 = vadd.f32 %v1766, 1.0
    %v1770 = vadd.f32 %v1768, 1.0
    %v1771 = vrcp.pop %v1769
    %v1772 = vmul.f32 1.0, %v1771
    %v1773 = vrcp.pop %v1770
    %v1774 = vmul.f32 1.0, %v1773
    %v1775 = vtanh.pop %v1762
    %v1777 = vrot.slane %v1665, 1
    %v1779 = vmul.f32 %v1772, %v1777
    %1781 = vrot.lane.b32.xlu0 %v1775, 64
    %v1782 = vpop.permute.xlu0 %1781
    %v1784 = vmul.f32 %v1772, %v1782
    %1786 = vrot.lane.b32.xlu0 %v1784, 64
    %v1787 = vpop.permute.xlu0 %1786
    %v1789 = vadd.f32 %v1779, %v1787
    %v1790 = vtanh.pop %v1789
    %1792 = vrot.lane.b32.xlu0 %v1790, 64
    %v1793 = vpop.permute.xlu0 %1792
    %v1795 = vmul.f32 %v1774, %v1793
    %1796 = vst.msk [vmem:[#allocation3 - $0x1] sm:$0x10] %vm710, %v1795
    %1797 = vst.msk [vmem:[#allocation3] sm:$0x10] %vm712, %v1795
    %v1799 = vrot.slane %v1795, 4
    %v1800 = vsel %vm219, %v1799, 0
    %1802 = vmatprep.subr.mxu0 0.0
    %1803 = vmatpush1.msra.mxu0 0.0
    %1804 = vmatprep.subr.mxu0 0.0
    %1805 = vmatpush1.msra.mxu0 0.0
    %1806 = vmatprep.subr.mxu0 0.0
    %1807 = vmatpush1.msra.mxu0 0.0
    %1808 = vmatprep.subr.mxu0 0.0
    %1809 = vmatpush1.msra.mxu0 0.0
    %1810 = vmatprep.subr.mxu0 0.0
    %1811 = vmatpush1.msra.mxu0 0.0
    %1812 = vmatprep.subr.mxu0 0.0
    %1813 = vmatpush1.msra.mxu0 0.0
    %1814 = vmatprep.subr.mxu0 0.0
    %1815 = vmatpush1.msra.mxu0 0.0
    %1816 = vmatprep.subr.mxu0 0.0
    %1817 = vmatpush1.msra.mxu0 0.0
    %1818 = vmatprep.subr.mxu0 %v1306
    %1819 = vmatpush1.msra.mxu0 %v1305
    %1820 = vmatprep.subr.mxu0 %v1304
    %1821 = vmatpush1.msra.mxu0 %v1303
    %1822 = vmatprep.subr.mxu0 %v1302
    %1823 = vmatpush1.msra.mxu0 %v1301
    %1824 = vmatprep.subr.mxu0 %v1300
    %1825 = vmatpush1.msra.mxu0 %v1299
    %1826 = vmatprep.subr.mxu0 %v1298
    %1827 = vmatpush1.msra.mxu0 %v1297
    %1828 = vmatprep.subr.mxu0 %v1296
    %1829 = vmatpush1.msra.mxu0 %v1295
    %1830 = vmatprep.subr.mxu0 %v1294
    %1831 = vmatpush1.msra.mxu0 %v1293
    %1832 = vmatprep.subr.mxu0 %v1292
    %1833 = vmatpush1.msra.mxu0 %v1291
    %1834 = vmatprep.subr.mxu0 0.0
    %1835 = vmatpush2.msra.mxu0 0.0
    %1836 = vmatprep.subr.mxu0 0.0
    %1837 = vmatpush2.msra.mxu0 0.0
    %1838 = vmatprep.subr.mxu0 0.0
    %1839 = vmatpush2.msra.mxu0 0.0
    %1840 = vmatprep.subr.mxu0 0.0
    %1841 = vmatpush2.msra.mxu0 0.0
    %1842 = vmatprep.subr.mxu0 0.0
    %1843 = vmatpush2.msra.mxu0 0.0
    %1844 = vmatprep.subr.mxu0 0.0
    %1845 = vmatpush2.msra.mxu0 0.0
    %1846 = vmatprep.subr.mxu0 0.0
    %1847 = vmatpush2.msra.mxu0 0.0
    %1848 = vmatprep.subr.mxu0 0.0
    %1849 = vmatpush2.msra.mxu0 0.0
    %1850 = vmatprep.subr.mxu0 0.0
    %1851 = vmatpush2.msra.mxu0 0.0
    %1852 = vmatprep.subr.mxu0 0.0
    %1853 = vmatpush2.msra.mxu0 0.0
    %1854 = vmatprep.subr.mxu0 0.0
    %1855 = vmatpush2.msra.mxu0 0.0
    %1856 = vmatprep.subr.mxu0 0.0
    %1857 = vmatpush2.msra.mxu0 0.0
    %1858 = vmatprep.subr.mxu0 0.0
    %1859 = vmatpush2.msra.mxu0 0.0
    %1860 = vmatprep.subr.mxu0 0.0
    %1861 = vmatpush2.msra.mxu0 0.0
    %1862 = vmatprep.subr.mxu0 0.0
    %1863 = vmatpush2.msra.mxu0 0.0
    %1864 = vmatprep.subr.mxu0 0.0
    %1865 = vmatpush2.msra.mxu0 0.0
    %1866 = vmatprep.mubr.f32.mxu0 0.0
    %1867 = vmatmul.mubr.f32.gmra.mxu0 %v1800
    %v1868 = vpop.f32.mrf.mxu0
    %v1869 = vadd.f32 0.0, %v1868
    %v1870 = vpop.f32.mrf.mxu0
    %v1871 = vadd.f32 0.0, %v1870
    %1872 = vdwg.mxu0
    %v1875 = vrot.slane %v1869, 5
    %v1876 = vrot.slane %v1871, 5
    %v1879 = vadd.f32 %v1313, %v1875
    %v1880 = vadd.f32 %v1314, %v1876
    %v1881 = vxor.u32 %v1879, 2147483648
    %v1882 = vxor.u32 %v1880, 2147483648
    %v1883 = vmul.f32 %v1881, 1.442695
    %v1884 = vpow.pop %v1883
    %v1885 = vmul.f32 %v1882, 1.442695
    %v1886 = vpow.pop %v1885
    %v1887 = vadd.f32 %v1884, 1.0
    %v1888 = vadd.f32 %v1886, 1.0
    %v1889 = vrcp.pop %v1887
    %v1890 = vmul.f32 1.0, %v1889
    %v1891 = vrcp.pop %v1888
    %v1892 = vmul.f32 1.0, %v1891
    %v1893 = vtanh.pop %v1880
    %v1895 = vrot.slane %v1789, 1
    %v1897 = vmul.f32 %v1890, %v1895
    %1899 = vrot.lane.b32.xlu0 %v1893, 64
    %v1900 = vpop.permute.xlu0 %1899
    %v1902 = vmul.f32 %v1890, %v1900
    %1904 = vrot.lane.b32.xlu0 %v1902, 64
    %v1905 = vpop.permute.xlu0 %1904
    %v1907 = vadd.f32 %v1897, %v1905
    %v1908 = vtanh.pop %v1907
    %1910 = vrot.lane.b32.xlu0 %v1908, 64
    %v1911 = vpop.permute.xlu0 %1910
    %v1913 = vmul.f32 %v1892, %v1911
    %1914 = vst.msk [vmem:[#allocation3 + $0x1] sm:$0x8] %vm830, %v1913
    %1915 = vst.msk [vmem:[#allocation3] sm:$0x8] %vm832, %v1913
    %v1917 = vrot.slane %v1913, 3
    %v1918 = vsel %vm219, %v1917, 0
    %1920 = vmatprep.subr.mxu0 0.0
    %1921 = vmatpush1.msra.mxu0 0.0
    %1922 = vmatprep.subr.mxu0 0.0
    %1923 = vmatpush1.msra.mxu0 0.0
    %1924 = vmatprep.subr.mxu0 0.0
    %1925 = vmatpush1.msra.mxu0 0.0
    %1926 = vmatprep.subr.mxu0 0.0
    %1927 = vmatpush1.msra.mxu0 0.0
    %1928 = vmatprep.subr.mxu0 0.0
    %1929 = vmatpush1.msra.mxu0 0.0
    %1930 = vmatprep.subr.mxu0 0.0
    %1931 = vmatpush1.msra.mxu0 0.0
    %1932 = vmatprep.subr.mxu0 0.0
    %1933 = vmatpush1.msra.mxu0 0.0
    %1934 = vmatprep.subr.mxu0 0.0
    %1935 = vmatpush1.msra.mxu0 0.0
    %1936 = vmatprep.subr.mxu0 %v1306
    %1937 = vmatpush1.msra.mxu0 %v1305
    %1938 = vmatprep.subr.mxu0 %v1304
    %1939 = vmatpush1.msra.mxu0 %v1303
    %1940 = vmatprep.subr.mxu0 %v1302
    %1941 = vmatpush1.msra.mxu0 %v1301
    %1942 = vmatprep.subr.mxu0 %v1300
    %1943 = vmatpush1.msra.mxu0 %v1299
    %1944 = vmatprep.subr.mxu0 %v1298
    %1945 = vmatpush1.msra.mxu0 %v1297
    %1946 = vmatprep.subr.mxu0 %v1296
    %1947 = vmatpush1.msra.mxu0 %v1295
    %1948 = vmatprep.subr.mxu0 %v1294
    %1949 = vmatpush1.msra.mxu0 %v1293
    %1950 = vmatprep.subr.mxu0 %v1292
    %1951 = vmatpush1.msra.mxu0 %v1291
    %1952 = vmatprep.subr.mxu0 0.0
    %1953 = vmatpush2.msra.mxu0 0.0
    %1954 = vmatprep.subr.mxu0 0.0
    %1955 = vmatpush2.msra.mxu0 0.0
    %1956 = vmatprep.subr.mxu0 0.0
    %1957 = vmatpush2.msra.mxu0 0.0
    %1958 = vmatprep.subr.mxu0 0.0
    %1959 = vmatpush2.msra.mxu0 0.0
    %1960 = vmatprep.subr.mxu0 0.0
    %1961 = vmatpush2.msra.mxu0 0.0
    %1962 = vmatprep.subr.mxu0 0.0
    %1963 = vmatpush2.msra.mxu0 0.0
    %1964 = vmatprep.subr.mxu0 0.0
    %1965 = vmatpush2.msra.mxu0 0.0
    %1966 = vmatprep.subr.mxu0 0.0
    %1967 = vmatpush2.msra.mxu0 0.0
    %1968 = vmatprep.subr.mxu0 0.0
    %1969 = vmatpush2.msra.mxu0 0.0
    %1970 = vmatprep.subr.mxu0 0.0
    %1971 = vmatpush2.msra.mxu0 0.0
    %1972 = vmatprep.subr.mxu0 0.0
    %1973 = vmatpush2.msra.mxu0 0.0
    %1974 = vmatprep.subr.mxu0 0.0
    %1975 = vmatpush2.msra.mxu0 0.0
    %1976 = vmatprep.subr.mxu0 0.0
    %1977 = vmatpush2.msra.mxu0 0.0
    %1978 = vmatprep.subr.mxu0 0.0
    %1979 = vmatpush2.msra.mxu0 0.0
    %1980 = vmatprep.subr.mxu0 0.0
    %1981 = vmatpush2.msra.mxu0 0.0
    %1982 = vmatprep.subr.mxu0 0.0
    %1983 = vmatpush2.msra.mxu0 0.0
    %1984 = vmatprep.mubr.f32.mxu0 0.0
    %1985 = vmatmul.mubr.f32.gmra.mxu0 %v1918
    %v1986 = vpop.f32.mrf.mxu0
    %v1987 = vadd.f32 0.0, %v1986
    %v1988 = vpop.f32.mrf.mxu0
    %v1989 = vadd.f32 0.0, %v1988
    %1990 = vdwg.mxu0
    %v1993 = vrot.slane %v1987, 6
    %v1994 = vrot.slane %v1989, 6
    %v1997 = vadd.f32 %v1430, %v1993
    %v1998 = vadd.f32 %v1431, %v1994
    %v1999 = vxor.u32 %v1997, 2147483648
    %v2000 = vxor.u32 %v1998, 2147483648
    %v2001 = vmul.f32 %v1999, 1.442695
    %v2002 = vpow.pop %v2001
    %v2003 = vmul.f32 %v2000, 1.442695
    %v2004 = vpow.pop %v2003
    %v2005 = vadd.f32 %v2002, 1.0
    %v2006 = vadd.f32 %v2004, 1.0
    %v2007 = vrcp.pop %v2005
    %v2008 = vmul.f32 1.0, %v2007
    %v2009 = vrcp.pop %v2006
    %v2010 = vmul.f32 1.0, %v2009
    %v2011 = vtanh.pop %v1998
    %v2013 = vrot.slane %v1907, 1
    %v2015 = vmul.f32 %v2008, %v2013
    %2017 = vrot.lane.b32.xlu0 %v2011, 64
    %v2018 = vpop.permute.xlu0 %2017
    %v2020 = vmul.f32 %v2008, %v2018
    %2022 = vrot.lane.b32.xlu0 %v2020, 64
    %v2023 = vpop.permute.xlu0 %2022
    %v2025 = vadd.f32 %v2015, %v2023
    %v2026 = vtanh.pop %v2025
    %2028 = vrot.lane.b32.xlu0 %v2026, 64
    %v2029 = vpop.permute.xlu0 %2028
    %v2031 = vmul.f32 %v2010, %v2029
    %2032 = vst.msk [vmem:[#allocation3 + $0x3] sm:$0x4] %vm950, %v2031
    %2033 = vst.msk [vmem:[#allocation3] sm:$0x4] %vm952, %v2031
    %v2035 = vrot.slane %v2031, 2
    %v2036 = vsel %vm219, %v2035, 0
    %2038 = vmatprep.subr.mxu0 0.0
    %2039 = vmatpush1.msra.mxu0 0.0
    %2040 = vmatprep.subr.mxu0 0.0
    %2041 = vmatpush1.msra.mxu0 0.0
    %2042 = vmatprep.subr.mxu0 0.0
    %2043 = vmatpush1.msra.mxu0 0.0
    %2044 = vmatprep.subr.mxu0 0.0
    %2045 = vmatpush1.msra.mxu0 0.0
    %2046 = vmatprep.subr.mxu0 0.0
    %2047 = vmatpush1.msra.mxu0 0.0
    %2048 = vmatprep.subr.mxu0 0.0
    %2049 = vmatpush1.msra.mxu0 0.0
    %2050 = vmatprep.subr.mxu0 0.0
    %2051 = vmatpush1.msra.mxu0 0.0
    %2052 = vmatprep.subr.mxu0 0.0
    %2053 = vmatpush1.msra.mxu0 0.0
    %2054 = vmatprep.subr.mxu0 %v1306
    %2055 = vmatpush1.msra.mxu0 %v1305
    %2056 = vmatprep.subr.mxu0 %v1304
    %2057 = vmatpush1.msra.mxu0 %v1303
    %2058 = vmatprep.subr.mxu0 %v1302
    %2059 = vmatpush1.msra.mxu0 %v1301
    %2060 = vmatprep.subr.mxu0 %v1300
    %2061 = vmatpush1.msra.mxu0 %v1299
    %2062 = vmatprep.subr.mxu0 %v1298
    %2063 = vmatpush1.msra.mxu0 %v1297
    %2064 = vmatprep.subr.mxu0 %v1296
    %2065 = vmatpush1.msra.mxu0 %v1295
    %2066 = vmatprep.subr.mxu0 %v1294
    %2067 = vmatpush1.msra.mxu0 %v1293
    %2068 = vmatprep.subr.mxu0 %v1292
    %2069 = vmatpush1.msra.mxu0 %v1291
    %2070 = vmatprep.subr.mxu0 0.0
    %2071 = vmatpush2.msra.mxu0 0.0
    %2072 = vmatprep.subr.mxu0 0.0
    %2073 = vmatpush2.msra.mxu0 0.0
    %2074 = vmatprep.subr.mxu0 0.0
    %2075 = vmatpush2.msra.mxu0 0.0
    %2076 = vmatprep.subr.mxu0 0.0
    %2077 = vmatpush2.msra.mxu0 0.0
    %2078 = vmatprep.subr.mxu0 0.0
    %2079 = vmatpush2.msra.mxu0 0.0
    %2080 = vmatprep.subr.mxu0 0.0
    %2081 = vmatpush2.msra.mxu0 0.0
    %2082 = vmatprep.subr.mxu0 0.0
    %2083 = vmatpush2.msra.mxu0 0.0
    %2084 = vmatprep.subr.mxu0 0.0
    %2085 = vmatpush2.msra.mxu0 0.0
    %2086 = vmatprep.subr.mxu0 0.0
    %2087 = vmatpush2.msra.mxu0 0.0
    %2088 = vmatprep.subr.mxu0 0.0
    %2089 = vmatpush2.msra.mxu0 0.0
    %2090 = vmatprep.subr.mxu0 0.0
    %2091 = vmatpush2.msra.mxu0 0.0
    %2092 = vmatprep.subr.mxu0 0.0
    %2093 = vmatpush2.msra.mxu0 0.0
    %2094 = vmatprep.subr.mxu0 0.0
    %2095 = vmatpush2.msra.mxu0 0.0
    %2096 = vmatprep.subr.mxu0 0.0
    %2097 = vmatpush2.msra.mxu0 0.0
    %2098 = vmatprep.subr.mxu0 0.0
    %2099 = vmatpush2.msra.mxu0 0.0
    %2100 = vmatprep.subr.mxu0 0.0
    %2101 = vmatpush2.msra.mxu0 0.0
    %2102 = vmatprep.mubr.f32.mxu0 0.0
    %2103 = vmatmul.mubr.f32.gmra.mxu0 %v2036
    %v2104 = vpop.f32.mrf.mxu0
    %v2105 = vadd.f32 0.0, %v2104
    %v2106 = vpop.f32.mrf.mxu0
    %v2107 = vadd.f32 0.0, %v2106
    %2108 = vdwg.mxu0
    %v2111 = vrot.slane %v2105, 7
    %v2112 = vrot.slane %v2107, 7
    %v2115 = vadd.f32 %v1554, %v2111
    %v2116 = vadd.f32 %v1555, %v2112
    %v2117 = vxor.u32 %v2115, 2147483648
    %v2118 = vxor.u32 %v2116, 2147483648
    %v2119 = vmul.f32 %v2117, 1.442695
    %v2120 = vpow.pop %v2119
    %v2121 = vmul.f32 %v2118, 1.442695
    %v2122 = vpow.pop %v2121
    %v2123 = vadd.f32 %v2120, 1.0
    %v2124 = vadd.f32 %v2122, 1.0
    %v2125 = vrcp.pop %v2123
    %v2126 = vmul.f32 1.0, %v2125
    %v2127 = vrcp.pop %v2124
    %v2128 = vmul.f32 1.0, %v2127
    %v2129 = vtanh.pop %v2116
    %v2131 = vrot.slane %v2025, 1
    %v2133 = vmul.f32 %v2126, %v2131
    %2135 = vrot.lane.b32.xlu0 %v2129, 64
    %v2136 = vpop.permute.xlu0 %2135
    %v2138 = vmul.f32 %v2126, %v2136
    %2140 = vrot.lane.b32.xlu0 %v2138, 64
    %v2141 = vpop.permute.xlu0 %2140
    %v2143 = vadd.f32 %v2133, %v2141
    %v2144 = vtanh.pop %v2143
    %2146 = vrot.lane.b32.xlu0 %v2144, 64
    %v2147 = vpop.permute.xlu0 %2146
    %v2149 = vmul.f32 %v2128, %v2147
    %2150 = vst.msk [vmem:[#allocation3 + $0x5] sm:$0x2] %vm1070, %v2149
    %2151 = vst.msk [vmem:[#allocation3] sm:$0x2] %vm1072, %v2149
    %v2153 = vrot.slane %v2149, 1
    %v2154 = vsel %vm219, %v2153, 0
    %2156 = vmatprep.subr.mxu0 0.0
    %2157 = vmatpush1.msra.mxu0 0.0
    %2158 = vmatprep.subr.mxu0 0.0
    %2159 = vmatpush1.msra.mxu0 0.0
    %2160 = vmatprep.subr.mxu0 0.0
    %2161 = vmatpush1.msra.mxu0 0.0
    %2162 = vmatprep.subr.mxu0 0.0
    %2163 = vmatpush1.msra.mxu0 0.0
    %2164 = vmatprep.subr.mxu0 0.0
    %2165 = vmatpush1.msra.mxu0 0.0
    %2166 = vmatprep.subr.mxu0 0.0
    %2167 = vmatpush1.msra.mxu0 0.0
    %2168 = vmatprep.subr.mxu0 0.0
    %2169 = vmatpush1.msra.mxu0 0.0
    %2170 = vmatprep.subr.mxu0 0.0
    %2171 = vmatpush1.msra.mxu0 0.0
    %2172 = vmatprep.subr.mxu0 %v1306
    %2173 = vmatpush1.msra.mxu0 %v1305
    %2174 = vmatprep.subr.mxu0 %v1304
    %2175 = vmatpush1.msra.mxu0 %v1303
    %2176 = vmatprep.subr.mxu0 %v1302
    %2177 = vmatpush1.msra.mxu0 %v1301
    %2178 = vmatprep.subr.mxu0 %v1300
    %2179 = vmatpush1.msra.mxu0 %v1299
    %2180 = vmatprep.subr.mxu0 %v1298
    %2181 = vmatpush1.msra.mxu0 %v1297
    %2182 = vmatprep.subr.mxu0 %v1296
    %2183 = vmatpush1.msra.mxu0 %v1295
    %2184 = vmatprep.subr.mxu0 %v1294
    %2185 = vmatpush1.msra.mxu0 %v1293
    %2186 = vmatprep.subr.mxu0 %v1292
    %2187 = vmatpush1.msra.mxu0 %v1291
    %2188 = vmatprep.subr.mxu0 0.0
    %2189 = vmatpush2.msra.mxu0 0.0
    %2190 = vmatprep.subr.mxu0 0.0
    %2191 = vmatpush2.msra.mxu0 0.0
    %2192 = vmatprep.subr.mxu0 0.0
    %2193 = vmatpush2.msra.mxu0 0.0
    %2194 = vmatprep.subr.mxu0 0.0
    %2195 = vmatpush2.msra.mxu0 0.0
    %2196 = vmatprep.subr.mxu0 0.0
    %2197 = vmatpush2.msra.mxu0 0.0
    %2198 = vmatprep.subr.mxu0 0.0
    %2199 = vmatpush2.msra.mxu0 0.0
    %2200 = vmatprep.subr.mxu0 0.0
    %2201 = vmatpush2.msra.mxu0 0.0
    %2202 = vmatprep.subr.mxu0 0.0
    %2203 = vmatpush2.msra.mxu0 0.0
    %2204 = vmatprep.subr.mxu0 0.0
    %2205 = vmatpush2.msra.mxu0 0.0
    %2206 = vmatprep.subr.mxu0 0.0
    %2207 = vmatpush2.msra.mxu0 0.0
    %2208 = vmatprep.subr.mxu0 0.0
    %2209 = vmatpush2.msra.mxu0 0.0
    %2210 = vmatprep.subr.mxu0 0.0
    %2211 = vmatpush2.msra.mxu0 0.0
    %2212 = vmatprep.subr.mxu0 0.0
    %2213 = vmatpush2.msra.mxu0 0.0
    %2214 = vmatprep.subr.mxu0 0.0
    %2215 = vmatpush2.msra.mxu0 0.0
    %2216 = vmatprep.subr.mxu0 0.0
    %2217 = vmatpush2.msra.mxu0 0.0
    %2218 = vmatprep.subr.mxu0 0.0
    %2219 = vmatpush2.msra.mxu0 0.0
    %2220 = vmatprep.mubr.f32.mxu0 0.0
    %2221 = vmatmul.mubr.f32.gmra.mxu0 %v2154
    %v2222 = vpop.f32.mrf.mxu0
    %v2223 = vadd.f32 0.0, %v2222
    %v2224 = vpop.f32.mrf.mxu0
    %v2225 = vadd.f32 0.0, %v2224
    %2226 = vdwg.mxu0
    %v2227 = vadd.f32 %v1678, %v2223
    %v2228 = vadd.f32 %v1679, %v2225
    %v2229 = vxor.u32 %v2227, 2147483648
    %v2230 = vxor.u32 %v2228, 2147483648
    %v2231 = vmul.f32 %v2229, 1.442695
    %v2232 = vpow.pop %v2231
    %v2233 = vmul.f32 %v2230, 1.442695
    %v2234 = vpow.pop %v2233
    %v2235 = vadd.f32 %v2232, 1.0
    %v2236 = vadd.f32 %v2234, 1.0
    %v2237 = vrcp.pop %v2235
    %v2238 = vmul.f32 1.0, %v2237
    %v2239 = vrcp.pop %v2236
    %v2240 = vmul.f32 1.0, %v2239
    %v2241 = vtanh.pop %v2228
    %v2243 = vrot.slane %v2143, 1
    %v2245 = vmul.f32 %v2238, %v2243
    %2247 = vrot.lane.b32.xlu0 %v2241, 64
    %v2248 = vpop.permute.xlu0 %2247
    %v2250 = vmul.f32 %v2238, %v2248
    %2252 = vrot.lane.b32.xlu0 %v2250, 64
    %v2253 = vpop.permute.xlu0 %2252
    %v2255 = vadd.f32 %v2245, %v2253
    %v2256 = vtanh.pop %v2255
    %2258 = vrot.lane.b32.xlu0 %v2256, 64
    %v2259 = vpop.permute.xlu0 %2258
    %v2261 = vmul.f32 %v2240, %v2259
    %2262 = vst.msk [vmem:[#allocation3 + $0x7] sm:$0x1] %vm1184, %v2261
    %2263 = vst.msk [vmem:[#allocation3] sm:$0x1] %vm1186, %v2261
    %v2264 = vld [vmem:[#allocation3] sm:$0xff]
    %v2265 = vld [vmem:[%s7] sm:$0xff]
    %v2266 = vld [vmem:[%s7 + $0x8] sm:$0xff]
    %v2267 = vld [vmem:[%s7 + $0x10] sm:$0xff]
    %v2268 = vld [vmem:[%s7 + $0x18] sm:$0xff]
    %v2269 = vld [vmem:[%s7 + $0x20] sm:$0xff]
    %v2270 = vld [vmem:[%s7 + $0x28] sm:$0xff]
    %v2271 = vld [vmem:[%s7 + $0x30] sm:$0xff]
    %v2272 = vld [vmem:[%s7 + $0x38] sm:$0xff]
    %v2273 = vld [vmem:[%s8] sm:$0x1]
    %v2275 = vlaneseq
    %v2276 = vshrl.u32 %v2275, 7
    %v2277 = vsub.s32 0, %v2276
    %v2278 = vrot.slane %v2273, %v2277
    %v2281 = vsel %vm219, %v2264, 0
    %2283 = vmatprep.subr.mxu0 0.0
    %2284 = vmatpush1.msra.mxu0 0.0
    %2285 = vmatprep.subr.mxu0 0.0
    %2286 = vmatpush1.msra.mxu0 0.0
    %2287 = vmatprep.subr.mxu0 0.0
    %2288 = vmatpush1.msra.mxu0 0.0
    %2289 = vmatprep.subr.mxu0 0.0
    %2290 = vmatpush1.msra.mxu0 0.0
    %2291 = vmatprep.subr.mxu0 0.0
    %2292 = vmatpush1.msra.mxu0 0.0
    %2293 = vmatprep.subr.mxu0 0.0
    %2294 = vmatpush1.msra.mxu0 0.0
    %2295 = vmatprep.subr.mxu0 0.0
    %2296 = vmatpush1.msra.mxu0 0.0
    %2297 = vmatprep.subr.mxu0 0.0
    %2298 = vmatpush1.msra.mxu0 0.0
    %2299 = vmatprep.subr.mxu0 0.0
    %2300 = vmatpush1.msra.mxu0 %v2272
    %2301 = vmatprep.subr.mxu0 0.0
    %2302 = vmatpush1.msra.mxu0 %v2271
    %2303 = vmatprep.subr.mxu0 0.0
    %2304 = vmatpush1.msra.mxu0 %v2270
    %2305 = vmatprep.subr.mxu0 0.0
    %2306 = vmatpush1.msra.mxu0 %v2269
    %2307 = vmatprep.subr.mxu0 0.0
    %2308 = vmatpush1.msra.mxu0 %v2268
    %2309 = vmatprep.subr.mxu0 0.0
    %2310 = vmatpush1.msra.mxu0 %v2267
    %2311 = vmatprep.subr.mxu0 0.0
    %2312 = vmatpush1.msra.mxu0 %v2266
    %2313 = vmatprep.subr.mxu0 0.0
    %2314 = vmatpush1.msra.mxu0 %v2265
    %2315 = vmatprep.subr.mxu0 0.0
    %2316 = vmatpush2.msra.mxu0 0.0
    %2317 = vmatprep.subr.mxu0 0.0
    %2318 = vmatpush2.msra.mxu0 0.0
    %2319 = vmatprep.subr.mxu0 0.0
    %2320 = vmatpush2.msra.mxu0 0.0
    %2321 = vmatprep.subr.mxu0 0.0
    %2322 = vmatpush2.msra.mxu0 0.0
    %2323 = vmatprep.subr.mxu0 0.0
    %2324 = vmatpush2.msra.mxu0 0.0
    %2325 = vmatprep.subr.mxu0 0.0
    %2326 = vmatpush2.msra.mxu0 0.0
    %2327 = vmatprep.subr.mxu0 0.0
    %2328 = vmatpush2.msra.mxu0 0.0
    %2329 = vmatprep.subr.mxu0 0.0
    %2330 = vmatpush2.msra.mxu0 0.0
    %2331 = vmatprep.subr.mxu0 0.0
    %2332 = vmatpush2.msra.mxu0 0.0
    %2333 = vmatprep.subr.mxu0 0.0
    %2334 = vmatpush2.msra.mxu0 0.0
    %2335 = vmatprep.subr.mxu0 0.0
    %2336 = vmatpush2.msra.mxu0 0.0
    %2337 = vmatprep.subr.mxu0 0.0
    %2338 = vmatpush2.msra.mxu0 0.0
    %2339 = vmatprep.subr.mxu0 0.0
    %2340 = vmatpush2.msra.mxu0 0.0
    %2341 = vmatprep.subr.mxu0 0.0
    %2342 = vmatpush2.msra.mxu0 0.0
    %2343 = vmatprep.subr.mxu0 0.0
    %2344 = vmatpush2.msra.mxu0 0.0
    %2345 = vmatprep.subr.mxu0 0.0
    %2346 = vmatpush2.msra.mxu0 0.0
    %2347 = vmatprep.mubr.f32.mxu0 0.0
    %2348 = vmatmul.mubr.f32.gmra.mxu0 %v2281
    %v2349 = vpop.f32.mrf.mxu0
    %v2350 = vadd.f32 %v2278, %v2349
    %v2351 = vpop.f32.mrf.mxu0
    %2352 = vdwg.mxu0
    %vm2353 = vcmask 64512
    %2354 = vst.msk [vmem:[#allocation10] sm:$0xff] %vm2353, %v2350
    // Predicated region
    $region50: #{tpu_custom_call.1} parent=1 // pred_check
      _
    $region51: #{tpu_custom_call.1} parent=1 // pred_check_branch
      %2356 = sbr.rel (0) target = $region53
    $region52: #{tpu_custom_call.1} parent=1 // pred_region
      %s2358 = ssub.s32 128, 128
      %2359 = vsyncadd [#allocation6], %s2358
      %s2361 = sshll.u32 [#allocation10], 4
      %s2362 = int_to_ptr.vmem [resolvable:$true] %s2361
      %2364 = dma.vmem_to_hbm [thread:$0]  %s2362, 128, %s9, [#allocation6]
    $region53: #{tpu_custom_call.1} parent=1 // pred_fallthru
      _
    // Predicated region
    $region54: #{tpu_custom_call.1} parent=1 // pred_check
      _
    $region55: #{tpu_custom_call.1} parent=1 // pred_check_branch
      %2366 = sbr.rel (0) target = $region57
    $region56: #{tpu_custom_call.1} parent=1 // pred_region
      %2367 = dma.done [#allocation6], 128
    $region57: #{tpu_custom_call.1} parent=1 // pred_fallthru
      _
    %2368 = vsyncpa [#allocation5], 1
    %2369 = vsyncpa [#allocation8], 1
    %2370 = vsyncpa [#allocation6], 1

</llo_original>
